<compile_context>
chip_gen: v7x
topology: tpu7x:2x2x1
jax: 0.10.0
libtpu: 0.0.40
codegen_flags: <defaults>
</compile_context>

<pallas_src>
import jax
import jax.numpy as jnp
import numpy as np
from jax.experimental import pallas as pl
from jax.experimental.pallas import tpu as pltpu

BN_EPS = 1e-5
NEG_SLOPE = 0.2
LANE = 128                       # channel padding target (lane width)
VMEM_LIMIT = 48 * 1024 * 1024    # raised scoped-VMEM budget (v5e default is only 16 MiB)


def _round_up(x, m):
    return (x + m - 1) // m * m


def _pick_row_tile(h, w):
    """Largest divisor of h such that the matmul M-dim (rows * w) is ~128 while the
    per-step tile stays small against the per-generation VMEM budget."""
    target = max(1, min(h, max(1, 128 // max(w, 1))))
    for th in range(target, 0, -1):
        if h % th == 0:
            return th
    return 1


# ---------------------------------------------------------------------------
# Kernels
# ---------------------------------------------------------------------------

def _im2col_conv(xt, w):
    """3x3 VALID conv of one halo'd row tile as a single MXU matmul.

    xt: (TH+2, W+2, Cp) f32    w: (9*Cp, Cp) f32    ->  (TH*W, Cp) f32
    """
    thp, wp, cp = xt.shape
    th, w_out = thp - 2, wp - 2
    cols = [xt[dy:dy + th, dx:dx + w_out, :] for dy in range(3) for dx in range(3)]
    patches = jnp.concatenate(cols, axis=-1).reshape(th * w_out, 9 * cp)
    return jnp.dot(patches, w, preferred_element_type=jnp.float32)


def _conv_epilogue(xt, w_ref, z_ref, stats_ref):
    th, w_out, cp = z_ref.shape[2], z_ref.shape[3], z_ref.shape[4]
    acc = _im2col_conv(xt, w_ref[...].astype(jnp.float32))           # (TH*W, Cp)
    # One-pass partial BatchNorm statistics for this tile: sum and sum-of-squares.
    s = jnp.sum(acc, axis=0, keepdims=True)                          # (1, Cp)
    ss = jnp.sum(acc * acc, axis=0, keepdims=True)                   # (1, Cp)
    pad_rows = stats_ref.shape[2] - 2
    stats_ref[0, 0] = jnp.concatenate(
        [s, ss, jnp.zeros((pad_rows, cp), jnp.float32)], axis=0)
    z_ref[0, 0] = acc.reshape(th, w_out, cp).astype(z_ref.dtype)


def _conv_kernel(x_ref, w_ref, z_ref, stats_ref):
    # Stage 1: plain 3x3 conv on the halo'd, reflection-padded input tile.
    _conv_epilogue(x_ref[0, 0].astype(jnp.float32), w_ref, z_ref, stats_ref)


def _bn_act_conv_kernel(x_ref, scale_ref, shift_ref, w_ref, z_ref, stats_ref):
    # Stage 2: fused BN1 affine + LeakyReLU(0.2) on the halo'd conv1 tile, then conv.
    # (Reflection padding commutes with per-channel pointwise ops, so applying the
    #  affine/activation on the already-padded raw conv1 output is exact.)
    xt = x_ref[0, 0].astype(jnp.float32)                             # (TH+2, W+2, Cp)
    scale = scale_ref[...].astype(jnp.float32)[None]                 # (1, 1, Cp)
    shift = shift_ref[...].astype(jnp.float32)[None]
    xt = xt * scale + shift
    xt = jnp.where(xt >= 0, xt, NEG_SLOPE * xt)
    _conv_epilogue(xt, w_ref, z_ref, stats_ref)


def _bn_residual_kernel(z_ref, r_ref, scale_ref, shift_ref, out_ref):
    # Finalize: BN2 affine + residual add (lane-dense elementwise).
    z = z_ref[...].astype(jnp.float32)                               # (1,1,TH,W,Cp)
    r = r_ref[...].astype(jnp.float32)
    scale = scale_ref[...].astype(jnp.float32)                       # (1, Cp) -> bcast
    shift = shift_ref[...].astype(jnp.float32)
    out_ref[...] = (z * scale + shift + r).astype(out_ref.dtype)


# ---------------------------------------------------------------------------
# pallas_call builders
# ---------------------------------------------------------------------------

def _conv_stage(x_halo, w_flat, scale=None, shift=None):
    n, t, thp, wp, cp = x_halo.shape
    th, w_out = thp - 2, wp - 2

    x_spec = pl.BlockSpec((1, 1, thp, wp, cp), lambda i, j: (i, j, 0, 0, 0))
    w_spec = pl.BlockSpec((9 * cp, cp), lambda i, j: (0, 0))
    vec_spec = pl.BlockSpec((1, cp), lambda i, j: (0, 0))
    z_spec = pl.BlockSpec((1, 1, th, w_out, cp), lambda i, j: (i, j, 0, 0, 0))
    st_spec = pl.BlockSpec((1, 1, 8, cp), lambda i, j: (i, j, 0, 0))

    if scale is None:
        kernel = _conv_kernel
        in_specs = [x_spec, w_spec]
        args = (x_halo, w_flat)
    else:
        kernel = _bn_act_conv_kernel
        in_specs = [x_spec, vec_spec, vec_spec, w_spec]
        args = (x_halo, scale, shift, w_flat)

    flops = 2 * n * t * th * w_out * (9 * cp) * cp
    bytes_accessed = 4 * (x_halo.size + w_flat.size
                          + n * t * th * w_out * cp + n * t * 8 * cp)

    return pl.pallas_call(
        kernel,
        grid_spec=pltpu.PrefetchScalarGridSpec(
            num_scalar_prefetch=0,
            grid=(n, t),
            in_specs=in_specs,
            out_specs=[z_spec, st_spec],
        ),
        out_shape=(
            jax.ShapeDtypeStruct((n, t, th, w_out, cp), x_halo.dtype),
            jax.ShapeDtypeStruct((n, t, 8, cp), jnp.float32),
        ),
        compiler_params=pltpu.CompilerParams(
            dimension_semantics=("parallel", "parallel"),
            vmem_limit_bytes=VMEM_LIMIT),
        cost_estimate=pl.CostEstimate(flops=flops, transcendentals=0,
                                      bytes_accessed=bytes_accessed),
    )(*args)


def _bn_residual(z_tiles, r_tiles, scale, shift):
    n, t, th, w_out, cp = z_tiles.shape
    blk = pl.BlockSpec((1, 1, th, w_out, cp), lambda i, j: (i, j, 0, 0, 0))
    vec = pl.BlockSpec((1, cp), lambda i, j: (0, 0))
    return pl.pallas_call(
        _bn_residual_kernel,
        grid_spec=pltpu.PrefetchScalarGridSpec(
            num_scalar_prefetch=0,
            grid=(n, t),
            in_specs=[blk, blk, vec, vec],
            out_specs=blk,
        ),
        out_shape=jax.ShapeDtypeStruct(z_tiles.shape, z_tiles.dtype),
        compiler_params=pltpu.CompilerParams(
            dimension_semantics=("parallel", "parallel"),
            vmem_limit_bytes=VMEM_LIMIT),
        input_output_aliases={1: 0},   # write the result in place of the residual tiles
    )(z_tiles, r_tiles, scale, shift)


# ---------------------------------------------------------------------------
# Wrapper glue (layout plumbing only: transpose, channel pad, halo tiling)
# ---------------------------------------------------------------------------

def _reflect_pad_hw(x):
    return jnp.pad(x, ((0, 0), (1, 1), (1, 1), (0, 0)), mode="reflect")


def _tile_rows_with_halo(xp, th):
    # xp: (N, H+2, W+2, Cp) -> (N, T, TH+2, W+2, Cp); each tile carries a 1-row halo.
    n, hp, wp, cp = xp.shape
    t = (hp - 2) // th
    return jnp.stack([xp[:, i * th:i * th + th + 2] for i in range(t)], axis=1)


def _prep_weight(w_hwio, cp):
    # (3, 3, Cin, Cout) -> lane-dense (9*Cp, Cp) slab (taps major, Cin minor, Cout lanes).
    kh, kw, cin, cout = w_hwio.shape
    wpadded = jnp.pad(w_hwio, ((0, 0), (0, 0), (0, cp - cin), (0, cp - cout)))
    return wpadded.reshape(kh * kw * cp, cp)


def _pad_vec(v, cp):
    return jnp.pad(v, ((0, 0), (0, cp - v.shape[1])))     # (1, C) -> (1, Cp)


def _bn_scale_shift(stats, gamma_p, beta_p, count):
    # stats: (N, T, 8, Cp) partial (sum, sumsq) rows -> folded affine (1, Cp) each.
    s = jnp.sum(stats, axis=(0, 1))                        # (8, Cp)
    mean = s[0] / count
    var = s[1] / count - mean * mean                       # biased var (BN training mode)
    inv = jax.lax.rsqrt(var + BN_EPS)
    scale = gamma_p[0] * inv
    shift = beta_p[0] - mean * scale
    return scale[None, :], shift[None, :]


@jax.jit
def res_block_forward(x_nchw, w1, g1, b1, w2, g2, b2):
    n, c, h, w = x_nchw.shape
    cp = _round_up(c, LANE)
    th = _pick_row_tile(h, w)
    t = h // th

    # NCHW -> NHWC, pad channels so the lane dim is dense.
    x = jnp.transpose(x_nchw, (0, 2, 3, 1))
    x = jnp.pad(x, ((0, 0), (0, 0), (0, 0), (0, cp - c)))

    w1f, w2f = _prep_weight(w1, cp), _prep_weight(w2, cp)
    g1p, b1p = _pad_vec(g1, cp), _pad_vec(b1, cp)
    g2p, b2p = _pad_vec(g2, cp), _pad_vec(b2, cp)

    count = float(n * h * w)
    r_tiles = x.reshape(n, t, th, w, cp)                   # residual, tiled layout

    # ---- stage 1: conv1 (+ partial BN1 statistics) --------------------------
    x_halo = _tile_rows_with_halo(_reflect_pad_hw(x), th)
    z1, st1 = _conv_stage(x_halo, w1f)
    scale1, shift1 = _bn_scale_shift(st1, g1p, b1p, count)

    # ---- stage 2: fused BN1 affine + LeakyReLU + conv2 (+ partial BN2 stats) -
    z1_halo = _tile_rows_with_halo(_reflect_pad_hw(z1.reshape(n, h, w, cp)), th)
    z2, st2 = _conv_stage(z1_halo, w2f, scale1, shift1)
    scale2, shift2 = _bn_scale_shift(st2, g2p, b2p, count)

    # ---- finalize: BN2 affine + residual add ---------------------------------
    out_tiles = _bn_residual(z2, r_tiles, scale2, shift2)
    out = out_tiles.reshape(n, h, w, cp)[..., :c]
    return jnp.transpose(out, (0, 3, 1, 2))


# ---------------------------------------------------------------------------
# Pure-JAX reference mirroring the PyTorch forward (for the correctness check)
# ---------------------------------------------------------------------------

def _reference_forward(x_nchw, w1, g1, b1, w2, g2, b2):
    def conv_bn(x, w, g, b, act):
        xp = jnp.pad(x, ((0, 0), (0, 0), (1, 1), (1, 1)), mode="reflect")
        y = jax.lax.conv_general_dilated(
            xp, w, window_strides=(1, 1), padding="VALID",
            dimension_numbers=("NCHW", "HWIO", "NCHW"))
        mean = jnp.mean(y, axis=(0, 2, 3), keepdims=True)
        var = jnp.mean((y - mean) ** 2, axis=(0, 2, 3), keepdims=True)
        y = (y - mean) * jax.lax.rsqrt(var + BN_EPS)
        y = y * g.reshape(1, -1, 1, 1) + b.reshape(1, -1, 1, 1)
        if act:
            y = jnp.where(y >= 0, y, NEG_SLOPE * y)
        return y

    y = conv_bn(x_nchw, w1, g1, b1, True)
    y = conv_bn(y, w2, g2, b2, False)
    return y + x_nchw


if __name__ == "__main__":
    N, C, H, W = 2, 4, 16, 16

    key = jax.random.PRNGKey(0)
    kx, kw1, kw2 = jax.random.split(key, 3)

    x = jax.random.normal(kx, (N, C, H, W), dtype=jnp.float32)
    # Conv2d weights stored as HWIO = (3, 3, Cin, Cout) (PyTorch is (Cout, Cin, 3, 3)).
    w1 = jax.random.normal(kw1, (3, 3, C, C), dtype=jnp.float32) * 0.1
    w2 = jax.random.normal(kw2, (3, 3, C, C), dtype=jnp.float32) * 0.1
    # BatchNorm2d default init: gamma=1, beta=0, stored as (1, C).
    g1 = jnp.ones((1, C), jnp.float32)
    b1 = jnp.zeros((1, C), jnp.float32)
    g2 = jnp.ones((1, C), jnp.float32)
    b2 = jnp.zeros((1, C), jnp.float32)

    out = jax.block_until_ready(res_block_forward(x, w1, g1, b1, w2, g2, b2))

    ref = _reference_forward(x, w1, g1, b1, w2, g2, b2)
    np.testing.assert_allclose(np.asarray(out), np.asarray(ref),
                               rtol=1e-3, atol=1e-3)

    print("KERNEL_OK")
</pallas_src>

<mosaic_0001>
module attributes {stable_mosaic.version = 11 : i64} {
  func.func @_conv_kernel(%arg0: i32, %arg1: i32, %arg2: memref<1x1x10x18x128xf32, #tpu.memory_space<vmem>>, %arg3: memref<1152x128xf32, #tpu.memory_space<vmem>>, %arg4: memref<1x1x8x16x128xf32, #tpu.memory_space<vmem>>, %arg5: memref<1x1x8x128xf32, #tpu.memory_space<vmem>>) attributes {dimension_semantics = [#tpu.dimension_semantics<parallel>, #tpu.dimension_semantics<parallel>], iteration_bounds = array<i64: 2, 2>, scalar_prefetch = 0 : i64, scratch_operands = 0 : i64, tpu.core_type = #tpu.core_type<tc>, window_params = [{transform_indices = @transform_0, window_bounds = array<i64: 1, 1, 10, 18, 128>}, {pipeline_mode = #tpu.pipeline_mode<synchronous>, transform_indices = @transform_1, window_bounds = array<i64: 1152, 128>}, {transform_indices = @transform_2, window_bounds = array<i64: 1, 1, 8, 16, 128>}, {transform_indices = @transform_3, window_bounds = array<i64: 1, 1, 8, 128>}]} {
    %c0 = arith.constant 0 : index
    %c0_0 = arith.constant 0 : index
    %c0_1 = arith.constant 0 : index
    %c0_2 = arith.constant 0 : index
    %c0_3 = arith.constant 0 : index
    %0 = vector.load %arg2[%c0, %c0_0, %c0_1, %c0_2, %c0_3] : memref<1x1x10x18x128xf32, #tpu.memory_space<vmem>>, vector<1x1x10x18x128xf32>
    %1 = vector.shape_cast %0 : vector<1x1x10x18x128xf32> to vector<10x18x128xf32>
    %c0_4 = arith.constant 0 : index
    %c0_5 = arith.constant 0 : index
    %2 = vector.load %arg3[%c0_4, %c0_5] : memref<1152x128xf32, #tpu.memory_space<vmem>>, vector<1152x128xf32>
    %3 = vector.extract_strided_slice %1 {offsets = [0, 0, 0], sizes = [8, 16, 128], strides = [1, 1, 1]} : vector<10x18x128xf32> to vector<8x16x128xf32>
    %4 = vector.extract_strided_slice %1 {offsets = [0, 1, 0], sizes = [8, 16, 128], strides = [1, 1, 1]} : vector<10x18x128xf32> to vector<8x16x128xf32>
    %5 = vector.extract_strided_slice %1 {offsets = [0, 2, 0], sizes = [8, 16, 128], strides = [1, 1, 1]} : vector<10x18x128xf32> to vector<8x16x128xf32>
    %6 = vector.extract_strided_slice %1 {offsets = [1, 0, 0], sizes = [8, 16, 128], strides = [1, 1, 1]} : vector<10x18x128xf32> to vector<8x16x128xf32>
    %7 = vector.extract_strided_slice %1 {offsets = [1, 1, 0], sizes = [8, 16, 128], strides = [1, 1, 1]} : vector<10x18x128xf32> to vector<8x16x128xf32>
    %8 = vector.extract_strided_slice %1 {offsets = [1, 2, 0], sizes = [8, 16, 128], strides = [1, 1, 1]} : vector<10x18x128xf32> to vector<8x16x128xf32>
    %9 = vector.extract_strided_slice %1 {offsets = [2, 0, 0], sizes = [8, 16, 128], strides = [1, 1, 1]} : vector<10x18x128xf32> to vector<8x16x128xf32>
    %10 = vector.extract_strided_slice %1 {offsets = [2, 1, 0], sizes = [8, 16, 128], strides = [1, 1, 1]} : vector<10x18x128xf32> to vector<8x16x128xf32>
    %11 = vector.extract_strided_slice %1 {offsets = [2, 2, 0], sizes = [8, 16, 128], strides = [1, 1, 1]} : vector<10x18x128xf32> to vector<8x16x128xf32>
    %12 = tpu.concatenate %3, %4, %5, %6, %7, %8, %9, %10, %11 in 2 : vector<8x16x128xf32>, vector<8x16x128xf32>, vector<8x16x128xf32>, vector<8x16x128xf32>, vector<8x16x128xf32>, vector<8x16x128xf32>, vector<8x16x128xf32>, vector<8x16x128xf32>, vector<8x16x128xf32> -> vector<8x16x1152xf32>
    %13 = vector.shape_cast %12 : vector<8x16x1152xf32> to vector<128x1152xf32>
    %cst = arith.constant dense<0.000000e+00> : vector<128x128xf32>
    %14 = tpu.matmul %13, %2, %cst {dimension_numbers = #tpu.dot_dimension_numbers<[1], [0], [0], [1], [0, 0, 1, 1], [], []>} : vector<128x1152xf32>, vector<1152x128xf32>, vector<128x128xf32> -> vector<128x128xf32>
    %cst_6 = arith.constant dense<0.000000e+00> : vector<128xf32>
    %15 = vector.multi_reduction <add>, %14, %cst_6 [0] : vector<128x128xf32> to vector<128xf32>
    %16 = vector.shape_cast %15 : vector<128xf32> to vector<1x128xf32>
    %17 = arith.mulf %14, %14 : vector<128x128xf32>
    %cst_7 = arith.constant dense<0.000000e+00> : vector<128xf32>
    %18 = vector.multi_reduction <add>, %17, %cst_7 [0] : vector<128x128xf32> to vector<128xf32>
    %19 = vector.shape_cast %18 : vector<128xf32> to vector<1x128xf32>
    %cst_8 = arith.constant 0.000000e+00 : f32
    %20 = vector.broadcast %cst_8 : f32 to vector<6x128xf32>
    %21 = tpu.concatenate %16, %19, %20 in 0 : vector<1x128xf32>, vector<1x128xf32>, vector<6x128xf32> -> vector<8x128xf32>
    %c0_9 = arith.constant 0 : index
    %c0_10 = arith.constant 0 : index
    %c0_11 = arith.constant 0 : index
    %c0_12 = arith.constant 0 : index
    %22 = vector.load %arg5[%c0_9, %c0_10, %c0_11, %c0_12] : memref<1x1x8x128xf32, #tpu.memory_space<vmem>>, vector<1x1x8x128xf32>
    %23 = vector.shape_cast %22 : vector<1x1x8x128xf32> to vector<8x128xf32>
    %24 = vector.shape_cast %21 : vector<8x128xf32> to vector<1x1x8x128xf32>
    tpu.vector_store %arg5[%c0_9, %c0_10, %c0_11, %c0_12], %24 {strides = array<i32>} : memref<1x1x8x128xf32, #tpu.memory_space<vmem>>, vector<1x1x8x128xf32>,
    %25 = vector.shape_cast %14 : vector<128x128xf32> to vector<8x16x128xf32>
    %c0_13 = arith.constant 0 : index
    %c0_14 = arith.constant 0 : index
    %c0_15 = arith.constant 0 : index
    %c0_16 = arith.constant 0 : index
    %c0_17 = arith.constant 0 : index
    %26 = vector.load %arg4[%c0_13, %c0_14, %c0_15, %c0_16, %c0_17] : memref<1x1x8x16x128xf32, #tpu.memory_space<vmem>>, vector<1x1x8x16x128xf32>
    %27 = vector.shape_cast %26 : vector<1x1x8x16x128xf32> to vector<8x16x128xf32>
    %28 = vector.shape_cast %25 : vector<8x16x128xf32> to vector<1x1x8x16x128xf32>
    tpu.vector_store %arg4[%c0_13, %c0_14, %c0_15, %c0_16, %c0_17], %28 {strides = array<i32>} : memref<1x1x8x16x128xf32, #tpu.memory_space<vmem>>, vector<1x1x8x16x128xf32>,
    return
  }
  func.func @transform_0(%arg0: i32, %arg1: i32) -> (i32, i32, i32, i32, i32) {
    %c0_i32 = arith.constant 0 : i32
    %c0_i32_0 = arith.constant 0 : i32
    %c0_i32_1 = arith.constant 0 : i32
    %c0_i32_2 = arith.constant 0 : i32
    return %arg0, %arg1, %c0_i32, %c0_i32_0, %c0_i32_1 : i32, i32, i32, i32, i32
  }
  func.func @transform_1(%arg0: i32, %arg1: i32) -> (i32, i32) {
    %c0_i32 = arith.constant 0 : i32
    %c0_i32_0 = arith.constant 0 : i32
    %c0_i32_1 = arith.constant 0 : i32
    return %c0_i32, %c0_i32_0 : i32, i32
  }
  func.func @transform_2(%arg0: i32, %arg1: i32) -> (i32, i32, i32, i32, i32) {
    %c0_i32 = arith.constant 0 : i32
    %c0_i32_0 = arith.constant 0 : i32
    %c0_i32_1 = arith.constant 0 : i32
    %c0_i32_2 = arith.constant 0 : i32
    return %arg0, %arg1, %c0_i32, %c0_i32_0, %c0_i32_1 : i32, i32, i32, i32, i32
  }
  func.func @transform_3(%arg0: i32, %arg1: i32) -> (i32, i32, i32, i32) {
    %c0_i32 = arith.constant 0 : i32
    %c0_i32_0 = arith.constant 0 : i32
    %c0_i32_1 = arith.constant 0 : i32
    return %arg0, %arg1, %c0_i32, %c0_i32_0 : i32, i32, i32, i32
  }
}

module attributes {stable_mosaic.version = 11 : i64} {
  func.func @_bn_residual_kernel(%arg0: i32, %arg1: i32, %arg2: memref<1x1x8x16x128xf32, #tpu.memory_space<vmem>>, %arg3: memref<1x1x8x16x128xf32, #tpu.memory_space<vmem>>, %arg4: memref<1x128xf32, #tpu.memory_space<vmem>>, %arg5: memref<1x128xf32, #tpu.memory_space<vmem>>, %arg6: memref<1x1x8x16x128xf32, #tpu.memory_space<vmem>>) attributes {dimension_semantics = [#tpu.dimension_semantics<parallel>, #tpu.dimension_semantics<parallel>], iteration_bounds = array<i64: 2, 2>, scalar_prefetch = 0 : i64, scratch_operands = 0 : i64, tpu.core_type = #tpu.core_type<tc>, window_params = [{transform_indices = @transform_0, window_bounds = array<i64: 1, 1, 8, 16, 128>}, {transform_indices = @transform_1, window_bounds = array<i64: 1, 1, 8, 16, 128>}, {pipeline_mode = #tpu.pipeline_mode<synchronous>, transform_indices = @transform_2, window_bounds = array<i64: 1, 128>}, {pipeline_mode = #tpu.pipeline_mode<synchronous>, transform_indices = @transform_3, window_bounds = array<i64: 1, 128>}, {transform_indices = @transform_4, window_bounds = array<i64: 1, 1, 8, 16, 128>}]} {
    %c0 = arith.constant 0 : index
    %c0_0 = arith.constant 0 : index
    %c0_1 = arith.constant 0 : index
    %c0_2 = arith.constant 0 : index
    %c0_3 = arith.constant 0 : index
    %0 = vector.load %arg2[%c0, %c0_0, %c0_1, %c0_2, %c0_3] : memref<1x1x8x16x128xf32, #tpu.memory_space<vmem>>, vector<1x1x8x16x128xf32>
    %c0_4 = arith.constant 0 : index
    %c0_5 = arith.constant 0 : index
    %c0_6 = arith.constant 0 : index
    %c0_7 = arith.constant 0 : index
    %c0_8 = arith.constant 0 : index
    %1 = vector.load %arg3[%c0_4, %c0_5, %c0_6, %c0_7, %c0_8] : memref<1x1x8x16x128xf32, #tpu.memory_space<vmem>>, vector<1x1x8x16x128xf32>
    %c0_9 = arith.constant 0 : index
    %c0_10 = arith.constant 0 : index
    %2 = vector.load %arg4[%c0_9, %c0_10] : memref<1x128xf32, #tpu.memory_space<vmem>>, vector<1x128xf32>
    %c0_11 = arith.constant 0 : index
    %c0_12 = arith.constant 0 : index
    %3 = vector.load %arg5[%c0_11, %c0_12] : memref<1x128xf32, #tpu.memory_space<vmem>>, vector<1x128xf32>
    %4 = vector.shape_cast %2 : vector<1x128xf32> to vector<1x1x1x1x128xf32>
    %5 = vector.broadcast %4 : vector<1x1x1x1x128xf32> to vector<1x1x8x16x128xf32>
    %6 = arith.mulf %0, %5 : vector<1x1x8x16x128xf32>
    %7 = vector.shape_cast %3 : vector<1x128xf32> to vector<1x1x1x1x128xf32>
    %8 = vector.broadcast %7 : vector<1x1x1x1x128xf32> to vector<1x1x8x16x128xf32>
    %9 = arith.addf %6, %8 : vector<1x1x8x16x128xf32>
    %10 = arith.addf %9, %1 : vector<1x1x8x16x128xf32>
    %c0_13 = arith.constant 0 : index
    %c0_14 = arith.constant 0 : index
    %c0_15 = arith.constant 0 : index
    %c0_16 = arith.constant 0 : index
    %c0_17 = arith.constant 0 : index
    %11 = vector.load %arg6[%c0_13, %c0_14, %c0_15, %c0_16, %c0_17] : memref<1x1x8x16x128xf32, #tpu.memory_space<vmem>>, vector<1x1x8x16x128xf32>
    tpu.vector_store %arg6[%c0_13, %c0_14, %c0_15, %c0_16, %c0_17], %10 {strides = array<i32>} : memref<1x1x8x16x128xf32, #tpu.memory_space<vmem>>, vector<1x1x8x16x128xf32>,
    return
  }
  func.func @transform_0(%arg0: i32, %arg1: i32) -> (i32, i32, i32, i32, i32) {
    %c0_i32 = arith.constant 0 : i32
    %c0_i32_0 = arith.constant 0 : i32
    %c0_i32_1 = arith.constant 0 : i32
    %c0_i32_2 = arith.constant 0 : i32
    return %arg0, %arg1, %c0_i32, %c0_i32_0, %c0_i32_1 : i32, i32, i32, i32, i32
  }
  func.func @transform_1(%arg0: i32, %arg1: i32) -> (i32, i32, i32, i32, i32) {
    %c0_i32 = arith.constant 0 : i32
    %c0_i32_0 = arith.constant 0 : i32
    %c0_i32_1 = arith.constant 0 : i32
    %c0_i32_2 = arith.constant 0 : i32
    return %arg0, %arg1, %c0_i32, %c0_i32_0, %c0_i32_1 : i32, i32, i32, i32, i32
  }
  func.func @transform_2(%arg0: i32, %arg1: i32) -> (i32, i32) {
    %c0_i32 = arith.constant 0 : i32
    %c0_i32_0 = arith.constant 0 : i32
    %c0_i32_1 = arith.constant 0 : i32
    return %c0_i32, %c0_i32_0 : i32, i32
  }
  func.func @transform_3(%arg0: i32, %arg1: i32) -> (i32, i32) {
    %c0_i32 = arith.constant 0 : i32
    %c0_i32_0 = arith.constant 0 : i32
    %c0_i32_1 = arith.constant 0 : i32
    return %c0_i32, %c0_i32_0 : i32, i32
  }
  func.func @transform_4(%arg0: i32, %arg1: i32) -> (i32, i32, i32, i32, i32) {
    %c0_i32 = arith.constant 0 : i32
    %c0_i32_0 = arith.constant 0 : i32
    %c0_i32_1 = arith.constant 0 : i32
    %c0_i32_2 = arith.constant 0 : i32
    return %arg0, %arg1, %c0_i32, %c0_i32_0, %c0_i32_1 : i32, i32, i32, i32, i32
  }
}

module attributes {stable_mosaic.version = 11 : i64} {
  func.func @_bn_act_conv_kernel(%arg0: i32, %arg1: i32, %arg2: memref<1x1x10x18x128xf32, #tpu.memory_space<vmem>>, %arg3: memref<1x128xf32, #tpu.memory_space<vmem>>, %arg4: memref<1x128xf32, #tpu.memory_space<vmem>>, %arg5: memref<1152x128xf32, #tpu.memory_space<vmem>>, %arg6: memref<1x1x8x16x128xf32, #tpu.memory_space<vmem>>, %arg7: memref<1x1x8x128xf32, #tpu.memory_space<vmem>>) attributes {dimension_semantics = [#tpu.dimension_semantics<parallel>, #tpu.dimension_semantics<parallel>], iteration_bounds = array<i64: 2, 2>, scalar_prefetch = 0 : i64, scratch_operands = 0 : i64, tpu.core_type = #tpu.core_type<tc>, window_params = [{transform_indices = @transform_0, window_bounds = array<i64: 1, 1, 10, 18, 128>}, {pipeline_mode = #tpu.pipeline_mode<synchronous>, transform_indices = @transform_1, window_bounds = array<i64: 1, 128>}, {pipeline_mode = #tpu.pipeline_mode<synchronous>, transform_indices = @transform_2, window_bounds = array<i64: 1, 128>}, {pipeline_mode = #tpu.pipeline_mode<synchronous>, transform_indices = @transform_3, window_bounds = array<i64: 1152, 128>}, {transform_indices = @transform_4, window_bounds = array<i64: 1, 1, 8, 16, 128>}, {transform_indices = @transform_5, window_bounds = array<i64: 1, 1, 8, 128>}]} {
    %c0 = arith.constant 0 : index
    %c0_0 = arith.constant 0 : index
    %c0_1 = arith.constant 0 : index
    %c0_2 = arith.constant 0 : index
    %c0_3 = arith.constant 0 : index
    %0 = vector.load %arg2[%c0, %c0_0, %c0_1, %c0_2, %c0_3] : memref<1x1x10x18x128xf32, #tpu.memory_space<vmem>>, vector<1x1x10x18x128xf32>
    %1 = vector.shape_cast %0 : vector<1x1x10x18x128xf32> to vector<10x18x128xf32>
    %c0_4 = arith.constant 0 : index
    %c0_5 = arith.constant 0 : index
    %2 = vector.load %arg3[%c0_4, %c0_5] : memref<1x128xf32, #tpu.memory_space<vmem>>, vector<1x128xf32>
    %3 = vector.shape_cast %2 : vector<1x128xf32> to vector<1x1x128xf32>
    %c0_6 = arith.constant 0 : index
    %c0_7 = arith.constant 0 : index
    %4 = vector.load %arg4[%c0_6, %c0_7] : memref<1x128xf32, #tpu.memory_space<vmem>>, vector<1x128xf32>
    %5 = vector.shape_cast %4 : vector<1x128xf32> to vector<1x1x128xf32>
    %6 = vector.broadcast %3 : vector<1x1x128xf32> to vector<10x18x128xf32>
    %7 = arith.mulf %1, %6 : vector<10x18x128xf32>
    %8 = vector.broadcast %5 : vector<1x1x128xf32> to vector<10x18x128xf32>
    %9 = arith.addf %7, %8 : vector<10x18x128xf32>
    %cst = arith.constant 0.000000e+00 : f32
    %10 = vector.broadcast %cst : f32 to vector<10x18x128xf32>
    %11 = arith.cmpf oge, %9, %10 : vector<10x18x128xf32>
    %cst_8 = arith.constant 2.000000e-01 : f32
    %12 = vector.broadcast %cst_8 : f32 to vector<10x18x128xf32>
    %13 = arith.mulf %12, %9 : vector<10x18x128xf32>
    %14 = arith.select %11, %9, %13 : vector<10x18x128xi1>, vector<10x18x128xf32>
    %c0_9 = arith.constant 0 : index
    %c0_10 = arith.constant 0 : index
    %15 = vector.load %arg5[%c0_9, %c0_10] : memref<1152x128xf32, #tpu.memory_space<vmem>>, vector<1152x128xf32>
    %16 = vector.extract_strided_slice %14 {offsets = [0, 0, 0], sizes = [8, 16, 128], strides = [1, 1, 1]} : vector<10x18x128xf32> to vector<8x16x128xf32>
    %17 = vector.extract_strided_slice %14 {offsets = [0, 1, 0], sizes = [8, 16, 128], strides = [1, 1, 1]} : vector<10x18x128xf32> to vector<8x16x128xf32>
    %18 = vector.extract_strided_slice %14 {offsets = [0, 2, 0], sizes = [8, 16, 128], strides = [1, 1, 1]} : vector<10x18x128xf32> to vector<8x16x128xf32>
    %19 = vector.extract_strided_slice %14 {offsets = [1, 0, 0], sizes = [8, 16, 128], strides = [1, 1, 1]} : vector<10x18x128xf32> to vector<8x16x128xf32>
    %20 = vector.extract_strided_slice %14 {offsets = [1, 1, 0], sizes = [8, 16, 128], strides = [1, 1, 1]} : vector<10x18x128xf32> to vector<8x16x128xf32>
    %21 = vector.extract_strided_slice %14 {offsets = [1, 2, 0], sizes = [8, 16, 128], strides = [1, 1, 1]} : vector<10x18x128xf32> to vector<8x16x128xf32>
    %22 = vector.extract_strided_slice %14 {offsets = [2, 0, 0], sizes = [8, 16, 128], strides = [1, 1, 1]} : vector<10x18x128xf32> to vector<8x16x128xf32>
    %23 = vector.extract_strided_slice %14 {offsets = [2, 1, 0], sizes = [8, 16, 128], strides = [1, 1, 1]} : vector<10x18x128xf32> to vector<8x16x128xf32>
    %24 = vector.extract_strided_slice %14 {offsets = [2, 2, 0], sizes = [8, 16, 128], strides = [1, 1, 1]} : vector<10x18x128xf32> to vector<8x16x128xf32>
    %25 = tpu.concatenate %16, %17, %18, %19, %20, %21, %22, %23, %24 in 2 : vector<8x16x128xf32>, vector<8x16x128xf32>, vector<8x16x128xf32>, vector<8x16x128xf32>, vector<8x16x128xf32>, vector<8x16x128xf32>, vector<8x16x128xf32>, vector<8x16x128xf32>, vector<8x16x128xf32> -> vector<8x16x1152xf32>
    %26 = vector.shape_cast %25 : vector<8x16x1152xf32> to vector<128x1152xf32>
    %cst_11 = arith.constant dense<0.000000e+00> : vector<128x128xf32>
    %27 = tpu.matmul %26, %15, %cst_11 {dimension_numbers = #tpu.dot_dimension_numbers<[1], [0], [0], [1], [0, 0, 1, 1], [], []>} : vector<128x1152xf32>, vector<1152x128xf32>, vector<128x128xf32> -> vector<128x128xf32>
    %cst_12 = arith.constant dense<0.000000e+00> : vector<128xf32>
    %28 = vector.multi_reduction <add>, %27, %cst_12 [0] : vector<128x128xf32> to vector<128xf32>
    %29 = vector.shape_cast %28 : vector<128xf32> to vector<1x128xf32>
    %30 = arith.mulf %27, %27 : vector<128x128xf32>
    %cst_13 = arith.constant dense<0.000000e+00> : vector<128xf32>
    %31 = vector.multi_reduction <add>, %30, %cst_13 [0] : vector<128x128xf32> to vector<128xf32>
    %32 = vector.shape_cast %31 : vector<128xf32> to vector<1x128xf32>
    %cst_14 = arith.constant 0.000000e+00 : f32
    %33 = vector.broadcast %cst_14 : f32 to vector<6x128xf32>
    %34 = tpu.concatenate %29, %32, %33 in 0 : vector<1x128xf32>, vector<1x128xf32>, vector<6x128xf32> -> vector<8x128xf32>
    %c0_15 = arith.constant 0 : index
    %c0_16 = arith.constant 0 : index
    %c0_17 = arith.constant 0 : index
    %c0_18 = arith.constant 0 : index
    %35 = vector.load %arg7[%c0_15, %c0_16, %c0_17, %c0_18] : memref<1x1x8x128xf32, #tpu.memory_space<vmem>>, vector<1x1x8x128xf32>
    %36 = vector.shape_cast %35 : vector<1x1x8x128xf32> to vector<8x128xf32>
    %37 = vector.shape_cast %34 : vector<8x128xf32> to vector<1x1x8x128xf32>
    tpu.vector_store %arg7[%c0_15, %c0_16, %c0_17, %c0_18], %37 {strides = array<i32>} : memref<1x1x8x128xf32, #tpu.memory_space<vmem>>, vector<1x1x8x128xf32>,
    %38 = vector.shape_cast %27 : vector<128x128xf32> to vector<8x16x128xf32>
    %c0_19 = arith.constant 0 : index
    %c0_20 = arith.constant 0 : index
    %c0_21 = arith.constant 0 : index
    %c0_22 = arith.constant 0 : index
    %c0_23 = arith.constant 0 : index
    %39 = vector.load %arg6[%c0_19, %c0_20, %c0_21, %c0_22, %c0_23] : memref<1x1x8x16x128xf32, #tpu.memory_space<vmem>>, vector<1x1x8x16x128xf32>
    %40 = vector.shape_cast %39 : vector<1x1x8x16x128xf32> to vector<8x16x128xf32>
    %41 = vector.shape_cast %38 : vector<8x16x128xf32> to vector<1x1x8x16x128xf32>
    tpu.vector_store %arg6[%c0_19, %c0_20, %c0_21, %c0_22, %c0_23], %41 {strides = array<i32>} : memref<1x1x8x16x128xf32, #tpu.memory_space<vmem>>, vector<1x1x8x16x128xf32>,
    return
  }
  func.func @transform_0(%arg0: i32, %arg1: i32) -> (i32, i32, i32, i32, i32) {
    %c0_i32 = arith.constant 0 : i32
    %c0_i32_0 = arith.constant 0 : i32
    %c0_i32_1 = arith.constant 0 : i32
    %c0_i32_2 = arith.constant 0 : i32
    return %arg0, %arg1, %c0_i32, %c0_i32_0, %c0_i32_1 : i32, i32, i32, i32, i32
  }
  func.func @transform_1(%arg0: i32, %arg1: i32) -> (i32, i32) {
    %c0_i32 = arith.constant 0 : i32
    %c0_i32_0 = arith.constant 0 : i32
    %c0_i32_1 = arith.constant 0 : i32
    return %c0_i32, %c0_i32_0 : i32, i32
  }
  func.func @transform_2(%arg0: i32, %arg1: i32) -> (i32, i32) {
    %c0_i32 = arith.constant 0 : i32
    %c0_i32_0 = arith.constant 0 : i32
    %c0_i32_1 = arith.constant 0 : i32
    return %c0_i32, %c0_i32_0 : i32, i32
  }
  func.func @transform_3(%arg0: i32, %arg1: i32) -> (i32, i32) {
    %c0_i32 = arith.constant 0 : i32
    %c0_i32_0 = arith.constant 0 : i32
    %c0_i32_1 = arith.constant 0 : i32
    return %c0_i32, %c0_i32_0 : i32, i32
  }
  func.func @transform_4(%arg0: i32, %arg1: i32) -> (i32, i32, i32, i32, i32) {
    %c0_i32 = arith.constant 0 : i32
    %c0_i32_0 = arith.constant 0 : i32
    %c0_i32_1 = arith.constant 0 : i32
    %c0_i32_2 = arith.constant 0 : i32
    return %arg0, %arg1, %c0_i32, %c0_i32_0, %c0_i32_1 : i32, i32, i32, i32, i32
  }
  func.func @transform_5(%arg0: i32, %arg1: i32) -> (i32, i32, i32, i32) {
    %c0_i32 = arith.constant 0 : i32
    %c0_i32_0 = arith.constant 0 : i32
    %c0_i32_1 = arith.constant 0 : i32
    return %arg0, %arg1, %c0_i32, %c0_i32_0 : i32, i32, i32, i32
  }
}

</mosaic_0001>

<llo_original>
// kernel: res_block_forward.5
$region0: #{res_block_forward.5}
  #allocation0 [shape = 'u32[]', space=smem, size = 0x4, offset = 0x4, fixed_abs, tag = 'smem constant byte address 0x4 - core index']
  #allocation1 [shape = 'u32[144,128]{1,0:T(1,128)}', space=vmem, size = 0x12000, scoped, tag = 'internal scratch']
  %s0 = inlined_call_operand.vmem [shape: f32[2,2,8,16,128], index: 0, kind: input, shape index: {}]
  %s1 = inlined_call_operand.vmem [shape: f32[2,2,8,16,128], index: 1, kind: input, shape index: {}, may-alias: {1,4}]
  %s2 = inlined_call_operand.vmem [shape: f32[1,128], index: 2, kind: input, shape index: {}]
  %s3 = inlined_call_operand.vmem [shape: f32[1,128], index: 3, kind: input, shape index: {}]
  %s4 = inlined_call_operand.vmem [shape: f32[2,2,8,16,128], index: 4, kind: output, shape index: {}, may-alias: {1,4}]
  %s5 = sld [smem:[#allocation0]]
  $region49: #{res_block_forward.5} parent=0
    _
  %s7 = ssub.s32 1, %s5
  %s8 = scalar_select 0, %s7, %s5
  loop: start=0, step=1, limit=6
  $region2: #{res_block_forward.5} parent=0 // loop_pre_header
    _
  $region3: #{res_block_forward.5} parent=0 // loop_header
    %s10 = sphi 0, %s14
    %p11 = scmp.ge.s32.totalorder %s10, 6
    %s17 = sphi 0, %s29
    %s18 = sphi 0, %s25
    %s19 = sphi 0, %s17
    %s20 = sphi 0, %s18
    %s21 = sphi 0, %s19
    %s22 = sphi 0, %s20
    %s34 = sphi 0, %s36
    %s37 = sphi 0, %s34
    %s38 = sphi 0, %s37
    %s54 = sphi 0, %s38
    %s62 = sphi 0, %s64
    %s65 = sphi 0, %s62
    %s66 = sphi 0, %s65
    %s82 = sphi 0, %s66
    %s86 = sphi 0, %s86
    %s88 = sphi 0, %s86
    %s89 = sphi 0, %s88
    %s103 = sphi 0, %s89
    %s107 = sphi 0, %s107
    %s109 = sphi 0, %s107
    %s110 = sphi 0, %s109
    %s124 = sphi 0, %s110
    %s132 = sphi 0, %s134
    %s135 = sphi 0, %s132
    %s136 = sphi 0, %s135
    %s152 = sphi 0, %s136
  $region4: #{res_block_forward.5} parent=0 // loop_header_branch
    %13 = sbr.rel (%p11) target = $region8
  $region5: #{res_block_forward.5} parent=0 // loop_body
    %s15 = ssub.s32 %s10, 1
    %s16 = ssub.s32 %s10, 2
    %s23 = sadd.s32 1, %s18
    %p24 = scmp.ge.s32.totalorder %s23, 2
    %s25 = scalar_select %p24, 0, %s23
    %s26 = sadd.s32 1, %s17
    %s27 = scalar_select %p24, %s26, %s17
    %p28 = scmp.ge.s32.totalorder %s27, 2
    %s29 = scalar_select %p28, 0, %s27
    %s30 = ssub.s32 %s17, %s29
    %s31 = ssub.s32 %s18, %s25
    %s32 = sor.u32 %s30, %s31
    %p33 = scmp.eq.s32.totalorder %s32, 0
    %s35 = sadd.s32 %s34, 1
    %s36 = scalar_select %p33, %s34, %s35
    %p39 = pneg %p33
    %p40 = scmp.eq.s32.totalorder %s10, 3
    %p41 = por %p39, %p40
    %p42 = scmp.ne.s32.totalorder %s34, %s37
    %p43 = scmp.eq.s32.totalorder %s10, 0
    %p44 = por %p42, %p43
    %p45 = scmp.ne.s32.totalorder %s34, %s37
    %p46 = scmp.eq.s32.totalorder %s15, 3
    %p47 = por %p45, %p46
    %p48 = scmp.ne.s32.totalorder %s37, %s38
    %p49 = scmp.eq.s32.totalorder %s15, 0
    %p50 = por %p48, %p49
    %p51 = scmp.ne.s32.totalorder %s37, %s38
    %p52 = scmp.eq.s32.totalorder %s16, 3
    %p53 = por %p51, %p52
    %p55 = scmp.ne.s32.totalorder %s38, %s54
    %p56 = scmp.eq.s32.totalorder %s16, 0
    %p57 = por %p55, %p56
    %s58 = ssub.s32 %s17, %s29
    %s59 = ssub.s32 %s18, %s25
    %s60 = sor.u32 %s58, %s59
    %p61 = scmp.eq.s32.totalorder %s60, 0
    %s63 = sadd.s32 %s62, 1
    %s64 = scalar_select %p61, %s62, %s63
    %p67 = pneg %p61
    %p68 = scmp.eq.s32.totalorder %s10, 3
    %p69 = por %p67, %p68
    %p70 = scmp.ne.s32.totalorder %s62, %s65
    %p71 = scmp.eq.s32.totalorder %s10, 0
    %p72 = por %p70, %p71
    %p73 = scmp.ne.s32.totalorder %s62, %s65
    %p74 = scmp.eq.s32.totalorder %s15, 3
    %p75 = por %p73, %p74
    %p76 = scmp.ne.s32.totalorder %s65, %s66
    %p77 = scmp.eq.s32.totalorder %s15, 0
    %p78 = por %p76, %p77
    %p79 = scmp.ne.s32.totalorder %s65, %s66
    %p80 = scmp.eq.s32.totalorder %s16, 3
    %p81 = por %p79, %p80
    %p83 = scmp.ne.s32.totalorder %s66, %s82
    %p84 = scmp.eq.s32.totalorder %s16, 0
    %p85 = por %p83, %p84
    %s87 = sadd.s32 %s86, 1
    %p90 = scmp.eq.s32.totalorder %s10, 3
    %p91 = scmp.ne.s32.totalorder %s86, %s88
    %p92 = scmp.eq.s32.totalorder %s10, 0
    %p93 = por %p91, %p92
    %p94 = scmp.ne.s32.totalorder %s86, %s88
    %p95 = scmp.eq.s32.totalorder %s15, 3
    %p96 = por %p94, %p95
    %p97 = scmp.ne.s32.totalorder %s88, %s89
    %p98 = scmp.eq.s32.totalorder %s15, 0
    %p99 = por %p97, %p98
    %p100 = scmp.ne.s32.totalorder %s88, %s89
    %p101 = scmp.eq.s32.totalorder %s16, 3
    %p102 = por %p100, %p101
    %p104 = scmp.ne.s32.totalorder %s89, %s103
    %p105 = scmp.eq.s32.totalorder %s16, 0
    %p106 = por %p104, %p105
    %s108 = sadd.s32 %s107, 1
    %p111 = scmp.eq.s32.totalorder %s10, 3
    %p112 = scmp.ne.s32.totalorder %s107, %s109
    %p113 = scmp.eq.s32.totalorder %s10, 0
    %p114 = por %p112, %p113
    %p115 = scmp.ne.s32.totalorder %s107, %s109
    %p116 = scmp.eq.s32.totalorder %s15, 3
    %p117 = por %p115, %p116
    %p118 = scmp.ne.s32.totalorder %s109, %s110
    %p119 = scmp.eq.s32.totalorder %s15, 0
    %p120 = por %p118, %p119
    %p121 = scmp.ne.s32.totalorder %s109, %s110
    %p122 = scmp.eq.s32.totalorder %s16, 3
    %p123 = por %p121, %p122
    %p125 = scmp.ne.s32.totalorder %s110, %s124
    %p126 = scmp.eq.s32.totalorder %s16, 0
    %p127 = por %p125, %p126
    %s128 = ssub.s32 %s17, %s29
    %s129 = ssub.s32 %s18, %s25
    %s130 = sor.u32 %s128, %s129
    %p131 = scmp.eq.s32.totalorder %s130, 0
    %s133 = sadd.s32 %s132, 1
    %s134 = scalar_select %p131, %s132, %s133
    %p137 = pneg %p131
    %p138 = scmp.eq.s32.totalorder %s10, 3
    %p139 = por %p137, %p138
    %p140 = scmp.ne.s32.totalorder %s132, %s135
    %p141 = scmp.eq.s32.totalorder %s10, 0
    %p142 = por %p140, %p141
    %p143 = scmp.ne.s32.totalorder %s132, %s135
    %p144 = scmp.eq.s32.totalorder %s15, 3
    %p145 = por %p143, %p144
    %p146 = scmp.ne.s32.totalorder %s135, %s136
    %p147 = scmp.eq.s32.totalorder %s15, 0
    %p148 = por %p146, %p147
    %p149 = scmp.ne.s32.totalorder %s135, %s136
    %p150 = scmp.eq.s32.totalorder %s16, 3
    %p151 = por %p149, %p150
    %p153 = scmp.ne.s32.totalorder %s136, %s152
    %p154 = scmp.eq.s32.totalorder %s16, 0
    %p155 = por %p153, %p154
    %p156 = scmp.le.s32.totalorder 1, %s10
    %p157 = scmp.lt.s32.totalorder %s10, 5
    %p158 = pnand %p156, %p157
    %p159 = pneg %p158
    // Predicated region
    $region9: #{res_block_forward.5} parent=5 // pred_check
      _
    $region10: #{res_block_forward.5} parent=5 // pred_check_branch
      %161 = sbr.rel (%p158) target = $region12
    $region11: #{res_block_forward.5} parent=5 // pred_region
      %s162 = ssub.s32 %s10, 1
      // Predicated region
      $region13: #{res_block_forward.5} parent=11 // pred_check
        %p163 = pneg %p99
      $region14: #{res_block_forward.5} parent=11 // pred_check_branch
        %165 = sbr.rel (%p163) target = $region16
      $region15: #{res_block_forward.5} parent=11 // pred_region
        _
      $region16: #{res_block_forward.5} parent=11 // pred_fallthru
        _
      // Predicated region
      $region17: #{res_block_forward.5} parent=11 // pred_check
        %p166 = pneg %p120
      $region18: #{res_block_forward.5} parent=11 // pred_check_branch
        %168 = sbr.rel (%p166) target = $region20
      $region19: #{res_block_forward.5} parent=11 // pred_region
        _
      $region20: #{res_block_forward.5} parent=11 // pred_fallthru
        _
    $region12: #{res_block_forward.5} parent=5 // pred_fallthru
      _
    %p169 = scmp.lt.s32.totalorder %s10, 4
    // Predicated region
    $region21: #{res_block_forward.5} parent=5 // pred_check
      %p170 = pneg %p169
    $region22: #{res_block_forward.5} parent=5 // pred_check_branch
      %172 = sbr.rel (%p170) target = $region24
    $region23: #{res_block_forward.5} parent=5 // pred_region
      // Predicated region
      $region25: #{res_block_forward.5} parent=23 // pred_check
        %p173 = pneg %p44
      $region26: #{res_block_forward.5} parent=23 // pred_check_branch
        %175 = sbr.rel (%p173) target = $region28
      $region27: #{res_block_forward.5} parent=23 // pred_region
        %p176 = scmp.lt.s32.totalorder %s17, 1
        %s177 = scalar_select %p176, %s17, 1
        %p178 = scmp.lt.s32.totalorder %s18, 1
        %s179 = scalar_select %p178, %s18, 1
        %s180 = smul.addr %s179, 16
        %s181 = smul.addr %s177, 32
        %s182 = sadd.s32 %s180, %s181
        %s183 = smul.addr %s182, 8
        %s184 = scalar_lea.vmem %s0, %s183
      $region28: #{res_block_forward.5} parent=23 // pred_fallthru
        _
      // Predicated region
      $region29: #{res_block_forward.5} parent=23 // pred_check
        %p185 = pneg %p72
      $region30: #{res_block_forward.5} parent=23 // pred_check_branch
        %187 = sbr.rel (%p185) target = $region32
      $region31: #{res_block_forward.5} parent=23 // pred_region
        %p188 = scmp.lt.s32.totalorder %s17, 1
        %s189 = scalar_select %p188, %s17, 1
        %p190 = scmp.lt.s32.totalorder %s18, 1
        %s191 = scalar_select %p190, %s18, 1
        %s192 = smul.addr %s191, 16
        %s193 = smul.addr %s189, 32
        %s194 = sadd.s32 %s192, %s193
        %s195 = smul.addr %s194, 8
        %s196 = scalar_lea.vmem %s1, %s195
      $region32: #{res_block_forward.5} parent=23 // pred_fallthru
        _
    $region24: #{res_block_forward.5} parent=5 // pred_fallthru
      _
    %p197 = scmp.le.s32.totalorder 1, %s10
    %p198 = scmp.lt.s32.totalorder %s10, 5
    %p199 = pnand %p197, %p198
    %p200 = pneg %p199
    // Predicated region
    $region33: #{res_block_forward.5} parent=5 // pred_check
      _
    $region34: #{res_block_forward.5} parent=5 // pred_check_branch
      %202 = sbr.rel (%p199) target = $region36
    $region35: #{res_block_forward.5} parent=5 // pred_region
      %s203 = ssub.s32 %s10, 1
      %p204 = scmp.lt.s32.totalorder %s19, 1
      %s205 = scalar_select %p204, %s19, 1
      %p206 = scmp.lt.s32.totalorder %s20, 1
      %s207 = scalar_select %p206, %s20, 1
      %s208 = smul.addr %s207, 16
      %s209 = smul.addr %s205, 32
      %s210 = sadd.s32 %s208, %s209
      %s211 = smul.addr %s210, 8
      %s212 = scalar_lea.vmem %s0, %s211
      %p213 = pneg %p50
      %p214 = pneg %p47
      %p215 = scmp.lt.s32.totalorder %s19, 1
      %s216 = scalar_select %p215, %s19, 1
      %p217 = scmp.lt.s32.totalorder %s20, 1
      %s218 = scalar_select %p217, %s20, 1
      %s219 = smul.addr %s218, 16
      %s220 = smul.addr %s216, 32
      %s221 = sadd.s32 %s219, %s220
      %s222 = smul.addr %s221, 8
      %s223 = scalar_lea.vmem %s1, %s222
      %p224 = pneg %p78
      %p225 = pneg %p75
      %p226 = pneg %p99
      %p227 = pneg %p96
      %p228 = pneg %p120
      %p229 = pneg %p117
      %p230 = pneg %p148
      %p231 = pneg %p145
      %p232 = scmp.lt.s32.totalorder %s19, 1
      %s233 = scalar_select %p232, %s19, 1
      %p234 = scmp.lt.s32.totalorder %s20, 1
      %s235 = scalar_select %p234, %s20, 1
      %s236 = smul.addr %s235, 16
      %s237 = smul.addr %s233, 32
      %s238 = sadd.s32 %s236, %s237
      %s239 = smul.addr %s238, 8
      %s240 = scalar_lea.vmem %s4, %s239
      %p241 = scmp.lt.s32.totalorder %s19, 1
      %s242 = scalar_select %p241, %s19, 1
      %p243 = scmp.lt.s32.totalorder %s20, 1
      %s244 = scalar_select %p243, %s20, 1
      %s245 = smul.addr %s244, 16
      %s246 = smul.addr %s242, 32
      %s247 = sadd.s32 %s245, %s246
      %s248 = smul.addr %s247, 8
      %s249 = scalar_lea.vmem %s0, %s248
      %p250 = scmp.lt.s32.totalorder %s19, 1
      %s251 = scalar_select %p250, %s19, 1
      %p252 = scmp.lt.s32.totalorder %s20, 1
      %s253 = scalar_select %p252, %s20, 1
      %s254 = smul.addr %s253, 16
      %s255 = smul.addr %s251, 32
      %s256 = sadd.s32 %s254, %s255
      %s257 = smul.addr %s256, 8
      %s258 = scalar_lea.vmem %s1, %s257
      %p259 = scmp.lt.s32.totalorder %s19, 1
      %s260 = scalar_select %p259, %s19, 1
      %p261 = scmp.lt.s32.totalorder %s20, 1
      %s262 = scalar_select %p261, %s20, 1
      %s263 = smul.addr %s262, 16
      %s264 = smul.addr %s260, 32
      %s265 = sadd.s32 %s263, %s264
      %s266 = smul.addr %s265, 8
      %s267 = scalar_lea.vmem %s4, %s266
      %v268 = vld [vmem:[%s249] sm:$0xff]
      %v269 = vld [vmem:[%s249 + $0x8] sm:$0xff]
      %v270 = vld [vmem:[%s249 + $0x10] sm:$0xff]
      %v271 = vld [vmem:[%s249 + $0x18] sm:$0xff]
      %v272 = vld [vmem:[%s249 + $0x20] sm:$0xff]
      %v273 = vld [vmem:[%s249 + $0x28] sm:$0xff]
      %v274 = vld [vmem:[%s249 + $0x30] sm:$0xff]
      %v275 = vld [vmem:[%s249 + $0x38] sm:$0xff]
      %v276 = vld [vmem:[%s249 + $0x40] sm:$0xff]
      %v277 = vld [vmem:[%s249 + $0x48] sm:$0xff]
      %v278 = vld [vmem:[%s249 + $0x50] sm:$0xff]
      %v279 = vld [vmem:[%s249 + $0x58] sm:$0xff]
      %v280 = vld [vmem:[%s249 + $0x60] sm:$0xff]
      %v281 = vld [vmem:[%s249 + $0x68] sm:$0xff]
      %v282 = vld [vmem:[%s249 + $0x70] sm:$0xff]
      %v283 = vld [vmem:[%s249 + $0x78] sm:$0xff]
      %v284 = vld [vmem:[%s258] sm:$0xff]
      %v285 = vld [vmem:[%s258 + $0x8] sm:$0xff]
      %v286 = vld [vmem:[%s258 + $0x10] sm:$0xff]
      %v287 = vld [vmem:[%s258 + $0x18] sm:$0xff]
      %v288 = vld [vmem:[%s258 + $0x20] sm:$0xff]
      %v289 = vld [vmem:[%s258 + $0x28] sm:$0xff]
      %v290 = vld [vmem:[%s258 + $0x30] sm:$0xff]
      %v291 = vld [vmem:[%s258 + $0x38] sm:$0xff]
      %v292 = vld [vmem:[%s258 + $0x40] sm:$0xff]
      %v293 = vld [vmem:[%s258 + $0x48] sm:$0xff]
      %v294 = vld [vmem:[%s258 + $0x50] sm:$0xff]
      %v295 = vld [vmem:[%s258 + $0x58] sm:$0xff]
      %v296 = vld [vmem:[%s258 + $0x60] sm:$0xff]
      %v297 = vld [vmem:[%s258 + $0x68] sm:$0xff]
      %v298 = vld [vmem:[%s258 + $0x70] sm:$0xff]
      %v299 = vld [vmem:[%s258 + $0x78] sm:$0xff]
      %v300 = vld [vmem:[%s2] sm:$0x1]
      %v301 = vld [vmem:[%s3] sm:$0x1]
      %v303 = vlaneseq
      %v304 = vshrl.u32 %v303, 7
      %v305 = vsub.s32 0, %v304
      %v306 = vrot.slane %v300, %v305
      %v308 = vmul.f32 %v268, %v306
      %v309 = vmul.f32 %v269, %v306
      %v310 = vmul.f32 %v270, %v306
      %v311 = vmul.f32 %v271, %v306
      %v312 = vmul.f32 %v272, %v306
      %v313 = vmul.f32 %v273, %v306
      %v314 = vmul.f32 %v274, %v306
      %v315 = vmul.f32 %v275, %v306
      %v316 = vmul.f32 %v276, %v306
      %v317 = vmul.f32 %v277, %v306
      %v318 = vmul.f32 %v278, %v306
      %v319 = vmul.f32 %v279, %v306
      %v320 = vmul.f32 %v280, %v306
      %v321 = vmul.f32 %v281, %v306
      %v322 = vmul.f32 %v282, %v306
      %v323 = vmul.f32 %v283, %v306
      %v325 = vlaneseq
      %v326 = vshrl.u32 %v325, 7
      %v327 = vsub.s32 0, %v326
      %v328 = vrot.slane %v301, %v327
      %v330 = vadd.f32 %v308, %v328
      %v331 = vadd.f32 %v309, %v328
      %v332 = vadd.f32 %v310, %v328
      %v333 = vadd.f32 %v311, %v328
      %v334 = vadd.f32 %v312, %v328
      %v335 = vadd.f32 %v313, %v328
      %v336 = vadd.f32 %v314, %v328
      %v337 = vadd.f32 %v315, %v328
      %v338 = vadd.f32 %v316, %v328
      %v339 = vadd.f32 %v317, %v328
      %v340 = vadd.f32 %v318, %v328
      %v341 = vadd.f32 %v319, %v328
      %v342 = vadd.f32 %v320, %v328
      %v343 = vadd.f32 %v321, %v328
      %v344 = vadd.f32 %v322, %v328
      %v345 = vadd.f32 %v323, %v328
      %v346 = vadd.f32 %v330, %v284
      %v347 = vadd.f32 %v331, %v285
      %v348 = vadd.f32 %v332, %v286
      %v349 = vadd.f32 %v333, %v287
      %v350 = vadd.f32 %v334, %v288
      %v351 = vadd.f32 %v335, %v289
      %v352 = vadd.f32 %v336, %v290
      %v353 = vadd.f32 %v337, %v291
      %v354 = vadd.f32 %v338, %v292
      %v355 = vadd.f32 %v339, %v293
      %v356 = vadd.f32 %v340, %v294
      %v357 = vadd.f32 %v341, %v295
      %v358 = vadd.f32 %v342, %v296
      %v359 = vadd.f32 %v343, %v297
      %v360 = vadd.f32 %v344, %v298
      %v361 = vadd.f32 %v345, %v299
      %362 = vst [vmem:[%s267] sm:$0xff] %v346
      %363 = vst [vmem:[%s267 + $0x8] sm:$0xff] %v347
      %364 = vst [vmem:[%s267 + $0x10] sm:$0xff] %v348
      %365 = vst [vmem:[%s267 + $0x18] sm:$0xff] %v349
      %366 = vst [vmem:[%s267 + $0x20] sm:$0xff] %v350
      %367 = vst [vmem:[%s267 + $0x28] sm:$0xff] %v351
      %368 = vst [vmem:[%s267 + $0x30] sm:$0xff] %v352
      %369 = vst [vmem:[%s267 + $0x38] sm:$0xff] %v353
      %370 = vst [vmem:[%s267 + $0x40] sm:$0xff] %v354
      %371 = vst [vmem:[%s267 + $0x48] sm:$0xff] %v355
      %372 = vst [vmem:[%s267 + $0x50] sm:$0xff] %v356
      %373 = vst [vmem:[%s267 + $0x58] sm:$0xff] %v357
      %374 = vst [vmem:[%s267 + $0x60] sm:$0xff] %v358
      %375 = vst [vmem:[%s267 + $0x68] sm:$0xff] %v359
      %376 = vst [vmem:[%s267 + $0x70] sm:$0xff] %v360
      %377 = vst [vmem:[%s267 + $0x78] sm:$0xff] %v361
      %p378 = scmp.lt.s32.totalorder %s19, 1
      %s379 = scalar_select %p378, %s19, 1
      %p380 = scmp.lt.s32.totalorder %s20, 1
      %s381 = scalar_select %p380, %s20, 1
      %s382 = smul.addr %s381, 16
      %s383 = smul.addr %s379, 32
      %s384 = sadd.s32 %s382, %s383
      %s385 = smul.addr %s384, 8
      %s386 = scalar_lea.vmem %s4, %s385
      // Predicated region
      $region37: #{res_block_forward.5} parent=35 // pred_check
        %p387 = pneg %p145
      $region38: #{res_block_forward.5} parent=35 // pred_check_branch
        %389 = sbr.rel (%p387) target = $region40
      $region39: #{res_block_forward.5} parent=35 // pred_region
        _
      $region40: #{res_block_forward.5} parent=35 // pred_fallthru
        _
    $region36: #{res_block_forward.5} parent=5 // pred_fallthru
      _
    %p390 = scmp.le.s32.totalorder 2, %s10
    // Predicated region
    $region41: #{res_block_forward.5} parent=5 // pred_check
      %p391 = pneg %p390
    $region42: #{res_block_forward.5} parent=5 // pred_check_branch
      %393 = sbr.rel (%p391) target = $region44
    $region43: #{res_block_forward.5} parent=5 // pred_region
      %s394 = ssub.s32 %s10, 2
      // Predicated region
      $region45: #{res_block_forward.5} parent=43 // pred_check
        %p395 = pneg %p151
      $region46: #{res_block_forward.5} parent=43 // pred_check_branch
        %397 = sbr.rel (%p395) target = $region48
      $region47: #{res_block_forward.5} parent=43 // pred_region
        %p398 = scmp.lt.s32.totalorder %s21, 1
        %s399 = scalar_select %p398, %s21, 1
        %p400 = scmp.lt.s32.totalorder %s22, 1
        %s401 = scalar_select %p400, %s22, 1
        %s402 = smul.addr %s401, 16
        %s403 = smul.addr %s399, 32
        %s404 = sadd.s32 %s402, %s403
        %s405 = smul.addr %s404, 8
        %s406 = scalar_lea.vmem %s4, %s405
      $region48: #{res_block_forward.5} parent=43 // pred_fallthru
        _
    $region44: #{res_block_forward.5} parent=5 // pred_fallthru
      _
  $region6: #{res_block_forward.5} parent=0 // loop_footer
    %s14 = sadd.s32 1, %s10
  $region7: #{res_block_forward.5} parent=0 // loop_footer_branch
    %9 = sbr.rel target = $region3
  $region8: #{res_block_forward.5} parent=0 // loop_exit
    _

// kernel: res_block_forward.3
$region0: #{res_block_forward.3}
  #allocation0 [shape = 'u32[]', space=smem, size = 0x4, offset = 0x4, fixed_abs, tag = 'smem constant byte address 0x4 - core index']
  #allocation1 [shape = 'u32[144,128]{1,0:T(1,128)}', space=vmem, size = 0x12000, scoped, tag = 'internal scratch']
  %s0 = inlined_call_operand.vmem [shape: f32[2,2,10,18,128], index: 0, kind: input, shape index: {}]
  %s1 = inlined_call_operand.vmem [shape: f32[1152,128], index: 1, kind: input, shape index: {}]
  %s2 = inlined_call_operand.vmem [shape: f32[2,2,8,16,128], index: 2, kind: output, shape index: {0}]
  %s3 = inlined_call_operand.vmem [shape: f32[2,2,8,128], index: 3, kind: output, shape index: {1}]
  %4 = xla_tuple %s2, %s3
  %s5 = sld [smem:[#allocation0]]
  $region49: #{res_block_forward.3} parent=0
    _
  %s7 = ssub.s32 1, %s5
  %s8 = scalar_select 0, %s7, %s5
  loop: start=0, step=1, limit=6
  $region2: #{res_block_forward.3} parent=0 // loop_pre_header
    _
  $region3: #{res_block_forward.3} parent=0 // loop_header
    %s10 = sphi 0, %s14
    %p11 = scmp.ge.s32.totalorder %s10, 6
    %s17 = sphi 0, %s29
    %s18 = sphi 0, %s25
    %s19 = sphi 0, %s17
    %s20 = sphi 0, %s18
    %s21 = sphi 0, %s19
    %s22 = sphi 0, %s20
    %s34 = sphi 0, %s36
    %s37 = sphi 0, %s34
    %s38 = sphi 0, %s37
    %s54 = sphi 0, %s38
    %s58 = sphi 0, %s58
    %s60 = sphi 0, %s58
    %s61 = sphi 0, %s60
    %s75 = sphi 0, %s61
    %s83 = sphi 0, %s85
    %s86 = sphi 0, %s83
    %s87 = sphi 0, %s86
    %s103 = sphi 0, %s87
    %s111 = sphi 0, %s113
    %s114 = sphi 0, %s111
    %s115 = sphi 0, %s114
    %s131 = sphi 0, %s115
  $region4: #{res_block_forward.3} parent=0 // loop_header_branch
    %13 = sbr.rel (%p11) target = $region8
  $region5: #{res_block_forward.3} parent=0 // loop_body
    %s15 = ssub.s32 %s10, 1
    %s16 = ssub.s32 %s10, 2
    %s23 = sadd.s32 1, %s18
    %p24 = scmp.ge.s32.totalorder %s23, 2
    %s25 = scalar_select %p24, 0, %s23
    %s26 = sadd.s32 1, %s17
    %s27 = scalar_select %p24, %s26, %s17
    %p28 = scmp.ge.s32.totalorder %s27, 2
    %s29 = scalar_select %p28, 0, %s27
    %s30 = ssub.s32 %s17, %s29
    %s31 = ssub.s32 %s18, %s25
    %s32 = sor.u32 %s30, %s31
    %p33 = scmp.eq.s32.totalorder %s32, 0
    %s35 = sadd.s32 %s34, 1
    %s36 = scalar_select %p33, %s34, %s35
    %p39 = pneg %p33
    %p40 = scmp.eq.s32.totalorder %s10, 3
    %p41 = por %p39, %p40
    %p42 = scmp.ne.s32.totalorder %s34, %s37
    %p43 = scmp.eq.s32.totalorder %s10, 0
    %p44 = por %p42, %p43
    %p45 = scmp.ne.s32.totalorder %s34, %s37
    %p46 = scmp.eq.s32.totalorder %s15, 3
    %p47 = por %p45, %p46
    %p48 = scmp.ne.s32.totalorder %s37, %s38
    %p49 = scmp.eq.s32.totalorder %s15, 0
    %p50 = por %p48, %p49
    %p51 = scmp.ne.s32.totalorder %s37, %s38
    %p52 = scmp.eq.s32.totalorder %s16, 3
    %p53 = por %p51, %p52
    %p55 = scmp.ne.s32.totalorder %s38, %s54
    %p56 = scmp.eq.s32.totalorder %s16, 0
    %p57 = por %p55, %p56
    %s59 = sadd.s32 %s58, 1
    %p62 = scmp.eq.s32.totalorder %s10, 3
    %p63 = scmp.ne.s32.totalorder %s58, %s60
    %p64 = scmp.eq.s32.totalorder %s10, 0
    %p65 = por %p63, %p64
    %p66 = scmp.ne.s32.totalorder %s58, %s60
    %p67 = scmp.eq.s32.totalorder %s15, 3
    %p68 = por %p66, %p67
    %p69 = scmp.ne.s32.totalorder %s60, %s61
    %p70 = scmp.eq.s32.totalorder %s15, 0
    %p71 = por %p69, %p70
    %p72 = scmp.ne.s32.totalorder %s60, %s61
    %p73 = scmp.eq.s32.totalorder %s16, 3
    %p74 = por %p72, %p73
    %p76 = scmp.ne.s32.totalorder %s61, %s75
    %p77 = scmp.eq.s32.totalorder %s16, 0
    %p78 = por %p76, %p77
    %s79 = ssub.s32 %s17, %s29
    %s80 = ssub.s32 %s18, %s25
    %s81 = sor.u32 %s79, %s80
    %p82 = scmp.eq.s32.totalorder %s81, 0
    %s84 = sadd.s32 %s83, 1
    %s85 = scalar_select %p82, %s83, %s84
    %p88 = pneg %p82
    %p89 = scmp.eq.s32.totalorder %s10, 3
    %p90 = por %p88, %p89
    %p91 = scmp.ne.s32.totalorder %s83, %s86
    %p92 = scmp.eq.s32.totalorder %s10, 0
    %p93 = por %p91, %p92
    %p94 = scmp.ne.s32.totalorder %s83, %s86
    %p95 = scmp.eq.s32.totalorder %s15, 3
    %p96 = por %p94, %p95
    %p97 = scmp.ne.s32.totalorder %s86, %s87
    %p98 = scmp.eq.s32.totalorder %s15, 0
    %p99 = por %p97, %p98
    %p100 = scmp.ne.s32.totalorder %s86, %s87
    %p101 = scmp.eq.s32.totalorder %s16, 3
    %p102 = por %p100, %p101
    %p104 = scmp.ne.s32.totalorder %s87, %s103
    %p105 = scmp.eq.s32.totalorder %s16, 0
    %p106 = por %p104, %p105
    %s107 = ssub.s32 %s17, %s29
    %s108 = ssub.s32 %s18, %s25
    %s109 = sor.u32 %s107, %s108
    %p110 = scmp.eq.s32.totalorder %s109, 0
    %s112 = sadd.s32 %s111, 1
    %s113 = scalar_select %p110, %s111, %s112
    %p116 = pneg %p110
    %p117 = scmp.eq.s32.totalorder %s10, 3
    %p118 = por %p116, %p117
    %p119 = scmp.ne.s32.totalorder %s111, %s114
    %p120 = scmp.eq.s32.totalorder %s10, 0
    %p121 = por %p119, %p120
    %p122 = scmp.ne.s32.totalorder %s111, %s114
    %p123 = scmp.eq.s32.totalorder %s15, 3
    %p124 = por %p122, %p123
    %p125 = scmp.ne.s32.totalorder %s114, %s115
    %p126 = scmp.eq.s32.totalorder %s15, 0
    %p127 = por %p125, %p126
    %p128 = scmp.ne.s32.totalorder %s114, %s115
    %p129 = scmp.eq.s32.totalorder %s16, 3
    %p130 = por %p128, %p129
    %p132 = scmp.ne.s32.totalorder %s115, %s131
    %p133 = scmp.eq.s32.totalorder %s16, 0
    %p134 = por %p132, %p133
    %p135 = scmp.le.s32.totalorder 1, %s10
    %p136 = scmp.lt.s32.totalorder %s10, 5
    %p137 = pnand %p135, %p136
    %p138 = pneg %p137
    // Predicated region
    $region9: #{res_block_forward.3} parent=5 // pred_check
      _
    $region10: #{res_block_forward.3} parent=5 // pred_check_branch
      %140 = sbr.rel (%p137) target = $region12
    $region11: #{res_block_forward.3} parent=5 // pred_region
      %s141 = ssub.s32 %s10, 1
      // Predicated region
      $region13: #{res_block_forward.3} parent=11 // pred_check
        %p142 = pneg %p71
      $region14: #{res_block_forward.3} parent=11 // pred_check_branch
        %144 = sbr.rel (%p142) target = $region16
      $region15: #{res_block_forward.3} parent=11 // pred_region
        _
      $region16: #{res_block_forward.3} parent=11 // pred_fallthru
        _
    $region12: #{res_block_forward.3} parent=5 // pred_fallthru
      _
    %p145 = scmp.lt.s32.totalorder %s10, 4
    // Predicated region
    $region17: #{res_block_forward.3} parent=5 // pred_check
      %p146 = pneg %p145
    $region18: #{res_block_forward.3} parent=5 // pred_check_branch
      %148 = sbr.rel (%p146) target = $region20
    $region19: #{res_block_forward.3} parent=5 // pred_region
      // Predicated region
      $region21: #{res_block_forward.3} parent=19 // pred_check
        %p149 = pneg %p44
      $region22: #{res_block_forward.3} parent=19 // pred_check_branch
        %151 = sbr.rel (%p149) target = $region24
      $region23: #{res_block_forward.3} parent=19 // pred_region
        %p152 = scmp.lt.s32.totalorder %s17, 1
        %s153 = scalar_select %p152, %s17, 1
        %p154 = scmp.lt.s32.totalorder %s18, 1
        %s155 = scalar_select %p154, %s18, 1
        %s156 = smul.addr %s155, 30
        %s157 = smul.addr %s153, 60
        %s158 = sadd.s32 %s156, %s157
        %s159 = smul.addr %s158, 8
        %s160 = scalar_lea.vmem %s0, %s159
      $region24: #{res_block_forward.3} parent=19 // pred_fallthru
        _
    $region20: #{res_block_forward.3} parent=5 // pred_fallthru
      _
    %p161 = scmp.le.s32.totalorder 1, %s10
    %p162 = scmp.lt.s32.totalorder %s10, 5
    %p163 = pnand %p161, %p162
    %p164 = pneg %p163
    // Predicated region
    $region25: #{res_block_forward.3} parent=5 // pred_check
      _
    $region26: #{res_block_forward.3} parent=5 // pred_check_branch
      %166 = sbr.rel (%p163) target = $region28
    $region27: #{res_block_forward.3} parent=5 // pred_region
      %s167 = ssub.s32 %s10, 1
      %p168 = scmp.lt.s32.totalorder %s19, 1
      %s169 = scalar_select %p168, %s19, 1
      %p170 = scmp.lt.s32.totalorder %s20, 1
      %s171 = scalar_select %p170, %s20, 1
      %s172 = smul.addr %s171, 30
      %s173 = smul.addr %s169, 60
      %s174 = sadd.s32 %s172, %s173
      %s175 = smul.addr %s174, 8
      %s176 = scalar_lea.vmem %s0, %s175
      %p177 = pneg %p50
      %p178 = pneg %p47
      %p179 = pneg %p71
      %p180 = pneg %p68
      %p181 = pneg %p99
      %p182 = pneg %p96
      %p183 = scmp.lt.s32.totalorder %s19, 1
      %s184 = scalar_select %p183, %s19, 1
      %p185 = scmp.lt.s32.totalorder %s20, 1
      %s186 = scalar_select %p185, %s20, 1
      %s187 = smul.addr %s186, 16
      %s188 = smul.addr %s184, 32
      %s189 = sadd.s32 %s187, %s188
      %s190 = smul.addr %s189, 8
      %s191 = scalar_lea.vmem %s2, %s190
      %p192 = pneg %p127
      %p193 = pneg %p124
      %p194 = scmp.lt.s32.totalorder %s19, 1
      %s195 = scalar_select %p194, %s19, 1
      %p196 = scmp.lt.s32.totalorder %s20, 1
      %s197 = scalar_select %p196, %s20, 1
      %s198 = smul.addr %s195, 2
      %s199 = sadd.s32 %s197, %s198
      %s200 = smul.addr %s199, 8
      %s201 = scalar_lea.vmem %s3, %s200
      %p202 = scmp.lt.s32.totalorder %s19, 1
      %s203 = scalar_select %p202, %s19, 1
      %p204 = scmp.lt.s32.totalorder %s20, 1
      %s205 = scalar_select %p204, %s20, 1
      %s206 = smul.addr %s205, 30
      %s207 = smul.addr %s203, 60
      %s208 = sadd.s32 %s206, %s207
      %s209 = smul.addr %s208, 8
      %s210 = scalar_lea.vmem %s0, %s209
      %p211 = scmp.lt.s32.totalorder %s19, 1
      %s212 = scalar_select %p211, %s19, 1
      %p213 = scmp.lt.s32.totalorder %s20, 1
      %s214 = scalar_select %p213, %s20, 1
      %s215 = smul.addr %s214, 16
      %s216 = smul.addr %s212, 32
      %s217 = sadd.s32 %s215, %s216
      %s218 = smul.addr %s217, 8
      %s219 = scalar_lea.vmem %s2, %s218
      %p220 = scmp.lt.s32.totalorder %s19, 1
      %s221 = scalar_select %p220, %s19, 1
      %p222 = scmp.lt.s32.totalorder %s20, 1
      %s223 = scalar_select %p222, %s20, 1
      %s224 = smul.addr %s221, 2
      %s225 = sadd.s32 %s223, %s224
      %s226 = smul.addr %s225, 8
      %s227 = scalar_lea.vmem %s3, %s226
      %v228 = vld [vmem:[%s210] sm:$0xff]
      %v229 = vld [vmem:[%s210 + $0x8] sm:$0xff]
      %v230 = vld [vmem:[%s210 + $0x10] sm:$0x3]
      %v231 = vld [vmem:[%s210 + $0x18] sm:$0xff]
      %v232 = vld [vmem:[%s210 + $0x20] sm:$0xff]
      %v233 = vld [vmem:[%s210 + $0x28] sm:$0x3]
      %v234 = vld [vmem:[%s210 + $0x30] sm:$0xff]
      %v235 = vld [vmem:[%s210 + $0x38] sm:$0xff]
      %v236 = vld [vmem:[%s210 + $0x40] sm:$0x3]
      %v237 = vld [vmem:[%s210 + $0x48] sm:$0xff]
      %v238 = vld [vmem:[%s210 + $0x50] sm:$0xff]
      %v239 = vld [vmem:[%s210 + $0x58] sm:$0x3]
      %v240 = vld [vmem:[%s210 + $0x60] sm:$0xff]
      %v241 = vld [vmem:[%s210 + $0x68] sm:$0xff]
      %v242 = vld [vmem:[%s210 + $0x70] sm:$0x3]
      %v243 = vld [vmem:[%s210 + $0x78] sm:$0xff]
      %v244 = vld [vmem:[%s210 + $0x80] sm:$0xff]
      %v245 = vld [vmem:[%s210 + $0x88] sm:$0x3]
      %v246 = vld [vmem:[%s210 + $0x90] sm:$0xff]
      %v247 = vld [vmem:[%s210 + $0x98] sm:$0xff]
      %v248 = vld [vmem:[%s210 + $0xa0] sm:$0x3]
      %v249 = vld [vmem:[%s210 + $0xa8] sm:$0xff]
      %v250 = vld [vmem:[%s210 + $0xb0] sm:$0xff]
      %v251 = vld [vmem:[%s210 + $0xb8] sm:$0x3]
      %v252 = vld [vmem:[%s210 + $0xc0] sm:$0xff]
      %v253 = vld [vmem:[%s210 + $0xc8] sm:$0xff]
      %v254 = vld [vmem:[%s210 + $0xd0] sm:$0x3]
      %v255 = vld [vmem:[%s210 + $0xd8] sm:$0xff]
      %v256 = vld [vmem:[%s210 + $0xe0] sm:$0xff]
      %v257 = vld [vmem:[%s210 + $0xe8] sm:$0x3]
      %v258 = vld [vmem:[%s1] sm:$0xff]
      %v259 = vld [vmem:[%s1 + $0x8] sm:$0xff]
      %v260 = vld [vmem:[%s1 + $0x10] sm:$0xff]
      %v261 = vld [vmem:[%s1 + $0x18] sm:$0xff]
      %v262 = vld [vmem:[%s1 + $0x20] sm:$0xff]
      %v263 = vld [vmem:[%s1 + $0x28] sm:$0xff]
      %v264 = vld [vmem:[%s1 + $0x30] sm:$0xff]
      %v265 = vld [vmem:[%s1 + $0x38] sm:$0xff]
      %v266 = vld [vmem:[%s1 + $0x40] sm:$0xff]
      %v267 = vld [vmem:[%s1 + $0x48] sm:$0xff]
      %v268 = vld [vmem:[%s1 + $0x50] sm:$0xff]
      %v269 = vld [vmem:[%s1 + $0x58] sm:$0xff]
      %v270 = vld [vmem:[%s1 + $0x60] sm:$0xff]
      %v271 = vld [vmem:[%s1 + $0x68] sm:$0xff]
      %v272 = vld [vmem:[%s1 + $0x70] sm:$0xff]
      %v273 = vld [vmem:[%s1 + $0x78] sm:$0xff]
      %v274 = vld [vmem:[%s1 + $0x80] sm:$0xff]
      %v275 = vld [vmem:[%s1 + $0x88] sm:$0xff]
      %v276 = vld [vmem:[%s1 + $0x90] sm:$0xff]
      %v277 = vld [vmem:[%s1 + $0x98] sm:$0xff]
      %v278 = vld [vmem:[%s1 + $0xa0] sm:$0xff]
      %v279 = vld [vmem:[%s1 + $0xa8] sm:$0xff]
      %v280 = vld [vmem:[%s1 + $0xb0] sm:$0xff]
      %v281 = vld [vmem:[%s1 + $0xb8] sm:$0xff]
      %v282 = vld [vmem:[%s1 + $0xc0] sm:$0xff]
      %v283 = vld [vmem:[%s1 + $0xc8] sm:$0xff]
      %v284 = vld [vmem:[%s1 + $0xd0] sm:$0xff]
      %v285 = vld [vmem:[%s1 + $0xd8] sm:$0xff]
      %v286 = vld [vmem:[%s1 + $0xe0] sm:$0xff]
      %v287 = vld [vmem:[%s1 + $0xe8] sm:$0xff]
      %v288 = vld [vmem:[%s1 + $0xf0] sm:$0xff]
      %v289 = vld [vmem:[%s1 + $0xf8] sm:$0xff]
      %v290 = vld [vmem:[%s1 + $0x100] sm:$0xff]
      %v291 = vld [vmem:[%s1 + $0x108] sm:$0xff]
      %v292 = vld [vmem:[%s1 + $0x110] sm:$0xff]
      %v293 = vld [vmem:[%s1 + $0x118] sm:$0xff]
      %v294 = vld [vmem:[%s1 + $0x120] sm:$0xff]
      %v295 = vld [vmem:[%s1 + $0x128] sm:$0xff]
      %v296 = vld [vmem:[%s1 + $0x130] sm:$0xff]
      %v297 = vld [vmem:[%s1 + $0x138] sm:$0xff]
      %v298 = vld [vmem:[%s1 + $0x140] sm:$0xff]
      %v299 = vld [vmem:[%s1 + $0x148] sm:$0xff]
      %v300 = vld [vmem:[%s1 + $0x150] sm:$0xff]
      %v301 = vld [vmem:[%s1 + $0x158] sm:$0xff]
      %v302 = vld [vmem:[%s1 + $0x160] sm:$0xff]
      %v303 = vld [vmem:[%s1 + $0x168] sm:$0xff]
      %v304 = vld [vmem:[%s1 + $0x170] sm:$0xff]
      %v305 = vld [vmem:[%s1 + $0x178] sm:$0xff]
      %v306 = vld [vmem:[%s1 + $0x180] sm:$0xff]
      %v307 = vld [vmem:[%s1 + $0x188] sm:$0xff]
      %v308 = vld [vmem:[%s1 + $0x190] sm:$0xff]
      %v309 = vld [vmem:[%s1 + $0x198] sm:$0xff]
      %v310 = vld [vmem:[%s1 + $0x1a0] sm:$0xff]
      %v311 = vld [vmem:[%s1 + $0x1a8] sm:$0xff]
      %v312 = vld [vmem:[%s1 + $0x1b0] sm:$0xff]
      %v313 = vld [vmem:[%s1 + $0x1b8] sm:$0xff]
      %v314 = vld [vmem:[%s1 + $0x1c0] sm:$0xff]
      %v315 = vld [vmem:[%s1 + $0x1c8] sm:$0xff]
      %v316 = vld [vmem:[%s1 + $0x1d0] sm:$0xff]
      %v317 = vld [vmem:[%s1 + $0x1d8] sm:$0xff]
      %v318 = vld [vmem:[%s1 + $0x1e0] sm:$0xff]
      %v319 = vld [vmem:[%s1 + $0x1e8] sm:$0xff]
      %v320 = vld [vmem:[%s1 + $0x1f0] sm:$0xff]
      %v321 = vld [vmem:[%s1 + $0x1f8] sm:$0xff]
      %v322 = vld [vmem:[%s1 + $0x200] sm:$0xff]
      %v323 = vld [vmem:[%s1 + $0x208] sm:$0xff]
      %v324 = vld [vmem:[%s1 + $0x210] sm:$0xff]
      %v325 = vld [vmem:[%s1 + $0x218] sm:$0xff]
      %v326 = vld [vmem:[%s1 + $0x220] sm:$0xff]
      %v327 = vld [vmem:[%s1 + $0x228] sm:$0xff]
      %v328 = vld [vmem:[%s1 + $0x230] sm:$0xff]
      %v329 = vld [vmem:[%s1 + $0x238] sm:$0xff]
      %v330 = vld [vmem:[%s1 + $0x240] sm:$0xff]
      %v331 = vld [vmem:[%s1 + $0x248] sm:$0xff]
      %v332 = vld [vmem:[%s1 + $0x250] sm:$0xff]
      %v333 = vld [vmem:[%s1 + $0x258] sm:$0xff]
      %v334 = vld [vmem:[%s1 + $0x260] sm:$0xff]
      %v335 = vld [vmem:[%s1 + $0x268] sm:$0xff]
      %v336 = vld [vmem:[%s1 + $0x270] sm:$0xff]
      %v337 = vld [vmem:[%s1 + $0x278] sm:$0xff]
      %v338 = vld [vmem:[%s1 + $0x280] sm:$0xff]
      %v339 = vld [vmem:[%s1 + $0x288] sm:$0xff]
      %v340 = vld [vmem:[%s1 + $0x290] sm:$0xff]
      %v341 = vld [vmem:[%s1 + $0x298] sm:$0xff]
      %v342 = vld [vmem:[%s1 + $0x2a0] sm:$0xff]
      %v343 = vld [vmem:[%s1 + $0x2a8] sm:$0xff]
      %v344 = vld [vmem:[%s1 + $0x2b0] sm:$0xff]
      %v345 = vld [vmem:[%s1 + $0x2b8] sm:$0xff]
      %v346 = vld [vmem:[%s1 + $0x2c0] sm:$0xff]
      %v347 = vld [vmem:[%s1 + $0x2c8] sm:$0xff]
      %v348 = vld [vmem:[%s1 + $0x2d0] sm:$0xff]
      %v349 = vld [vmem:[%s1 + $0x2d8] sm:$0xff]
      %v350 = vld [vmem:[%s1 + $0x2e0] sm:$0xff]
      %v351 = vld [vmem:[%s1 + $0x2e8] sm:$0xff]
      %v352 = vld [vmem:[%s1 + $0x2f0] sm:$0xff]
      %v353 = vld [vmem:[%s1 + $0x2f8] sm:$0xff]
      %v354 = vld [vmem:[%s1 + $0x300] sm:$0xff]
      %v355 = vld [vmem:[%s1 + $0x308] sm:$0xff]
      %v356 = vld [vmem:[%s1 + $0x310] sm:$0xff]
      %v357 = vld [vmem:[%s1 + $0x318] sm:$0xff]
      %v358 = vld [vmem:[%s1 + $0x320] sm:$0xff]
      %v359 = vld [vmem:[%s1 + $0x328] sm:$0xff]
      %v360 = vld [vmem:[%s1 + $0x330] sm:$0xff]
      %v361 = vld [vmem:[%s1 + $0x338] sm:$0xff]
      %v362 = vld [vmem:[%s1 + $0x340] sm:$0xff]
      %v363 = vld [vmem:[%s1 + $0x348] sm:$0xff]
      %v364 = vld [vmem:[%s1 + $0x350] sm:$0xff]
      %v365 = vld [vmem:[%s1 + $0x358] sm:$0xff]
      %v366 = vld [vmem:[%s1 + $0x360] sm:$0xff]
      %v367 = vld [vmem:[%s1 + $0x368] sm:$0xff]
      %v368 = vld [vmem:[%s1 + $0x370] sm:$0xff]
      %v369 = vld [vmem:[%s1 + $0x378] sm:$0xff]
      %v370 = vld [vmem:[%s1 + $0x380] sm:$0xff]
      %v371 = vld [vmem:[%s1 + $0x388] sm:$0xff]
      %v372 = vld [vmem:[%s1 + $0x390] sm:$0xff]
      %v373 = vld [vmem:[%s1 + $0x398] sm:$0xff]
      %v374 = vld [vmem:[%s1 + $0x3a0] sm:$0xff]
      %v375 = vld [vmem:[%s1 + $0x3a8] sm:$0xff]
      %v376 = vld [vmem:[%s1 + $0x3b0] sm:$0xff]
      %v377 = vld [vmem:[%s1 + $0x3b8] sm:$0xff]
      %v378 = vld [vmem:[%s1 + $0x3c0] sm:$0xff]
      %v379 = vld [vmem:[%s1 + $0x3c8] sm:$0xff]
      %v380 = vld [vmem:[%s1 + $0x3d0] sm:$0xff]
      %v381 = vld [vmem:[%s1 + $0x3d8] sm:$0xff]
      %v382 = vld [vmem:[%s1 + $0x3e0] sm:$0xff]
      %v383 = vld [vmem:[%s1 + $0x3e8] sm:$0xff]
      %v384 = vld [vmem:[%s1 + $0x3f0] sm:$0xff]
      %v385 = vld [vmem:[%s1 + $0x3f8] sm:$0xff]
      %v386 = vld [vmem:[%s1 + $0x400] sm:$0xff]
      %v387 = vld [vmem:[%s1 + $0x408] sm:$0xff]
      %v388 = vld [vmem:[%s1 + $0x410] sm:$0xff]
      %v389 = vld [vmem:[%s1 + $0x418] sm:$0xff]
      %v390 = vld [vmem:[%s1 + $0x420] sm:$0xff]
      %v391 = vld [vmem:[%s1 + $0x428] sm:$0xff]
      %v392 = vld [vmem:[%s1 + $0x430] sm:$0xff]
      %v393 = vld [vmem:[%s1 + $0x438] sm:$0xff]
      %v394 = vld [vmem:[%s1 + $0x440] sm:$0xff]
      %v395 = vld [vmem:[%s1 + $0x448] sm:$0xff]
      %v396 = vld [vmem:[%s1 + $0x450] sm:$0xff]
      %v397 = vld [vmem:[%s1 + $0x458] sm:$0xff]
      %v398 = vld [vmem:[%s1 + $0x460] sm:$0xff]
      %v399 = vld [vmem:[%s1 + $0x468] sm:$0xff]
      %v400 = vld [vmem:[%s1 + $0x470] sm:$0xff]
      %v401 = vld [vmem:[%s1 + $0x478] sm:$0xff]
      %vm426 = vcmask 1046528
      %v427 = vrot.slane %v228, 1
      %v428 = vrot.slane %v229, 1
      %v429 = vsel %vm426, %v427, %v428
      %v430 = vrot.slane %v230, 1
      %v431 = vsel %vm426, %v428, %v430
      %v432 = vrot.slane %v231, 1
      %v433 = vrot.slane %v232, 1
      %v434 = vsel %vm426, %v432, %v433
      %v435 = vrot.slane %v233, 1
      %v436 = vsel %vm426, %v433, %v435
      %v437 = vrot.slane %v234, 1
      %v438 = vrot.slane %v235, 1
      %v439 = vsel %vm426, %v437, %v438
      %v440 = vrot.slane %v236, 1
      %v441 = vsel %vm426, %v438, %v440
      %v442 = vrot.slane %v237, 1
      %v443 = vrot.slane %v238, 1
      %v444 = vsel %vm426, %v442, %v443
      %v445 = vrot.slane %v239, 1
      %v446 = vsel %vm426, %v443, %v445
      %v447 = vrot.slane %v240, 1
      %v448 = vrot.slane %v241, 1
      %v449 = vsel %vm426, %v447, %v448
      %v450 = vrot.slane %v242, 1
      %v451 = vsel %vm426, %v448, %v450
      %v452 = vrot.slane %v243, 1
      %v453 = vrot.slane %v244, 1
      %v454 = vsel %vm426, %v452, %v453
      %v455 = vrot.slane %v245, 1
      %v456 = vsel %vm426, %v453, %v455
      %v457 = vrot.slane %v246, 1
      %v458 = vrot.slane %v247, 1
      %v459 = vsel %vm426, %v457, %v458
      %v460 = vrot.slane %v248, 1
      %v461 = vsel %vm426, %v458, %v460
      %v462 = vrot.slane %v249, 1
      %v463 = vrot.slane %v250, 1
      %v464 = vsel %vm426, %v462, %v463
      %v465 = vrot.slane %v251, 1
      %v466 = vsel %vm426, %v463, %v465
      %vm483 = vcmask 1045504
      %v484 = vrot.slane %v228, 2
      %v485 = vrot.slane %v229, 2
      %v486 = vsel %vm483, %v484, %v485
      %v487 = vrot.slane %v230, 2
      %v488 = vsel %vm483, %v485, %v487
      %v489 = vrot.slane %v231, 2
      %v490 = vrot.slane %v232, 2
      %v491 = vsel %vm483, %v489, %v490
      %v492 = vrot.slane %v233, 2
      %v493 = vsel %vm483, %v490, %v492
      %v494 = vrot.slane %v234, 2
      %v495 = vrot.slane %v235, 2
      %v496 = vsel %vm483, %v494, %v495
      %v497 = vrot.slane %v236, 2
      %v498 = vsel %vm483, %v495, %v497
      %v499 = vrot.slane %v237, 2
      %v500 = vrot.slane %v238, 2
      %v501 = vsel %vm483, %v499, %v500
      %v502 = vrot.slane %v239, 2
      %v503 = vsel %vm483, %v500, %v502
      %v504 = vrot.slane %v240, 2
      %v505 = vrot.slane %v241, 2
      %v506 = vsel %vm483, %v504, %v505
      %v507 = vrot.slane %v242, 2
      %v508 = vsel %vm483, %v505, %v507
      %v509 = vrot.slane %v243, 2
      %v510 = vrot.slane %v244, 2
      %v511 = vsel %vm483, %v509, %v510
      %v512 = vrot.slane %v245, 2
      %v513 = vsel %vm483, %v510, %v512
      %v514 = vrot.slane %v246, 2
      %v515 = vrot.slane %v247, 2
      %v516 = vsel %vm483, %v514, %v515
      %v517 = vrot.slane %v248, 2
      %v518 = vsel %vm483, %v515, %v517
      %v519 = vrot.slane %v249, 2
      %v520 = vrot.slane %v250, 2
      %v521 = vsel %vm483, %v519, %v520
      %v522 = vrot.slane %v251, 2
      %v523 = vsel %vm483, %v520, %v522
      %v543 = vrot.slane %v252, 1
      %v544 = vrot.slane %v253, 1
      %v545 = vsel %vm426, %v543, %v544
      %v546 = vrot.slane %v254, 1
      %v547 = vsel %vm426, %v544, %v546
      %v550 = vrot.slane %v252, 2
      %v551 = vrot.slane %v253, 2
      %v552 = vsel %vm483, %v550, %v551
      %v553 = vrot.slane %v254, 2
      %v554 = vsel %vm483, %v551, %v553
      %v560 = vrot.slane %v255, 1
      %v561 = vrot.slane %v256, 1
      %v562 = vsel %vm426, %v560, %v561
      %v563 = vrot.slane %v257, 1
      %v564 = vsel %vm426, %v561, %v563
      %v567 = vrot.slane %v255, 2
      %v568 = vrot.slane %v256, 2
      %v569 = vsel %vm483, %v567, %v568
      %v570 = vrot.slane %v257, 2
      %v571 = vsel %vm483, %v568, %v570
      %574 = vmatprep.subr.mxu0 0.0
      %575 = vmatpush1.msra.mxu0 %v258
      %576 = vmatprep.subr.mxu0 0.0
      %577 = vmatpush1.msra.mxu0 %v259
      %578 = vmatprep.subr.mxu0 0.0
      %579 = vmatpush1.msra.mxu0 %v260
      %580 = vmatprep.subr.mxu0 0.0
      %581 = vmatpush1.msra.mxu0 %v261
      %582 = vmatprep.subr.mxu0 0.0
      %583 = vmatpush1.msra.mxu0 %v262
      %584 = vmatprep.subr.mxu0 0.0
      %585 = vmatpush1.msra.mxu0 %v263
      %586 = vmatprep.subr.mxu0 0.0
      %587 = vmatpush1.msra.mxu0 %v264
      %588 = vmatprep.subr.mxu0 0.0
      %589 = vmatpush1.msra.mxu0 %v265
      %590 = vmatprep.subr.mxu0 0.0
      %591 = vmatpush1.msra.mxu0 %v266
      %592 = vmatprep.subr.mxu0 0.0
      %593 = vmatpush1.msra.mxu0 %v267
      %594 = vmatprep.subr.mxu0 0.0
      %595 = vmatpush1.msra.mxu0 %v268
      %596 = vmatprep.subr.mxu0 0.0
      %597 = vmatpush1.msra.mxu0 %v269
      %598 = vmatprep.subr.mxu0 0.0
      %599 = vmatpush1.msra.mxu0 %v270
      %600 = vmatprep.subr.mxu0 0.0
      %601 = vmatpush1.msra.mxu0 %v271
      %602 = vmatprep.subr.mxu0 0.0
      %603 = vmatpush1.msra.mxu0 %v272
      %604 = vmatprep.subr.mxu0 0.0
      %605 = vmatpush1.msra.mxu0 %v273
      %606 = vmatprep.subr.mxu0 0.0
      %607 = vmatpush1.msra.mxu0 %v274
      %608 = vmatprep.subr.mxu0 0.0
      %609 = vmatpush1.msra.mxu0 %v275
      %610 = vmatprep.subr.mxu0 0.0
      %611 = vmatpush1.msra.mxu0 %v276
      %612 = vmatprep.subr.mxu0 0.0
      %613 = vmatpush1.msra.mxu0 %v277
      %614 = vmatprep.subr.mxu0 0.0
      %615 = vmatpush1.msra.mxu0 %v278
      %616 = vmatprep.subr.mxu0 0.0
      %617 = vmatpush1.msra.mxu0 %v279
      %618 = vmatprep.subr.mxu0 0.0
      %619 = vmatpush1.msra.mxu0 %v280
      %620 = vmatprep.subr.mxu0 0.0
      %621 = vmatpush1.msra.mxu0 %v281
      %622 = vmatprep.subr.mxu0 0.0
      %623 = vmatpush1.msra.mxu0 %v282
      %624 = vmatprep.subr.mxu0 0.0
      %625 = vmatpush1.msra.mxu0 %v283
      %626 = vmatprep.subr.mxu0 0.0
      %627 = vmatpush1.msra.mxu0 %v284
      %628 = vmatprep.subr.mxu0 0.0
      %629 = vmatpush1.msra.mxu0 %v285
      %630 = vmatprep.subr.mxu0 0.0
      %631 = vmatpush1.msra.mxu0 %v286
      %632 = vmatprep.subr.mxu0 0.0
      %633 = vmatpush1.msra.mxu0 %v287
      %634 = vmatprep.subr.mxu0 0.0
      %635 = vmatpush1.msra.mxu0 %v288
      %636 = vmatprep.subr.mxu0 0.0
      %637 = vmatpush1.msra.mxu0 %v289
      %638 = vmatprep.mubr.f32.mxu0 %v429
      %639 = vmatmul.mubr.f32.gmra.mrb[0].mxu0 %v228
      %v640 = vpop.f32.mrb[0].mxu0
      %v641 = vadd.f32 0.0, %v640
      %v642 = vpop.f32.mrb[0].mxu0
      %643 = vmatprep.mubr.f32.mxu0 %v431
      %644 = vmatmul.mubr.f32.gmra.mrb[0].mxu0 %v229
      %v645 = vpop.f32.mrb[0].mxu0
      %v646 = vadd.f32 0.0, %v645
      %v647 = vpop.f32.mrb[0].mxu0
      %648 = vmatprep.mubr.f32.mxu0 %v434
      %649 = vmatmul.mubr.f32.gmra.mrb[0].mxu0 %v231
      %v650 = vpop.f32.mrb[0].mxu0
      %v651 = vadd.f32 0.0, %v650
      %v652 = vpop.f32.mrb[0].mxu0
      %653 = vmatprep.mubr.f32.mxu0 %v436
      %654 = vmatmul.mubr.f32.gmra.mrb[0].mxu0 %v232
      %v655 = vpop.f32.mrb[0].mxu0
      %v656 = vadd.f32 0.0, %v655
      %v657 = vpop.f32.mrb[0].mxu0
      %658 = vmatprep.mubr.f32.mxu0 %v439
      %659 = vmatmul.mubr.f32.gmra.mrb[0].mxu0 %v234
      %v660 = vpop.f32.mrb[0].mxu0
      %v661 = vadd.f32 0.0, %v660
      %v662 = vpop.f32.mrb[0].mxu0
      %663 = vmatprep.mubr.f32.mxu0 %v441
      %664 = vmatmul.mubr.f32.gmra.mrb[0].mxu0 %v235
      %v665 = vpop.f32.mrb[0].mxu0
      %v666 = vadd.f32 0.0, %v665
      %v667 = vpop.f32.mrb[0].mxu0
      %668 = vmatprep.mubr.f32.mxu0 %v444
      %669 = vmatmul.mubr.f32.gmra.mrb[0].mxu0 %v237
      %v670 = vpop.f32.mrb[0].mxu0
      %v671 = vadd.f32 0.0, %v670
      %v672 = vpop.f32.mrb[0].mxu0
      %673 = vmatprep.mubr.f32.mxu0 %v446
      %674 = vmatmul.mubr.f32.gmra.mrb[0].mxu0 %v238
      %v675 = vpop.f32.mrb[0].mxu0
      %v676 = vadd.f32 0.0, %v675
      %v677 = vpop.f32.mrb[0].mxu0
      %678 = vmatprep.mubr.f32.mxu0 %v449
      %679 = vmatmul.mubr.f32.gmra.mrb[0].mxu0 %v240
      %v680 = vpop.f32.mrb[0].mxu0
      %v681 = vadd.f32 0.0, %v680
      %v682 = vpop.f32.mrb[0].mxu0
      %683 = vmatprep.mubr.f32.mxu0 %v451
      %684 = vmatmul.mubr.f32.gmra.mrb[0].mxu0 %v241
      %v685 = vpop.f32.mrb[0].mxu0
      %v686 = vadd.f32 0.0, %v685
      %v687 = vpop.f32.mrb[0].mxu0
      %688 = vmatprep.mubr.f32.mxu0 %v454
      %689 = vmatmul.mubr.f32.gmra.mrb[0].mxu0 %v243
      %v690 = vpop.f32.mrb[0].mxu0
      %v691 = vadd.f32 0.0, %v690
      %v692 = vpop.f32.mrb[0].mxu0
      %693 = vmatprep.mubr.f32.mxu0 %v456
      %694 = vmatmul.mubr.f32.gmra.mrb[0].mxu0 %v244
      %v695 = vpop.f32.mrb[0].mxu0
      %v696 = vadd.f32 0.0, %v695
      %v697 = vpop.f32.mrb[0].mxu0
      %698 = vmatprep.mubr.f32.mxu0 %v459
      %699 = vmatmul.mubr.f32.gmra.mrb[0].mxu0 %v246
      %v700 = vpop.f32.mrb[0].mxu0
      %v701 = vadd.f32 0.0, %v700
      %v702 = vpop.f32.mrb[0].mxu0
      %703 = vmatprep.mubr.f32.mxu0 %v461
      %704 = vmatmul.mubr.f32.gmra.mrb[0].mxu0 %v247
      %v705 = vpop.f32.mrb[0].mxu0
      %v706 = vadd.f32 0.0, %v705
      %v707 = vpop.f32.mrb[0].mxu0
      %708 = vmatprep.mubr.f32.mxu0 %v464
      %709 = vmatmul.mubr.f32.gmra.mrb[0].mxu0 %v249
      %v710 = vpop.f32.mrb[0].mxu0
      %v711 = vadd.f32 0.0, %v710
      %v712 = vpop.f32.mrb[0].mxu0
      %713 = vmatprep.mubr.f32.mxu0 %v466
      %714 = vmatmul.mubr.f32.gmra.mrb[0].mxu0 %v250
      %v715 = vpop.f32.mrb[0].mxu0
      %v716 = vadd.f32 0.0, %v715
      %v717 = vpop.f32.mrb[0].mxu0
      %718 = vdwg.mxu0
      %719 = vmatprep.subr.mxu0 0.0
      %720 = vmatpush1.msra.mxu0 %v290
      %721 = vmatprep.subr.mxu0 0.0
      %722 = vmatpush1.msra.mxu0 %v291
      %723 = vmatprep.subr.mxu0 0.0
      %724 = vmatpush1.msra.mxu0 %v292
      %725 = vmatprep.subr.mxu0 0.0
      %726 = vmatpush1.msra.mxu0 %v293
      %727 = vmatprep.subr.mxu0 0.0
      %728 = vmatpush1.msra.mxu0 %v294
      %729 = vmatprep.subr.mxu0 0.0
      %730 = vmatpush1.msra.mxu0 %v295
      %731 = vmatprep.subr.mxu0 0.0
      %732 = vmatpush1.msra.mxu0 %v296
      %733 = vmatprep.subr.mxu0 0.0
      %734 = vmatpush1.msra.mxu0 %v297
      %735 = vmatprep.subr.mxu0 0.0
      %736 = vmatpush1.msra.mxu0 %v298
      %737 = vmatprep.subr.mxu0 0.0
      %738 = vmatpush1.msra.mxu0 %v299
      %739 = vmatprep.subr.mxu0 0.0
      %740 = vmatpush1.msra.mxu0 %v300
      %741 = vmatprep.subr.mxu0 0.0
      %742 = vmatpush1.msra.mxu0 %v301
      %743 = vmatprep.subr.mxu0 0.0
      %744 = vmatpush1.msra.mxu0 %v302
      %745 = vmatprep.subr.mxu0 0.0
      %746 = vmatpush1.msra.mxu0 %v303
      %747 = vmatprep.subr.mxu0 0.0
      %748 = vmatpush1.msra.mxu0 %v304
      %749 = vmatprep.subr.mxu0 0.0
      %750 = vmatpush1.msra.mxu0 %v305
      %751 = vmatprep.subr.mxu0 0.0
      %752 = vmatpush1.msra.mxu0 %v306
      %753 = vmatprep.subr.mxu0 0.0
      %754 = vmatpush1.msra.mxu0 %v307
      %755 = vmatprep.subr.mxu0 0.0
      %756 = vmatpush1.msra.mxu0 %v308
      %757 = vmatprep.subr.mxu0 0.0
      %758 = vmatpush1.msra.mxu0 %v309
      %759 = vmatprep.subr.mxu0 0.0
      %760 = vmatpush1.msra.mxu0 %v310
      %761 = vmatprep.subr.mxu0 0.0
      %762 = vmatpush1.msra.mxu0 %v311
      %763 = vmatprep.subr.mxu0 0.0
      %764 = vmatpush1.msra.mxu0 %v312
      %765 = vmatprep.subr.mxu0 0.0
      %766 = vmatpush1.msra.mxu0 %v313
      %767 = vmatprep.subr.mxu0 0.0
      %768 = vmatpush1.msra.mxu0 %v314
      %769 = vmatprep.subr.mxu0 0.0
      %770 = vmatpush1.msra.mxu0 %v315
      %771 = vmatprep.subr.mxu0 0.0
      %772 = vmatpush1.msra.mxu0 %v316
      %773 = vmatprep.subr.mxu0 0.0
      %774 = vmatpush1.msra.mxu0 %v317
      %775 = vmatprep.subr.mxu0 0.0
      %776 = vmatpush1.msra.mxu0 %v318
      %777 = vmatprep.subr.mxu0 0.0
      %778 = vmatpush1.msra.mxu0 %v319
      %779 = vmatprep.subr.mxu0 0.0
      %780 = vmatpush1.msra.mxu0 %v320
      %781 = vmatprep.subr.mxu0 0.0
      %782 = vmatpush1.msra.mxu0 %v321
      %783 = vmatprep.mubr.f32.mxu0 %v231
      %784 = vmatmul.mubr.f32.gmra.mrb[0].mxu0 %v486
      %v785 = vpop.f32.mrb[0].mxu0
      %v786 = vadd.f32 %v641, %v785
      %v787 = vpop.f32.mrb[0].mxu0
      %788 = vmatprep.mubr.f32.mxu0 %v232
      %789 = vmatmul.mubr.f32.gmra.mrb[0].mxu0 %v488
      %v790 = vpop.f32.mrb[0].mxu0
      %v791 = vadd.f32 %v646, %v790
      %v792 = vpop.f32.mrb[0].mxu0
      %793 = vmatprep.mubr.f32.mxu0 %v234
      %794 = vmatmul.mubr.f32.gmra.mrb[0].mxu0 %v491
      %v795 = vpop.f32.mrb[0].mxu0
      %v796 = vadd.f32 %v651, %v795
      %v797 = vpop.f32.mrb[0].mxu0
      %798 = vmatprep.mubr.f32.mxu0 %v235
      %799 = vmatmul.mubr.f32.gmra.mrb[0].mxu0 %v493
      %v800 = vpop.f32.mrb[0].mxu0
      %v801 = vadd.f32 %v656, %v800
      %v802 = vpop.f32.mrb[0].mxu0
      %803 = vmatprep.mubr.f32.mxu0 %v237
      %804 = vmatmul.mubr.f32.gmra.mrb[0].mxu0 %v496
      %v805 = vpop.f32.mrb[0].mxu0
      %v806 = vadd.f32 %v661, %v805
      %v807 = vpop.f32.mrb[0].mxu0
      %808 = vmatprep.mubr.f32.mxu0 %v238
      %809 = vmatmul.mubr.f32.gmra.mrb[0].mxu0 %v498
      %v810 = vpop.f32.mrb[0].mxu0
      %v811 = vadd.f32 %v666, %v810
      %v812 = vpop.f32.mrb[0].mxu0
      %813 = vmatprep.mubr.f32.mxu0 %v240
      %814 = vmatmul.mubr.f32.gmra.mrb[0].mxu0 %v501
      %v815 = vpop.f32.mrb[0].mxu0
      %v816 = vadd.f32 %v671, %v815
      %v817 = vpop.f32.mrb[0].mxu0
      %818 = vmatprep.mubr.f32.mxu0 %v241
      %819 = vmatmul.mubr.f32.gmra.mrb[0].mxu0 %v503
      %v820 = vpop.f32.mrb[0].mxu0
      %v821 = vadd.f32 %v676, %v820
      %v822 = vpop.f32.mrb[0].mxu0
      %823 = vmatprep.mubr.f32.mxu0 %v243
      %824 = vmatmul.mubr.f32.gmra.mrb[0].mxu0 %v506
      %v825 = vpop.f32.mrb[0].mxu0
      %v826 = vadd.f32 %v681, %v825
      %v827 = vpop.f32.mrb[0].mxu0
      %828 = vmatprep.mubr.f32.mxu0 %v244
      %829 = vmatmul.mubr.f32.gmra.mrb[0].mxu0 %v508
      %v830 = vpop.f32.mrb[0].mxu0
      %v831 = vadd.f32 %v686, %v830
      %v832 = vpop.f32.mrb[0].mxu0
      %833 = vmatprep.mubr.f32.mxu0 %v246
      %834 = vmatmul.mubr.f32.gmra.mrb[0].mxu0 %v511
      %v835 = vpop.f32.mrb[0].mxu0
      %v836 = vadd.f32 %v691, %v835
      %v837 = vpop.f32.mrb[0].mxu0
      %838 = vmatprep.mubr.f32.mxu0 %v247
      %839 = vmatmul.mubr.f32.gmra.mrb[0].mxu0 %v513
      %v840 = vpop.f32.mrb[0].mxu0
      %v841 = vadd.f32 %v696, %v840
      %v842 = vpop.f32.mrb[0].mxu0
      %843 = vmatprep.mubr.f32.mxu0 %v249
      %844 = vmatmul.mubr.f32.gmra.mrb[0].mxu0 %v516
      %v845 = vpop.f32.mrb[0].mxu0
      %v846 = vadd.f32 %v701, %v845
      %v847 = vpop.f32.mrb[0].mxu0
      %848 = vmatprep.mubr.f32.mxu0 %v250
      %849 = vmatmul.mubr.f32.gmra.mrb[0].mxu0 %v518
      %v850 = vpop.f32.mrb[0].mxu0
      %v851 = vadd.f32 %v706, %v850
      %v852 = vpop.f32.mrb[0].mxu0
      %853 = vmatprep.mubr.f32.mxu0 %v252
      %854 = vmatmul.mubr.f32.gmra.mrb[0].mxu0 %v521
      %v855 = vpop.f32.mrb[0].mxu0
      %v856 = vadd.f32 %v711, %v855
      %v857 = vpop.f32.mrb[0].mxu0
      %858 = vmatprep.mubr.f32.mxu0 %v253
      %859 = vmatmul.mubr.f32.gmra.mrb[0].mxu0 %v523
      %v860 = vpop.f32.mrb[0].mxu0
      %v861 = vadd.f32 %v716, %v860
      %v862 = vpop.f32.mrb[0].mxu0
      %863 = vdwg.mxu0
      %864 = vmatprep.subr.mxu0 0.0
      %865 = vmatpush1.msra.mxu0 %v322
      %866 = vmatprep.subr.mxu0 0.0
      %867 = vmatpush1.msra.mxu0 %v323
      %868 = vmatprep.subr.mxu0 0.0
      %869 = vmatpush1.msra.mxu0 %v324
      %870 = vmatprep.subr.mxu0 0.0
      %871 = vmatpush1.msra.mxu0 %v325
      %872 = vmatprep.subr.mxu0 0.0
      %873 = vmatpush1.msra.mxu0 %v326
      %874 = vmatprep.subr.mxu0 0.0
      %875 = vmatpush1.msra.mxu0 %v327
      %876 = vmatprep.subr.mxu0 0.0
      %877 = vmatpush1.msra.mxu0 %v328
      %878 = vmatprep.subr.mxu0 0.0
      %879 = vmatpush1.msra.mxu0 %v329
      %880 = vmatprep.subr.mxu0 0.0
      %881 = vmatpush1.msra.mxu0 %v330
      %882 = vmatprep.subr.mxu0 0.0
      %883 = vmatpush1.msra.mxu0 %v331
      %884 = vmatprep.subr.mxu0 0.0
      %885 = vmatpush1.msra.mxu0 %v332
      %886 = vmatprep.subr.mxu0 0.0
      %887 = vmatpush1.msra.mxu0 %v333
      %888 = vmatprep.subr.mxu0 0.0
      %889 = vmatpush1.msra.mxu0 %v334
      %890 = vmatprep.subr.mxu0 0.0
      %891 = vmatpush1.msra.mxu0 %v335
      %892 = vmatprep.subr.mxu0 0.0
      %893 = vmatpush1.msra.mxu0 %v336
      %894 = vmatprep.subr.mxu0 0.0
      %895 = vmatpush1.msra.mxu0 %v337
      %896 = vmatprep.subr.mxu0 0.0
      %897 = vmatpush1.msra.mxu0 %v338
      %898 = vmatprep.subr.mxu0 0.0
      %899 = vmatpush1.msra.mxu0 %v339
      %900 = vmatprep.subr.mxu0 0.0
      %901 = vmatpush1.msra.mxu0 %v340
      %902 = vmatprep.subr.mxu0 0.0
      %903 = vmatpush1.msra.mxu0 %v341
      %904 = vmatprep.subr.mxu0 0.0
      %905 = vmatpush1.msra.mxu0 %v342
      %906 = vmatprep.subr.mxu0 0.0
      %907 = vmatpush1.msra.mxu0 %v343
      %908 = vmatprep.subr.mxu0 0.0
      %909 = vmatpush1.msra.mxu0 %v344
      %910 = vmatprep.subr.mxu0 0.0
      %911 = vmatpush1.msra.mxu0 %v345
      %912 = vmatprep.subr.mxu0 0.0
      %913 = vmatpush1.msra.mxu0 %v346
      %914 = vmatprep.subr.mxu0 0.0
      %915 = vmatpush1.msra.mxu0 %v347
      %916 = vmatprep.subr.mxu0 0.0
      %917 = vmatpush1.msra.mxu0 %v348
      %918 = vmatprep.subr.mxu0 0.0
      %919 = vmatpush1.msra.mxu0 %v349
      %920 = vmatprep.subr.mxu0 0.0
      %921 = vmatpush1.msra.mxu0 %v350
      %922 = vmatprep.subr.mxu0 0.0
      %923 = vmatpush1.msra.mxu0 %v351
      %924 = vmatprep.subr.mxu0 0.0
      %925 = vmatpush1.msra.mxu0 %v352
      %926 = vmatprep.subr.mxu0 0.0
      %927 = vmatpush1.msra.mxu0 %v353
      %928 = vmatprep.mubr.f32.mxu0 %v491
      %929 = vmatmul.mubr.f32.gmra.mrb[0].mxu0 %v434
      %v930 = vpop.f32.mrb[0].mxu0
      %v931 = vadd.f32 %v786, %v930
      %v932 = vpop.f32.mrb[0].mxu0
      %933 = vmatprep.mubr.f32.mxu0 %v493
      %934 = vmatmul.mubr.f32.gmra.mrb[0].mxu0 %v436
      %v935 = vpop.f32.mrb[0].mxu0
      %v936 = vadd.f32 %v791, %v935
      %v937 = vpop.f32.mrb[0].mxu0
      %938 = vmatprep.mubr.f32.mxu0 %v496
      %939 = vmatmul.mubr.f32.gmra.mrb[0].mxu0 %v439
      %v940 = vpop.f32.mrb[0].mxu0
      %v941 = vadd.f32 %v796, %v940
      %v942 = vpop.f32.mrb[0].mxu0
      %943 = vmatprep.mubr.f32.mxu0 %v498
      %944 = vmatmul.mubr.f32.gmra.mrb[0].mxu0 %v441
      %v945 = vpop.f32.mrb[0].mxu0
      %v946 = vadd.f32 %v801, %v945
      %v947 = vpop.f32.mrb[0].mxu0
      %948 = vmatprep.mubr.f32.mxu0 %v501
      %949 = vmatmul.mubr.f32.gmra.mrb[0].mxu0 %v444
      %v950 = vpop.f32.mrb[0].mxu0
      %v951 = vadd.f32 %v806, %v950
      %v952 = vpop.f32.mrb[0].mxu0
      %953 = vmatprep.mubr.f32.mxu0 %v503
      %954 = vmatmul.mubr.f32.gmra.mrb[0].mxu0 %v446
      %v955 = vpop.f32.mrb[0].mxu0
      %v956 = vadd.f32 %v811, %v955
      %v957 = vpop.f32.mrb[0].mxu0
      %958 = vmatprep.mubr.f32.mxu0 %v506
      %959 = vmatmul.mubr.f32.gmra.mrb[0].mxu0 %v449
      %v960 = vpop.f32.mrb[0].mxu0
      %v961 = vadd.f32 %v816, %v960
      %v962 = vpop.f32.mrb[0].mxu0
      %963 = vmatprep.mubr.f32.mxu0 %v508
      %964 = vmatmul.mubr.f32.gmra.mrb[0].mxu0 %v451
      %v965 = vpop.f32.mrb[0].mxu0
      %v966 = vadd.f32 %v821, %v965
      %v967 = vpop.f32.mrb[0].mxu0
      %968 = vmatprep.mubr.f32.mxu0 %v511
      %969 = vmatmul.mubr.f32.gmra.mrb[0].mxu0 %v454
      %v970 = vpop.f32.mrb[0].mxu0
      %v971 = vadd.f32 %v826, %v970
      %v972 = vpop.f32.mrb[0].mxu0
      %973 = vmatprep.mubr.f32.mxu0 %v513
      %974 = vmatmul.mubr.f32.gmra.mrb[0].mxu0 %v456
      %v975 = vpop.f32.mrb[0].mxu0
      %v976 = vadd.f32 %v831, %v975
      %v977 = vpop.f32.mrb[0].mxu0
      %978 = vmatprep.mubr.f32.mxu0 %v516
      %979 = vmatmul.mubr.f32.gmra.mrb[0].mxu0 %v459
      %v980 = vpop.f32.mrb[0].mxu0
      %v981 = vadd.f32 %v836, %v980
      %v982 = vpop.f32.mrb[0].mxu0
      %983 = vmatprep.mubr.f32.mxu0 %v518
      %984 = vmatmul.mubr.f32.gmra.mrb[0].mxu0 %v461
      %v985 = vpop.f32.mrb[0].mxu0
      %v986 = vadd.f32 %v841, %v985
      %v987 = vpop.f32.mrb[0].mxu0
      %988 = vmatprep.mubr.f32.mxu0 %v521
      %989 = vmatmul.mubr.f32.gmra.mrb[0].mxu0 %v464
      %v990 = vpop.f32.mrb[0].mxu0
      %v991 = vadd.f32 %v846, %v990
      %v992 = vpop.f32.mrb[0].mxu0
      %993 = vmatprep.mubr.f32.mxu0 %v523
      %994 = vmatmul.mubr.f32.gmra.mrb[0].mxu0 %v466
      %v995 = vpop.f32.mrb[0].mxu0
      %v996 = vadd.f32 %v851, %v995
      %v997 = vpop.f32.mrb[0].mxu0
      %998 = vmatprep.mubr.f32.mxu0 %v552
      %999 = vmatmul.mubr.f32.gmra.mrb[0].mxu0 %v545
      %v1000 = vpop.f32.mrb[0].mxu0
      %v1001 = vadd.f32 %v856, %v1000
      %v1002 = vpop.f32.mrb[0].mxu0
      %1003 = vmatprep.mubr.f32.mxu0 %v554
      %1004 = vmatmul.mubr.f32.gmra.mrb[0].mxu0 %v547
      %v1005 = vpop.f32.mrb[0].mxu0
      %v1006 = vadd.f32 %v861, %v1005
      %v1007 = vpop.f32.mrb[0].mxu0
      %1008 = vdwg.mxu0
      %1009 = vmatprep.subr.mxu0 0.0
      %1010 = vmatpush1.msra.mxu0 %v354
      %1011 = vmatprep.subr.mxu0 0.0
      %1012 = vmatpush1.msra.mxu0 %v355
      %1013 = vmatprep.subr.mxu0 0.0
      %1014 = vmatpush1.msra.mxu0 %v356
      %1015 = vmatprep.subr.mxu0 0.0
      %1016 = vmatpush1.msra.mxu0 %v357
      %1017 = vmatprep.subr.mxu0 0.0
      %1018 = vmatpush1.msra.mxu0 %v358
      %1019 = vmatprep.subr.mxu0 0.0
      %1020 = vmatpush1.msra.mxu0 %v359
      %1021 = vmatprep.subr.mxu0 0.0
      %1022 = vmatpush1.msra.mxu0 %v360
      %1023 = vmatprep.subr.mxu0 0.0
      %1024 = vmatpush1.msra.mxu0 %v361
      %1025 = vmatprep.subr.mxu0 0.0
      %1026 = vmatpush1.msra.mxu0 %v362
      %1027 = vmatprep.subr.mxu0 0.0
      %1028 = vmatpush1.msra.mxu0 %v363
      %1029 = vmatprep.subr.mxu0 0.0
      %1030 = vmatpush1.msra.mxu0 %v364
      %1031 = vmatprep.subr.mxu0 0.0
      %1032 = vmatpush1.msra.mxu0 %v365
      %1033 = vmatprep.subr.mxu0 0.0
      %1034 = vmatpush1.msra.mxu0 %v366
      %1035 = vmatprep.subr.mxu0 0.0
      %1036 = vmatpush1.msra.mxu0 %v367
      %1037 = vmatprep.subr.mxu0 0.0
      %1038 = vmatpush1.msra.mxu0 %v368
      %1039 = vmatprep.subr.mxu0 0.0
      %1040 = vmatpush1.msra.mxu0 %v369
      %1041 = vmatprep.subr.mxu0 0.0
      %1042 = vmatpush1.msra.mxu0 %v370
      %1043 = vmatprep.subr.mxu0 0.0
      %1044 = vmatpush1.msra.mxu0 %v371
      %1045 = vmatprep.subr.mxu0 0.0
      %1046 = vmatpush1.msra.mxu0 %v372
      %1047 = vmatprep.subr.mxu0 0.0
      %1048 = vmatpush1.msra.mxu0 %v373
      %1049 = vmatprep.subr.mxu0 0.0
      %1050 = vmatpush1.msra.mxu0 %v374
      %1051 = vmatprep.subr.mxu0 0.0
      %1052 = vmatpush1.msra.mxu0 %v375
      %1053 = vmatprep.subr.mxu0 0.0
      %1054 = vmatpush1.msra.mxu0 %v376
      %1055 = vmatprep.subr.mxu0 0.0
      %1056 = vmatpush1.msra.mxu0 %v377
      %1057 = vmatprep.subr.mxu0 0.0
      %1058 = vmatpush1.msra.mxu0 %v378
      %1059 = vmatprep.subr.mxu0 0.0
      %1060 = vmatpush1.msra.mxu0 %v379
      %1061 = vmatprep.subr.mxu0 0.0
      %1062 = vmatpush1.msra.mxu0 %v380
      %1063 = vmatprep.subr.mxu0 0.0
      %1064 = vmatpush1.msra.mxu0 %v381
      %1065 = vmatprep.subr.mxu0 0.0
      %1066 = vmatpush1.msra.mxu0 %v382
      %1067 = vmatprep.subr.mxu0 0.0
      %1068 = vmatpush1.msra.mxu0 %v383
      %1069 = vmatprep.subr.mxu0 0.0
      %1070 = vmatpush1.msra.mxu0 %v384
      %1071 = vmatprep.subr.mxu0 0.0
      %1072 = vmatpush1.msra.mxu0 %v385
      %1073 = vmatprep.mubr.f32.mxu0 %v439
      %1074 = vmatmul.mubr.f32.gmra.mrb[0].mxu0 %v234
      %v1075 = vpop.f32.mrb[0].mxu0
      %v1076 = vadd.f32 %v931, %v1075
      %v1077 = vpop.f32.mrb[0].mxu0
      %1078 = vmatprep.mubr.f32.mxu0 %v441
      %1079 = vmatmul.mubr.f32.gmra.mrb[0].mxu0 %v235
      %v1080 = vpop.f32.mrb[0].mxu0
      %v1081 = vadd.f32 %v936, %v1080
      %v1082 = vpop.f32.mrb[0].mxu0
      %1083 = vmatprep.mubr.f32.mxu0 %v444
      %1084 = vmatmul.mubr.f32.gmra.mrb[0].mxu0 %v237
      %v1085 = vpop.f32.mrb[0].mxu0
      %v1086 = vadd.f32 %v941, %v1085
      %v1087 = vpop.f32.mrb[0].mxu0
      %1088 = vmatprep.mubr.f32.mxu0 %v446
      %1089 = vmatmul.mubr.f32.gmra.mrb[0].mxu0 %v238
      %v1090 = vpop.f32.mrb[0].mxu0
      %v1091 = vadd.f32 %v946, %v1090
      %v1092 = vpop.f32.mrb[0].mxu0
      %1093 = vmatprep.mubr.f32.mxu0 %v449
      %1094 = vmatmul.mubr.f32.gmra.mrb[0].mxu0 %v240
      %v1095 = vpop.f32.mrb[0].mxu0
      %v1096 = vadd.f32 %v951, %v1095
      %v1097 = vpop.f32.mrb[0].mxu0
      %1098 = vmatprep.mubr.f32.mxu0 %v451
      %1099 = vmatmul.mubr.f32.gmra.mrb[0].mxu0 %v241
      %v1100 = vpop.f32.mrb[0].mxu0
      %v1101 = vadd.f32 %v956, %v1100
      %v1102 = vpop.f32.mrb[0].mxu0
      %1103 = vmatprep.mubr.f32.mxu0 %v454
      %1104 = vmatmul.mubr.f32.gmra.mrb[0].mxu0 %v243
      %v1105 = vpop.f32.mrb[0].mxu0
      %v1106 = vadd.f32 %v961, %v1105
      %v1107 = vpop.f32.mrb[0].mxu0
      %1108 = vmatprep.mubr.f32.mxu0 %v456
      %1109 = vmatmul.mubr.f32.gmra.mrb[0].mxu0 %v244
      %v1110 = vpop.f32.mrb[0].mxu0
      %v1111 = vadd.f32 %v966, %v1110
      %v1112 = vpop.f32.mrb[0].mxu0
      %1113 = vmatprep.mubr.f32.mxu0 %v459
      %1114 = vmatmul.mubr.f32.gmra.mrb[0].mxu0 %v246
      %v1115 = vpop.f32.mrb[0].mxu0
      %v1116 = vadd.f32 %v971, %v1115
      %v1117 = vpop.f32.mrb[0].mxu0
      %1118 = vmatprep.mubr.f32.mxu0 %v461
      %1119 = vmatmul.mubr.f32.gmra.mrb[0].mxu0 %v247
      %v1120 = vpop.f32.mrb[0].mxu0
      %v1121 = vadd.f32 %v976, %v1120
      %v1122 = vpop.f32.mrb[0].mxu0
      %1123 = vmatprep.mubr.f32.mxu0 %v464
      %1124 = vmatmul.mubr.f32.gmra.mrb[0].mxu0 %v249
      %v1125 = vpop.f32.mrb[0].mxu0
      %v1126 = vadd.f32 %v981, %v1125
      %v1127 = vpop.f32.mrb[0].mxu0
      %1128 = vmatprep.mubr.f32.mxu0 %v466
      %1129 = vmatmul.mubr.f32.gmra.mrb[0].mxu0 %v250
      %v1130 = vpop.f32.mrb[0].mxu0
      %v1131 = vadd.f32 %v986, %v1130
      %v1132 = vpop.f32.mrb[0].mxu0
      %1133 = vmatprep.mubr.f32.mxu0 %v545
      %1134 = vmatmul.mubr.f32.gmra.mrb[0].mxu0 %v252
      %v1135 = vpop.f32.mrb[0].mxu0
      %v1136 = vadd.f32 %v991, %v1135
      %v1137 = vpop.f32.mrb[0].mxu0
      %1138 = vmatprep.mubr.f32.mxu0 %v547
      %1139 = vmatmul.mubr.f32.gmra.mrb[0].mxu0 %v253
      %v1140 = vpop.f32.mrb[0].mxu0
      %v1141 = vadd.f32 %v996, %v1140
      %v1142 = vpop.f32.mrb[0].mxu0
      %1143 = vmatprep.mubr.f32.mxu0 %v562
      %1144 = vmatmul.mubr.f32.gmra.mrb[0].mxu0 %v255
      %v1145 = vpop.f32.mrb[0].mxu0
      %v1146 = vadd.f32 %v1001, %v1145
      %v1147 = vpop.f32.mrb[0].mxu0
      %1148 = vmatprep.mubr.f32.mxu0 %v564
      %1149 = vmatmul.mubr.f32.gmra.mrb[0].mxu0 %v256
      %v1150 = vpop.f32.mrb[0].mxu0
      %v1151 = vadd.f32 %v1006, %v1150
      %v1152 = vpop.f32.mrb[0].mxu0
      %1153 = vdwg.mxu0
      %1154 = vmatprep.subr.mxu0 0.0
      %1155 = vmatpush1.msra.mxu0 %v386
      %1156 = vmatprep.subr.mxu0 0.0
      %1157 = vmatpush1.msra.mxu0 %v387
      %1158 = vmatprep.subr.mxu0 0.0
      %1159 = vmatpush1.msra.mxu0 %v388
      %1160 = vmatprep.subr.mxu0 0.0
      %1161 = vmatpush1.msra.mxu0 %v389
      %1162 = vmatprep.subr.mxu0 0.0
      %1163 = vmatpush1.msra.mxu0 %v390
      %1164 = vmatprep.subr.mxu0 0.0
      %1165 = vmatpush1.msra.mxu0 %v391
      %1166 = vmatprep.subr.mxu0 0.0
      %1167 = vmatpush1.msra.mxu0 %v392
      %1168 = vmatprep.subr.mxu0 0.0
      %1169 = vmatpush1.msra.mxu0 %v393
      %1170 = vmatprep.subr.mxu0 0.0
      %1171 = vmatpush1.msra.mxu0 %v394
      %1172 = vmatprep.subr.mxu0 0.0
      %1173 = vmatpush1.msra.mxu0 %v395
      %1174 = vmatprep.subr.mxu0 0.0
      %1175 = vmatpush1.msra.mxu0 %v396
      %1176 = vmatprep.subr.mxu0 0.0
      %1177 = vmatpush1.msra.mxu0 %v397
      %1178 = vmatprep.subr.mxu0 0.0
      %1179 = vmatpush1.msra.mxu0 %v398
      %1180 = vmatprep.subr.mxu0 0.0
      %1181 = vmatpush1.msra.mxu0 %v399
      %1182 = vmatprep.subr.mxu0 0.0
      %1183 = vmatpush1.msra.mxu0 %v400
      %1184 = vmatprep.subr.mxu0 0.0
      %1185 = vmatpush1.msra.mxu0 %v401
      %1186 = vmatprep.subr.mxu0 0.0
      %1187 = vmatpush1.msra.mxu0 0.0
      %1188 = vmatprep.subr.mxu0 0.0
      %1189 = vmatpush1.msra.mxu0 0.0
      %1190 = vmatprep.subr.mxu0 0.0
      %1191 = vmatpush1.msra.mxu0 0.0
      %1192 = vmatprep.subr.mxu0 0.0
      %1193 = vmatpush1.msra.mxu0 0.0
      %1194 = vmatprep.subr.mxu0 0.0
      %1195 = vmatpush1.msra.mxu0 0.0
      %1196 = vmatprep.subr.mxu0 0.0
      %1197 = vmatpush1.msra.mxu0 0.0
      %1198 = vmatprep.subr.mxu0 0.0
      %1199 = vmatpush1.msra.mxu0 0.0
      %1200 = vmatprep.subr.mxu0 0.0
      %1201 = vmatpush1.msra.mxu0 0.0
      %1202 = vmatprep.subr.mxu0 0.0
      %1203 = vmatpush1.msra.mxu0 0.0
      %1204 = vmatprep.subr.mxu0 0.0
      %1205 = vmatpush1.msra.mxu0 0.0
      %1206 = vmatprep.subr.mxu0 0.0
      %1207 = vmatpush1.msra.mxu0 0.0
      %1208 = vmatprep.subr.mxu0 0.0
      %1209 = vmatpush1.msra.mxu0 0.0
      %1210 = vmatprep.subr.mxu0 0.0
      %1211 = vmatpush1.msra.mxu0 0.0
      %1212 = vmatprep.subr.mxu0 0.0
      %1213 = vmatpush1.msra.mxu0 0.0
      %1214 = vmatprep.subr.mxu0 0.0
      %1215 = vmatpush1.msra.mxu0 0.0
      %1216 = vmatprep.subr.mxu0 0.0
      %1217 = vmatpush1.msra.mxu0 0.0
      %1218 = vmatprep.mubr.f32.mxu0 0.0
      %1219 = vmatmul.mubr.f32.gmra.mrb[0].mxu0 %v496
      %v1220 = vpop.f32.mrb[0].mxu0
      %v1221 = vadd.f32 %v1076, %v1220
      %v1222 = vpop.f32.mrb[0].mxu0
      %1223 = vmatprep.mubr.f32.mxu0 0.0
      %1224 = vmatmul.mubr.f32.gmra.mrb[0].mxu0 %v498
      %v1225 = vpop.f32.mrb[0].mxu0
      %v1226 = vadd.f32 %v1081, %v1225
      %v1227 = vpop.f32.mrb[0].mxu0
      %1228 = vmatprep.mubr.f32.mxu0 0.0
      %1229 = vmatmul.mubr.f32.gmra.mrb[0].mxu0 %v501
      %v1230 = vpop.f32.mrb[0].mxu0
      %v1231 = vadd.f32 %v1086, %v1230
      %v1232 = vpop.f32.mrb[0].mxu0
      %1233 = vmatprep.mubr.f32.mxu0 0.0
      %1234 = vmatmul.mubr.f32.gmra.mrb[0].mxu0 %v503
      %v1235 = vpop.f32.mrb[0].mxu0
      %v1236 = vadd.f32 %v1091, %v1235
      %v1237 = vpop.f32.mrb[0].mxu0
      %1238 = vmatprep.mubr.f32.mxu0 0.0
      %1239 = vmatmul.mubr.f32.gmra.mrb[0].mxu0 %v506
      %v1240 = vpop.f32.mrb[0].mxu0
      %v1241 = vadd.f32 %v1096, %v1240
      %v1242 = vpop.f32.mrb[0].mxu0
      %1243 = vmatprep.mubr.f32.mxu0 0.0
      %1244 = vmatmul.mubr.f32.gmra.mrb[0].mxu0 %v508
      %v1245 = vpop.f32.mrb[0].mxu0
      %v1246 = vadd.f32 %v1101, %v1245
      %v1247 = vpop.f32.mrb[0].mxu0
      %1248 = vmatprep.mubr.f32.mxu0 0.0
      %1249 = vmatmul.mubr.f32.gmra.mrb[0].mxu0 %v511
      %v1250 = vpop.f32.mrb[0].mxu0
      %v1251 = vadd.f32 %v1106, %v1250
      %v1252 = vpop.f32.mrb[0].mxu0
      %1253 = vmatprep.mubr.f32.mxu0 0.0
      %1254 = vmatmul.mubr.f32.gmra.mrb[0].mxu0 %v513
      %v1255 = vpop.f32.mrb[0].mxu0
      %v1256 = vadd.f32 %v1111, %v1255
      %v1257 = vpop.f32.mrb[0].mxu0
      %1258 = vmatprep.mubr.f32.mxu0 0.0
      %1259 = vmatmul.mubr.f32.gmra.mrb[0].mxu0 %v516
      %v1260 = vpop.f32.mrb[0].mxu0
      %v1261 = vadd.f32 %v1116, %v1260
      %v1262 = vpop.f32.mrb[0].mxu0
      %1263 = vmatprep.mubr.f32.mxu0 0.0
      %1264 = vmatmul.mubr.f32.gmra.mrb[0].mxu0 %v518
      %v1265 = vpop.f32.mrb[0].mxu0
      %v1266 = vadd.f32 %v1121, %v1265
      %v1267 = vpop.f32.mrb[0].mxu0
      %1268 = vmatprep.mubr.f32.mxu0 0.0
      %1269 = vmatmul.mubr.f32.gmra.mrb[0].mxu0 %v521
      %v1270 = vpop.f32.mrb[0].mxu0
      %v1271 = vadd.f32 %v1126, %v1270
      %v1272 = vpop.f32.mrb[0].mxu0
      %1273 = vmatprep.mubr.f32.mxu0 0.0
      %1274 = vmatmul.mubr.f32.gmra.mrb[0].mxu0 %v523
      %v1275 = vpop.f32.mrb[0].mxu0
      %v1276 = vadd.f32 %v1131, %v1275
      %v1277 = vpop.f32.mrb[0].mxu0
      %1278 = vmatprep.mubr.f32.mxu0 0.0
      %1279 = vmatmul.mubr.f32.gmra.mrb[0].mxu0 %v552
      %v1280 = vpop.f32.mrb[0].mxu0
      %v1281 = vadd.f32 %v1136, %v1280
      %v1282 = vpop.f32.mrb[0].mxu0
      %1283 = vmatprep.mubr.f32.mxu0 0.0
      %1284 = vmatmul.mubr.f32.gmra.mrb[0].mxu0 %v554
      %v1285 = vpop.f32.mrb[0].mxu0
      %v1286 = vadd.f32 %v1141, %v1285
      %v1287 = vpop.f32.mrb[0].mxu0
      %1288 = vmatprep.mubr.f32.mxu0 0.0
      %1289 = vmatmul.mubr.f32.gmra.mrb[0].mxu0 %v569
      %v1290 = vpop.f32.mrb[0].mxu0
      %v1291 = vadd.f32 %v1146, %v1290
      %v1292 = vpop.f32.mrb[0].mxu0
      %1293 = vmatprep.mubr.f32.mxu0 0.0
      %1294 = vmatmul.mubr.f32.gmra.mrb[0].mxu0 %v571
      %v1295 = vpop.f32.mrb[0].mxu0
      %v1296 = vadd.f32 %v1151, %v1295
      %v1297 = vpop.f32.mrb[0].mxu0
      %1298 = vdwg.mxu0
      %v1299 = vadd.f32 %v1221, %v1226
      %v1300 = vadd.f32 %v1299, %v1231
      %v1301 = vadd.f32 %v1300, %v1236
      %v1302 = vadd.f32 %v1301, %v1241
      %v1303 = vadd.f32 %v1302, %v1246
      %v1304 = vadd.f32 %v1303, %v1251
      %v1305 = vadd.f32 %v1304, %v1256
      %v1306 = vadd.f32 %v1305, %v1261
      %v1307 = vadd.f32 %v1306, %v1266
      %v1308 = vadd.f32 %v1307, %v1271
      %v1309 = vadd.f32 %v1308, %v1276
      %v1310 = vadd.f32 %v1309, %v1281
      %v1311 = vadd.f32 %v1310, %v1286
      %v1312 = vadd.f32 %v1311, %v1291
      %v1313 = vadd.f32 %v1312, %v1296
      %v1314 = vrot.slane %v1313, 4
      %v1315 = vadd.f32 %v1313, %v1314
      %v1316 = vrot.slane %v1315, 2
      %v1317 = vadd.f32 %v1315, %v1316
      %v1318 = vrot.slane %v1317, 1
      %v1319 = vadd.f32 %v1317, %v1318
      %v1320 = vmul.f32 %v1221, %v1221
      %v1321 = vmul.f32 %v1226, %v1226
      %v1322 = vmul.f32 %v1231, %v1231
      %v1323 = vmul.f32 %v1236, %v1236
      %v1324 = vmul.f32 %v1241, %v1241
      %v1325 = vmul.f32 %v1246, %v1246
      %v1326 = vmul.f32 %v1251, %v1251
      %v1327 = vmul.f32 %v1256, %v1256
      %v1328 = vmul.f32 %v1261, %v1261
      %v1329 = vmul.f32 %v1266, %v1266
      %v1330 = vmul.f32 %v1271, %v1271
      %v1331 = vmul.f32 %v1276, %v1276
      %v1332 = vmul.f32 %v1281, %v1281
      %v1333 = vmul.f32 %v1286, %v1286
      %v1334 = vmul.f32 %v1291, %v1291
      %v1335 = vmul.f32 %v1296, %v1296
      %v1336 = vadd.f32 %v1320, %v1321
      %v1337 = vadd.f32 %v1336, %v1322
      %v1338 = vadd.f32 %v1337, %v1323
      %v1339 = vadd.f32 %v1338, %v1324
      %v1340 = vadd.f32 %v1339, %v1325
      %v1341 = vadd.f32 %v1340, %v1326
      %v1342 = vadd.f32 %v1341, %v1327
      %v1343 = vadd.f32 %v1342, %v1328
      %v1344 = vadd.f32 %v1343, %v1329
      %v1345 = vadd.f32 %v1344, %v1330
      %v1346 = vadd.f32 %v1345, %v1331
      %v1347 = vadd.f32 %v1346, %v1332
      %v1348 = vadd.f32 %v1347, %v1333
      %v1349 = vadd.f32 %v1348, %v1334
      %v1350 = vadd.f32 %v1349, %v1335
      %v1351 = vrot.slane %v1350, 4
      %v1352 = vadd.f32 %v1350, %v1351
      %v1353 = vrot.slane %v1352, 2
      %v1354 = vadd.f32 %v1352, %v1353
      %v1355 = vrot.slane %v1354, 1
      %v1356 = vadd.f32 %v1354, %v1355
      %vm1357 = vcmask 1040384
      %v1358 = vsel %vm1357, %v1319, %v1356
      %vm1359 = vcmask 1041408
      %v1360 = vsel %vm1359, %v1358, 0.0
      %1361 = vst [vmem:[%s227] sm:$0xff] %v1360
      %1362 = vst [vmem:[%s219] sm:$0xff] %v1221
      %1363 = vst [vmem:[%s219 + $0x8] sm:$0xff] %v1226
      %1364 = vst [vmem:[%s219 + $0x10] sm:$0xff] %v1231
      %1365 = vst [vmem:[%s219 + $0x18] sm:$0xff] %v1236
      %1366 = vst [vmem:[%s219 + $0x20] sm:$0xff] %v1241
      %1367 = vst [vmem:[%s219 + $0x28] sm:$0xff] %v1246
      %1368 = vst [vmem:[%s219 + $0x30] sm:$0xff] %v1251
      %1369 = vst [vmem:[%s219 + $0x38] sm:$0xff] %v1256
      %1370 = vst [vmem:[%s219 + $0x40] sm:$0xff] %v1261
      %1371 = vst [vmem:[%s219 + $0x48] sm:$0xff] %v1266
      %1372 = vst [vmem:[%s219 + $0x50] sm:$0xff] %v1271
      %1373 = vst [vmem:[%s219 + $0x58] sm:$0xff] %v1276
      %1374 = vst [vmem:[%s219 + $0x60] sm:$0xff] %v1281
      %1375 = vst [vmem:[%s219 + $0x68] sm:$0xff] %v1286
      %1376 = vst [vmem:[%s219 + $0x70] sm:$0xff] %v1291
      %1377 = vst [vmem:[%s219 + $0x78] sm:$0xff] %v1296
      %p1378 = scmp.lt.s32.totalorder %s19, 1
      %s1379 = scalar_select %p1378, %s19, 1
      %p1380 = scmp.lt.s32.totalorder %s20, 1
      %s1381 = scalar_select %p1380, %s20, 1
      %s1382 = smul.addr %s1381, 16
      %s1383 = smul.addr %s1379, 32
      %s1384 = sadd.s32 %s1382, %s1383
      %s1385 = smul.addr %s1384, 8
      %s1386 = scalar_lea.vmem %s2, %s1385
      %p1387 = scmp.lt.s32.totalorder %s19, 1
      %s1388 = scalar_select %p1387, %s19, 1
      %p1389 = scmp.lt.s32.totalorder %s20, 1
      %s1390 = scalar_select %p1389, %s20, 1
      %s1391 = smul.addr %s1388, 2
      %s1392 = sadd.s32 %s1390, %s1391
      %s1393 = smul.addr %s1392, 8
      %s1394 = scalar_lea.vmem %s3, %s1393
      // Predicated region
      $region29: #{res_block_forward.3} parent=27 // pred_check
        %p1395 = pneg %p96
      $region30: #{res_block_forward.3} parent=27 // pred_check_branch
        %1397 = sbr.rel (%p1395) target = $region32
      $region31: #{res_block_forward.3} parent=27 // pred_region
        _
      $region32: #{res_block_forward.3} parent=27 // pred_fallthru
        _
      // Predicated region
      $region33: #{res_block_forward.3} parent=27 // pred_check
        %p1398 = pneg %p124
      $region34: #{res_block_forward.3} parent=27 // pred_check_branch
        %1400 = sbr.rel (%p1398) target = $region36
      $region35: #{res_block_forward.3} parent=27 // pred_region
        _
      $region36: #{res_block_forward.3} parent=27 // pred_fallthru
        _
    $region28: #{res_block_forward.3} parent=5 // pred_fallthru
      _
    %p1401 = scmp.le.s32.totalorder 2, %s10
    // Predicated region
    $region37: #{res_block_forward.3} parent=5 // pred_check
      %p1402 = pneg %p1401
    $region38: #{res_block_forward.3} parent=5 // pred_check_branch
      %1404 = sbr.rel (%p1402) target = $region40
    $region39: #{res_block_forward.3} parent=5 // pred_region
      %s1405 = ssub.s32 %s10, 2
      // Predicated region
      $region41: #{res_block_forward.3} parent=39 // pred_check
        %p1406 = pneg %p102
      $region42: #{res_block_forward.3} parent=39 // pred_check_branch
        %1408 = sbr.rel (%p1406) target = $region44
      $region43: #{res_block_forward.3} parent=39 // pred_region
        %p1409 = scmp.lt.s32.totalorder %s21, 1
        %s1410 = scalar_select %p1409, %s21, 1
        %p1411 = scmp.lt.s32.totalorder %s22, 1
        %s1412 = scalar_select %p1411, %s22, 1
        %s1413 = smul.addr %s1412, 16
        %s1414 = smul.addr %s1410, 32
        %s1415 = sadd.s32 %s1413, %s1414
        %s1416 = smul.addr %s1415, 8
        %s1417 = scalar_lea.vmem %s2, %s1416
      $region44: #{res_block_forward.3} parent=39 // pred_fallthru
        _
      // Predicated region
      $region45: #{res_block_forward.3} parent=39 // pred_check
        %p1418 = pneg %p130
      $region46: #{res_block_forward.3} parent=39 // pred_check_branch
        %1420 = sbr.rel (%p1418) target = $region48
      $region47: #{res_block_forward.3} parent=39 // pred_region
        %p1421 = scmp.lt.s32.totalorder %s21, 1
        %s1422 = scalar_select %p1421, %s21, 1
        %p1423 = scmp.lt.s32.totalorder %s22, 1
        %s1424 = scalar_select %p1423, %s22, 1
        %s1425 = smul.addr %s1422, 2
        %s1426 = sadd.s32 %s1424, %s1425
        %s1427 = smul.addr %s1426, 8
        %s1428 = scalar_lea.vmem %s3, %s1427
      $region48: #{res_block_forward.3} parent=39 // pred_fallthru
        _
    $region40: #{res_block_forward.3} parent=5 // pred_fallthru
      _
  $region6: #{res_block_forward.3} parent=0 // loop_footer
    %s14 = sadd.s32 1, %s10
  $region7: #{res_block_forward.3} parent=0 // loop_footer_branch
    %9 = sbr.rel target = $region3
  $region8: #{res_block_forward.3} parent=0 // loop_exit
    _

// kernel: res_block_forward.4
$region0: #{res_block_forward.4}
  #allocation0 [shape = 'u32[]', space=smem, size = 0x4, offset = 0x4, fixed_abs, tag = 'smem constant byte address 0x4 - core index']
  #allocation1 [shape = 'u32[144,128]{1,0:T(1,128)}', space=vmem, size = 0x12000, scoped, tag = 'internal scratch']
  %s0 = inlined_call_operand.vmem [shape: f32[2,2,10,18,128], index: 0, kind: input, shape index: {}]
  %s1 = inlined_call_operand.vmem [shape: f32[1,128], index: 1, kind: input, shape index: {}]
  %s2 = inlined_call_operand.vmem [shape: f32[1,128], index: 2, kind: input, shape index: {}]
  %s3 = inlined_call_operand.vmem [shape: f32[1152,128], index: 3, kind: input, shape index: {}]
  %s4 = inlined_call_operand.vmem [shape: f32[2,2,8,16,128], index: 4, kind: output, shape index: {0}]
  %s5 = inlined_call_operand.vmem [shape: f32[2,2,8,128], index: 5, kind: output, shape index: {1}]
  %6 = xla_tuple %s4, %s5
  %s7 = sld [smem:[#allocation0]]
  $region57: #{res_block_forward.4} parent=0
    _
  %s9 = ssub.s32 1, %s7
  %s10 = scalar_select 0, %s9, %s7
  loop: start=0, step=1, limit=6
  $region2: #{res_block_forward.4} parent=0 // loop_pre_header
    _
  $region3: #{res_block_forward.4} parent=0 // loop_header
    %s12 = sphi 0, %s16
    %p13 = scmp.ge.s32.totalorder %s12, 6
    %s19 = sphi 0, %s31
    %s20 = sphi 0, %s27
    %s21 = sphi 0, %s19
    %s22 = sphi 0, %s20
    %s23 = sphi 0, %s21
    %s24 = sphi 0, %s22
    %s36 = sphi 0, %s38
    %s39 = sphi 0, %s36
    %s40 = sphi 0, %s39
    %s56 = sphi 0, %s40
    %s60 = sphi 0, %s60
    %s62 = sphi 0, %s60
    %s63 = sphi 0, %s62
    %s77 = sphi 0, %s63
    %s81 = sphi 0, %s81
    %s83 = sphi 0, %s81
    %s84 = sphi 0, %s83
    %s98 = sphi 0, %s84
    %s102 = sphi 0, %s102
    %s104 = sphi 0, %s102
    %s105 = sphi 0, %s104
    %s119 = sphi 0, %s105
    %s127 = sphi 0, %s129
    %s130 = sphi 0, %s127
    %s131 = sphi 0, %s130
    %s147 = sphi 0, %s131
    %s155 = sphi 0, %s157
    %s158 = sphi 0, %s155
    %s159 = sphi 0, %s158
    %s175 = sphi 0, %s159
  $region4: #{res_block_forward.4} parent=0 // loop_header_branch
    %15 = sbr.rel (%p13) target = $region8
  $region5: #{res_block_forward.4} parent=0 // loop_body
    %s17 = ssub.s32 %s12, 1
    %s18 = ssub.s32 %s12, 2
    %s25 = sadd.s32 1, %s20
    %p26 = scmp.ge.s32.totalorder %s25, 2
    %s27 = scalar_select %p26, 0, %s25
    %s28 = sadd.s32 1, %s19
    %s29 = scalar_select %p26, %s28, %s19
    %p30 = scmp.ge.s32.totalorder %s29, 2
    %s31 = scalar_select %p30, 0, %s29
    %s32 = ssub.s32 %s19, %s31
    %s33 = ssub.s32 %s20, %s27
    %s34 = sor.u32 %s32, %s33
    %p35 = scmp.eq.s32.totalorder %s34, 0
    %s37 = sadd.s32 %s36, 1
    %s38 = scalar_select %p35, %s36, %s37
    %p41 = pneg %p35
    %p42 = scmp.eq.s32.totalorder %s12, 3
    %p43 = por %p41, %p42
    %p44 = scmp.ne.s32.totalorder %s36, %s39
    %p45 = scmp.eq.s32.totalorder %s12, 0
    %p46 = por %p44, %p45
    %p47 = scmp.ne.s32.totalorder %s36, %s39
    %p48 = scmp.eq.s32.totalorder %s17, 3
    %p49 = por %p47, %p48
    %p50 = scmp.ne.s32.totalorder %s39, %s40
    %p51 = scmp.eq.s32.totalorder %s17, 0
    %p52 = por %p50, %p51
    %p53 = scmp.ne.s32.totalorder %s39, %s40
    %p54 = scmp.eq.s32.totalorder %s18, 3
    %p55 = por %p53, %p54
    %p57 = scmp.ne.s32.totalorder %s40, %s56
    %p58 = scmp.eq.s32.totalorder %s18, 0
    %p59 = por %p57, %p58
    %s61 = sadd.s32 %s60, 1
    %p64 = scmp.eq.s32.totalorder %s12, 3
    %p65 = scmp.ne.s32.totalorder %s60, %s62
    %p66 = scmp.eq.s32.totalorder %s12, 0
    %p67 = por %p65, %p66
    %p68 = scmp.ne.s32.totalorder %s60, %s62
    %p69 = scmp.eq.s32.totalorder %s17, 3
    %p70 = por %p68, %p69
    %p71 = scmp.ne.s32.totalorder %s62, %s63
    %p72 = scmp.eq.s32.totalorder %s17, 0
    %p73 = por %p71, %p72
    %p74 = scmp.ne.s32.totalorder %s62, %s63
    %p75 = scmp.eq.s32.totalorder %s18, 3
    %p76 = por %p74, %p75
    %p78 = scmp.ne.s32.totalorder %s63, %s77
    %p79 = scmp.eq.s32.totalorder %s18, 0
    %p80 = por %p78, %p79
    %s82 = sadd.s32 %s81, 1
    %p85 = scmp.eq.s32.totalorder %s12, 3
    %p86 = scmp.ne.s32.totalorder %s81, %s83
    %p87 = scmp.eq.s32.totalorder %s12, 0
    %p88 = por %p86, %p87
    %p89 = scmp.ne.s32.totalorder %s81, %s83
    %p90 = scmp.eq.s32.totalorder %s17, 3
    %p91 = por %p89, %p90
    %p92 = scmp.ne.s32.totalorder %s83, %s84
    %p93 = scmp.eq.s32.totalorder %s17, 0
    %p94 = por %p92, %p93
    %p95 = scmp.ne.s32.totalorder %s83, %s84
    %p96 = scmp.eq.s32.totalorder %s18, 3
    %p97 = por %p95, %p96
    %p99 = scmp.ne.s32.totalorder %s84, %s98
    %p100 = scmp.eq.s32.totalorder %s18, 0
    %p101 = por %p99, %p100
    %s103 = sadd.s32 %s102, 1
    %p106 = scmp.eq.s32.totalorder %s12, 3
    %p107 = scmp.ne.s32.totalorder %s102, %s104
    %p108 = scmp.eq.s32.totalorder %s12, 0
    %p109 = por %p107, %p108
    %p110 = scmp.ne.s32.totalorder %s102, %s104
    %p111 = scmp.eq.s32.totalorder %s17, 3
    %p112 = por %p110, %p111
    %p113 = scmp.ne.s32.totalorder %s104, %s105
    %p114 = scmp.eq.s32.totalorder %s17, 0
    %p115 = por %p113, %p114
    %p116 = scmp.ne.s32.totalorder %s104, %s105
    %p117 = scmp.eq.s32.totalorder %s18, 3
    %p118 = por %p116, %p117
    %p120 = scmp.ne.s32.totalorder %s105, %s119
    %p121 = scmp.eq.s32.totalorder %s18, 0
    %p122 = por %p120, %p121
    %s123 = ssub.s32 %s19, %s31
    %s124 = ssub.s32 %s20, %s27
    %s125 = sor.u32 %s123, %s124
    %p126 = scmp.eq.s32.totalorder %s125, 0
    %s128 = sadd.s32 %s127, 1
    %s129 = scalar_select %p126, %s127, %s128
    %p132 = pneg %p126
    %p133 = scmp.eq.s32.totalorder %s12, 3
    %p134 = por %p132, %p133
    %p135 = scmp.ne.s32.totalorder %s127, %s130
    %p136 = scmp.eq.s32.totalorder %s12, 0
    %p137 = por %p135, %p136
    %p138 = scmp.ne.s32.totalorder %s127, %s130
    %p139 = scmp.eq.s32.totalorder %s17, 3
    %p140 = por %p138, %p139
    %p141 = scmp.ne.s32.totalorder %s130, %s131
    %p142 = scmp.eq.s32.totalorder %s17, 0
    %p143 = por %p141, %p142
    %p144 = scmp.ne.s32.totalorder %s130, %s131
    %p145 = scmp.eq.s32.totalorder %s18, 3
    %p146 = por %p144, %p145
    %p148 = scmp.ne.s32.totalorder %s131, %s147
    %p149 = scmp.eq.s32.totalorder %s18, 0
    %p150 = por %p148, %p149
    %s151 = ssub.s32 %s19, %s31
    %s152 = ssub.s32 %s20, %s27
    %s153 = sor.u32 %s151, %s152
    %p154 = scmp.eq.s32.totalorder %s153, 0
    %s156 = sadd.s32 %s155, 1
    %s157 = scalar_select %p154, %s155, %s156
    %p160 = pneg %p154
    %p161 = scmp.eq.s32.totalorder %s12, 3
    %p162 = por %p160, %p161
    %p163 = scmp.ne.s32.totalorder %s155, %s158
    %p164 = scmp.eq.s32.totalorder %s12, 0
    %p165 = por %p163, %p164
    %p166 = scmp.ne.s32.totalorder %s155, %s158
    %p167 = scmp.eq.s32.totalorder %s17, 3
    %p168 = por %p166, %p167
    %p169 = scmp.ne.s32.totalorder %s158, %s159
    %p170 = scmp.eq.s32.totalorder %s17, 0
    %p171 = por %p169, %p170
    %p172 = scmp.ne.s32.totalorder %s158, %s159
    %p173 = scmp.eq.s32.totalorder %s18, 3
    %p174 = por %p172, %p173
    %p176 = scmp.ne.s32.totalorder %s159, %s175
    %p177 = scmp.eq.s32.totalorder %s18, 0
    %p178 = por %p176, %p177
    %p179 = scmp.le.s32.totalorder 1, %s12
    %p180 = scmp.lt.s32.totalorder %s12, 5
    %p181 = pnand %p179, %p180
    %p182 = pneg %p181
    // Predicated region
    $region9: #{res_block_forward.4} parent=5 // pred_check
      _
    $region10: #{res_block_forward.4} parent=5 // pred_check_branch
      %184 = sbr.rel (%p181) target = $region12
    $region11: #{res_block_forward.4} parent=5 // pred_region
      %s185 = ssub.s32 %s12, 1
      // Predicated region
      $region13: #{res_block_forward.4} parent=11 // pred_check
        %p186 = pneg %p73
      $region14: #{res_block_forward.4} parent=11 // pred_check_branch
        %188 = sbr.rel (%p186) target = $region16
      $region15: #{res_block_forward.4} parent=11 // pred_region
        _
      $region16: #{res_block_forward.4} parent=11 // pred_fallthru
        _
      // Predicated region
      $region17: #{res_block_forward.4} parent=11 // pred_check
        %p189 = pneg %p94
      $region18: #{res_block_forward.4} parent=11 // pred_check_branch
        %191 = sbr.rel (%p189) target = $region20
      $region19: #{res_block_forward.4} parent=11 // pred_region
        _
      $region20: #{res_block_forward.4} parent=11 // pred_fallthru
        _
      // Predicated region
      $region21: #{res_block_forward.4} parent=11 // pred_check
        %p192 = pneg %p115
      $region22: #{res_block_forward.4} parent=11 // pred_check_branch
        %194 = sbr.rel (%p192) target = $region24
      $region23: #{res_block_forward.4} parent=11 // pred_region
        _
      $region24: #{res_block_forward.4} parent=11 // pred_fallthru
        _
    $region12: #{res_block_forward.4} parent=5 // pred_fallthru
      _
    %p195 = scmp.lt.s32.totalorder %s12, 4
    // Predicated region
    $region25: #{res_block_forward.4} parent=5 // pred_check
      %p196 = pneg %p195
    $region26: #{res_block_forward.4} parent=5 // pred_check_branch
      %198 = sbr.rel (%p196) target = $region28
    $region27: #{res_block_forward.4} parent=5 // pred_region
      // Predicated region
      $region29: #{res_block_forward.4} parent=27 // pred_check
        %p199 = pneg %p46
      $region30: #{res_block_forward.4} parent=27 // pred_check_branch
        %201 = sbr.rel (%p199) target = $region32
      $region31: #{res_block_forward.4} parent=27 // pred_region
        %p202 = scmp.lt.s32.totalorder %s19, 1
        %s203 = scalar_select %p202, %s19, 1
        %p204 = scmp.lt.s32.totalorder %s20, 1
        %s205 = scalar_select %p204, %s20, 1
        %s206 = smul.addr %s205, 30
        %s207 = smul.addr %s203, 60
        %s208 = sadd.s32 %s206, %s207
        %s209 = smul.addr %s208, 8
        %s210 = scalar_lea.vmem %s0, %s209
      $region32: #{res_block_forward.4} parent=27 // pred_fallthru
        _
    $region28: #{res_block_forward.4} parent=5 // pred_fallthru
      _
    %p211 = scmp.le.s32.totalorder 1, %s12
    %p212 = scmp.lt.s32.totalorder %s12, 5
    %p213 = pnand %p211, %p212
    %p214 = pneg %p213
    // Predicated region
    $region33: #{res_block_forward.4} parent=5 // pred_check
      _
    $region34: #{res_block_forward.4} parent=5 // pred_check_branch
      %216 = sbr.rel (%p213) target = $region36
    $region35: #{res_block_forward.4} parent=5 // pred_region
      %s217 = ssub.s32 %s12, 1
      %p218 = scmp.lt.s32.totalorder %s21, 1
      %s219 = scalar_select %p218, %s21, 1
      %p220 = scmp.lt.s32.totalorder %s22, 1
      %s221 = scalar_select %p220, %s22, 1
      %s222 = smul.addr %s221, 30
      %s223 = smul.addr %s219, 60
      %s224 = sadd.s32 %s222, %s223
      %s225 = smul.addr %s224, 8
      %s226 = scalar_lea.vmem %s0, %s225
      %p227 = pneg %p52
      %p228 = pneg %p49
      %p229 = pneg %p73
      %p230 = pneg %p70
      %p231 = pneg %p94
      %p232 = pneg %p91
      %p233 = pneg %p115
      %p234 = pneg %p112
      %p235 = pneg %p143
      %p236 = pneg %p140
      %p237 = scmp.lt.s32.totalorder %s21, 1
      %s238 = scalar_select %p237, %s21, 1
      %p239 = scmp.lt.s32.totalorder %s22, 1
      %s240 = scalar_select %p239, %s22, 1
      %s241 = smul.addr %s240, 16
      %s242 = smul.addr %s238, 32
      %s243 = sadd.s32 %s241, %s242
      %s244 = smul.addr %s243, 8
      %s245 = scalar_lea.vmem %s4, %s244
      %p246 = pneg %p171
      %p247 = pneg %p168
      %p248 = scmp.lt.s32.totalorder %s21, 1
      %s249 = scalar_select %p248, %s21, 1
      %p250 = scmp.lt.s32.totalorder %s22, 1
      %s251 = scalar_select %p250, %s22, 1
      %s252 = smul.addr %s249, 2
      %s253 = sadd.s32 %s251, %s252
      %s254 = smul.addr %s253, 8
      %s255 = scalar_lea.vmem %s5, %s254
      %p256 = scmp.lt.s32.totalorder %s21, 1
      %s257 = scalar_select %p256, %s21, 1
      %p258 = scmp.lt.s32.totalorder %s22, 1
      %s259 = scalar_select %p258, %s22, 1
      %s260 = smul.addr %s259, 30
      %s261 = smul.addr %s257, 60
      %s262 = sadd.s32 %s260, %s261
      %s263 = smul.addr %s262, 8
      %s264 = scalar_lea.vmem %s0, %s263
      %p265 = scmp.lt.s32.totalorder %s21, 1
      %s266 = scalar_select %p265, %s21, 1
      %p267 = scmp.lt.s32.totalorder %s22, 1
      %s268 = scalar_select %p267, %s22, 1
      %s269 = smul.addr %s268, 16
      %s270 = smul.addr %s266, 32
      %s271 = sadd.s32 %s269, %s270
      %s272 = smul.addr %s271, 8
      %s273 = scalar_lea.vmem %s4, %s272
      %p274 = scmp.lt.s32.totalorder %s21, 1
      %s275 = scalar_select %p274, %s21, 1
      %p276 = scmp.lt.s32.totalorder %s22, 1
      %s277 = scalar_select %p276, %s22, 1
      %s278 = smul.addr %s275, 2
      %s279 = sadd.s32 %s277, %s278
      %s280 = smul.addr %s279, 8
      %s281 = scalar_lea.vmem %s5, %s280
      %v282 = vld [vmem:[%s264] sm:$0xff]
      %v283 = vld [vmem:[%s264 + $0x8] sm:$0xff]
      %v284 = vld [vmem:[%s264 + $0x10] sm:$0x3]
      %v285 = vld [vmem:[%s264 + $0x18] sm:$0xff]
      %v286 = vld [vmem:[%s264 + $0x20] sm:$0xff]
      %v287 = vld [vmem:[%s264 + $0x28] sm:$0x3]
      %v288 = vld [vmem:[%s264 + $0x30] sm:$0xff]
      %v289 = vld [vmem:[%s264 + $0x38] sm:$0xff]
      %v290 = vld [vmem:[%s264 + $0x40] sm:$0x3]
      %v291 = vld [vmem:[%s264 + $0x48] sm:$0xff]
      %v292 = vld [vmem:[%s264 + $0x50] sm:$0xff]
      %v293 = vld [vmem:[%s264 + $0x58] sm:$0x3]
      %v294 = vld [vmem:[%s264 + $0x60] sm:$0xff]
      %v295 = vld [vmem:[%s264 + $0x68] sm:$0xff]
      %v296 = vld [vmem:[%s264 + $0x70] sm:$0x3]
      %v297 = vld [vmem:[%s264 + $0x78] sm:$0xff]
      %v298 = vld [vmem:[%s264 + $0x80] sm:$0xff]
      %v299 = vld [vmem:[%s264 + $0x88] sm:$0x3]
      %v300 = vld [vmem:[%s264 + $0x90] sm:$0xff]
      %v301 = vld [vmem:[%s264 + $0x98] sm:$0xff]
      %v302 = vld [vmem:[%s264 + $0xa0] sm:$0x3]
      %v303 = vld [vmem:[%s264 + $0xa8] sm:$0xff]
      %v304 = vld [vmem:[%s264 + $0xb0] sm:$0xff]
      %v305 = vld [vmem:[%s264 + $0xb8] sm:$0x3]
      %v306 = vld [vmem:[%s264 + $0xc0] sm:$0xff]
      %v307 = vld [vmem:[%s264 + $0xc8] sm:$0xff]
      %v308 = vld [vmem:[%s264 + $0xd0] sm:$0x3]
      %v309 = vld [vmem:[%s264 + $0xd8] sm:$0xff]
      %v310 = vld [vmem:[%s264 + $0xe0] sm:$0xff]
      %v311 = vld [vmem:[%s264 + $0xe8] sm:$0x3]
      %v312 = vld [vmem:[%s1] sm:$0x1]
      %v313 = vld [vmem:[%s2] sm:$0x1]
      %v315 = vlaneseq
      %v316 = vshrl.u32 %v315, 7
      %v317 = vsub.s32 0, %v316
      %v318 = vrot.slane %v312, %v317
      %v320 = vmul.f32 %v282, %v318
      %v321 = vmul.f32 %v283, %v318
      %v322 = vmul.f32 %v284, %v318
      %v323 = vmul.f32 %v285, %v318
      %v324 = vmul.f32 %v286, %v318
      %v325 = vmul.f32 %v287, %v318
      %v326 = vmul.f32 %v288, %v318
      %v327 = vmul.f32 %v289, %v318
      %v328 = vmul.f32 %v290, %v318
      %v329 = vmul.f32 %v291, %v318
      %v330 = vmul.f32 %v292, %v318
      %v331 = vmul.f32 %v293, %v318
      %v332 = vmul.f32 %v294, %v318
      %v333 = vmul.f32 %v295, %v318
      %v334 = vmul.f32 %v296, %v318
      %v335 = vmul.f32 %v297, %v318
      %v336 = vmul.f32 %v298, %v318
      %v337 = vmul.f32 %v299, %v318
      %v338 = vmul.f32 %v300, %v318
      %v339 = vmul.f32 %v301, %v318
      %v340 = vmul.f32 %v302, %v318
      %v341 = vmul.f32 %v303, %v318
      %v342 = vmul.f32 %v304, %v318
      %v343 = vmul.f32 %v305, %v318
      %v344 = vmul.f32 %v306, %v318
      %v345 = vmul.f32 %v307, %v318
      %v346 = vmul.f32 %v308, %v318
      %v347 = vmul.f32 %v309, %v318
      %v348 = vmul.f32 %v310, %v318
      %v349 = vmul.f32 %v311, %v318
      %v351 = vlaneseq
      %v352 = vshrl.u32 %v351, 7
      %v353 = vsub.s32 0, %v352
      %v354 = vrot.slane %v313, %v353
      %v356 = vadd.f32 %v320, %v354
      %v357 = vadd.f32 %v321, %v354
      %v358 = vadd.f32 %v322, %v354
      %v359 = vadd.f32 %v323, %v354
      %v360 = vadd.f32 %v324, %v354
      %v361 = vadd.f32 %v325, %v354
      %v362 = vadd.f32 %v326, %v354
      %v363 = vadd.f32 %v327, %v354
      %v364 = vadd.f32 %v328, %v354
      %v365 = vadd.f32 %v329, %v354
      %v366 = vadd.f32 %v330, %v354
      %v367 = vadd.f32 %v331, %v354
      %v368 = vadd.f32 %v332, %v354
      %v369 = vadd.f32 %v333, %v354
      %v370 = vadd.f32 %v334, %v354
      %v371 = vadd.f32 %v335, %v354
      %v372 = vadd.f32 %v336, %v354
      %v373 = vadd.f32 %v337, %v354
      %v374 = vadd.f32 %v338, %v354
      %v375 = vadd.f32 %v339, %v354
      %v376 = vadd.f32 %v340, %v354
      %v377 = vadd.f32 %v341, %v354
      %v378 = vadd.f32 %v342, %v354
      %v379 = vadd.f32 %v343, %v354
      %v380 = vadd.f32 %v344, %v354
      %v381 = vadd.f32 %v345, %v354
      %v382 = vadd.f32 %v346, %v354
      %v383 = vadd.f32 %v347, %v354
      %v384 = vadd.f32 %v348, %v354
      %v385 = vadd.f32 %v349, %v354
      %vm386 = vcmp.ge.f32.partialorder %v356, 0.0
      %vm387 = vcmp.ge.f32.partialorder %v357, 0.0
      %vm388 = vcmp.ge.f32.partialorder %v358, 0.0
      %vm389 = vcmp.ge.f32.partialorder %v359, 0.0
      %vm390 = vcmp.ge.f32.partialorder %v360, 0.0
      %vm391 = vcmp.ge.f32.partialorder %v361, 0.0
      %vm392 = vcmp.ge.f32.partialorder %v362, 0.0
      %vm393 = vcmp.ge.f32.partialorder %v363, 0.0
      %vm394 = vcmp.ge.f32.partialorder %v364, 0.0
      %vm395 = vcmp.ge.f32.partialorder %v365, 0.0
      %vm396 = vcmp.ge.f32.partialorder %v366, 0.0
      %vm397 = vcmp.ge.f32.partialorder %v367, 0.0
      %vm398 = vcmp.ge.f32.partialorder %v368, 0.0
      %vm399 = vcmp.ge.f32.partialorder %v369, 0.0
      %vm400 = vcmp.ge.f32.partialorder %v370, 0.0
      %vm401 = vcmp.ge.f32.partialorder %v371, 0.0
      %vm402 = vcmp.ge.f32.partialorder %v372, 0.0
      %vm403 = vcmp.ge.f32.partialorder %v373, 0.0
      %vm404 = vcmp.ge.f32.partialorder %v374, 0.0
      %vm405 = vcmp.ge.f32.partialorder %v375, 0.0
      %vm406 = vcmp.ge.f32.partialorder %v376, 0.0
      %vm407 = vcmp.ge.f32.partialorder %v377, 0.0
      %vm408 = vcmp.ge.f32.partialorder %v378, 0.0
      %vm409 = vcmp.ge.f32.partialorder %v379, 0.0
      %vm410 = vcmp.ge.f32.partialorder %v380, 0.0
      %vm411 = vcmp.ge.f32.partialorder %v381, 0.0
      %vm412 = vcmp.ge.f32.partialorder %v382, 0.0
      %vm413 = vcmp.ge.f32.partialorder %v383, 0.0
      %vm414 = vcmp.ge.f32.partialorder %v384, 0.0
      %vm415 = vcmp.ge.f32.partialorder %v385, 0.0
      %v416 = vmul.f32 %v356, 0.2
      %v417 = vmul.f32 %v357, 0.2
      %v418 = vmul.f32 %v358, 0.2
      %v419 = vmul.f32 %v359, 0.2
      %v420 = vmul.f32 %v360, 0.2
      %v421 = vmul.f32 %v361, 0.2
      %v422 = vmul.f32 %v362, 0.2
      %v423 = vmul.f32 %v363, 0.2
      %v424 = vmul.f32 %v364, 0.2
      %v425 = vmul.f32 %v365, 0.2
      %v426 = vmul.f32 %v366, 0.2
      %v427 = vmul.f32 %v367, 0.2
      %v428 = vmul.f32 %v368, 0.2
      %v429 = vmul.f32 %v369, 0.2
      %v430 = vmul.f32 %v370, 0.2
      %v431 = vmul.f32 %v371, 0.2
      %v432 = vmul.f32 %v372, 0.2
      %v433 = vmul.f32 %v373, 0.2
      %v434 = vmul.f32 %v374, 0.2
      %v435 = vmul.f32 %v375, 0.2
      %v436 = vmul.f32 %v376, 0.2
      %v437 = vmul.f32 %v377, 0.2
      %v438 = vmul.f32 %v378, 0.2
      %v439 = vmul.f32 %v379, 0.2
      %v440 = vmul.f32 %v380, 0.2
      %v441 = vmul.f32 %v381, 0.2
      %v442 = vmul.f32 %v382, 0.2
      %v443 = vmul.f32 %v383, 0.2
      %v444 = vmul.f32 %v384, 0.2
      %v445 = vmul.f32 %v385, 0.2
      %v446 = vsel %vm386, %v356, %v416
      %v447 = vsel %vm387, %v357, %v417
      %v448 = vsel %vm388, %v358, %v418
      %v449 = vsel %vm389, %v359, %v419
      %v450 = vsel %vm390, %v360, %v420
      %v451 = vsel %vm391, %v361, %v421
      %v452 = vsel %vm392, %v362, %v422
      %v453 = vsel %vm393, %v363, %v423
      %v454 = vsel %vm394, %v364, %v424
      %v455 = vsel %vm395, %v365, %v425
      %v456 = vsel %vm396, %v366, %v426
      %v457 = vsel %vm397, %v367, %v427
      %v458 = vsel %vm398, %v368, %v428
      %v459 = vsel %vm399, %v369, %v429
      %v460 = vsel %vm400, %v370, %v430
      %v461 = vsel %vm401, %v371, %v431
      %v462 = vsel %vm402, %v372, %v432
      %v463 = vsel %vm403, %v373, %v433
      %v464 = vsel %vm404, %v374, %v434
      %v465 = vsel %vm405, %v375, %v435
      %v466 = vsel %vm406, %v376, %v436
      %v467 = vsel %vm407, %v377, %v437
      %v468 = vsel %vm408, %v378, %v438
      %v469 = vsel %vm409, %v379, %v439
      %v470 = vsel %vm410, %v380, %v440
      %v471 = vsel %vm411, %v381, %v441
      %v472 = vsel %vm412, %v382, %v442
      %v473 = vsel %vm413, %v383, %v443
      %v474 = vsel %vm414, %v384, %v444
      %v475 = vsel %vm415, %v385, %v445
      %v476 = vld [vmem:[%s3] sm:$0xff]
      %v477 = vld [vmem:[%s3 + $0x8] sm:$0xff]
      %v478 = vld [vmem:[%s3 + $0x10] sm:$0xff]
      %v479 = vld [vmem:[%s3 + $0x18] sm:$0xff]
      %v480 = vld [vmem:[%s3 + $0x20] sm:$0xff]
      %v481 = vld [vmem:[%s3 + $0x28] sm:$0xff]
      %v482 = vld [vmem:[%s3 + $0x30] sm:$0xff]
      %v483 = vld [vmem:[%s3 + $0x38] sm:$0xff]
      %v484 = vld [vmem:[%s3 + $0x40] sm:$0xff]
      %v485 = vld [vmem:[%s3 + $0x48] sm:$0xff]
      %v486 = vld [vmem:[%s3 + $0x50] sm:$0xff]
      %v487 = vld [vmem:[%s3 + $0x58] sm:$0xff]
      %v488 = vld [vmem:[%s3 + $0x60] sm:$0xff]
      %v489 = vld [vmem:[%s3 + $0x68] sm:$0xff]
      %v490 = vld [vmem:[%s3 + $0x70] sm:$0xff]
      %v491 = vld [vmem:[%s3 + $0x78] sm:$0xff]
      %v492 = vld [vmem:[%s3 + $0x80] sm:$0xff]
      %v493 = vld [vmem:[%s3 + $0x88] sm:$0xff]
      %v494 = vld [vmem:[%s3 + $0x90] sm:$0xff]
      %v495 = vld [vmem:[%s3 + $0x98] sm:$0xff]
      %v496 = vld [vmem:[%s3 + $0xa0] sm:$0xff]
      %v497 = vld [vmem:[%s3 + $0xa8] sm:$0xff]
      %v498 = vld [vmem:[%s3 + $0xb0] sm:$0xff]
      %v499 = vld [vmem:[%s3 + $0xb8] sm:$0xff]
      %v500 = vld [vmem:[%s3 + $0xc0] sm:$0xff]
      %v501 = vld [vmem:[%s3 + $0xc8] sm:$0xff]
      %v502 = vld [vmem:[%s3 + $0xd0] sm:$0xff]
      %v503 = vld [vmem:[%s3 + $0xd8] sm:$0xff]
      %v504 = vld [vmem:[%s3 + $0xe0] sm:$0xff]
      %v505 = vld [vmem:[%s3 + $0xe8] sm:$0xff]
      %v506 = vld [vmem:[%s3 + $0xf0] sm:$0xff]
      %v507 = vld [vmem:[%s3 + $0xf8] sm:$0xff]
      %v508 = vld [vmem:[%s3 + $0x100] sm:$0xff]
      %v509 = vld [vmem:[%s3 + $0x108] sm:$0xff]
      %v510 = vld [vmem:[%s3 + $0x110] sm:$0xff]
      %v511 = vld [vmem:[%s3 + $0x118] sm:$0xff]
      %v512 = vld [vmem:[%s3 + $0x120] sm:$0xff]
      %v513 = vld [vmem:[%s3 + $0x128] sm:$0xff]
      %v514 = vld [vmem:[%s3 + $0x130] sm:$0xff]
      %v515 = vld [vmem:[%s3 + $0x138] sm:$0xff]
      %v516 = vld [vmem:[%s3 + $0x140] sm:$0xff]
      %v517 = vld [vmem:[%s3 + $0x148] sm:$0xff]
      %v518 = vld [vmem:[%s3 + $0x150] sm:$0xff]
      %v519 = vld [vmem:[%s3 + $0x158] sm:$0xff]
      %v520 = vld [vmem:[%s3 + $0x160] sm:$0xff]
      %v521 = vld [vmem:[%s3 + $0x168] sm:$0xff]
      %v522 = vld [vmem:[%s3 + $0x170] sm:$0xff]
      %v523 = vld [vmem:[%s3 + $0x178] sm:$0xff]
      %v524 = vld [vmem:[%s3 + $0x180] sm:$0xff]
      %v525 = vld [vmem:[%s3 + $0x188] sm:$0xff]
      %v526 = vld [vmem:[%s3 + $0x190] sm:$0xff]
      %v527 = vld [vmem:[%s3 + $0x198] sm:$0xff]
      %v528 = vld [vmem:[%s3 + $0x1a0] sm:$0xff]
      %v529 = vld [vmem:[%s3 + $0x1a8] sm:$0xff]
      %v530 = vld [vmem:[%s3 + $0x1b0] sm:$0xff]
      %v531 = vld [vmem:[%s3 + $0x1b8] sm:$0xff]
      %v532 = vld [vmem:[%s3 + $0x1c0] sm:$0xff]
      %v533 = vld [vmem:[%s3 + $0x1c8] sm:$0xff]
      %v534 = vld [vmem:[%s3 + $0x1d0] sm:$0xff]
      %v535 = vld [vmem:[%s3 + $0x1d8] sm:$0xff]
      %v536 = vld [vmem:[%s3 + $0x1e0] sm:$0xff]
      %v537 = vld [vmem:[%s3 + $0x1e8] sm:$0xff]
      %v538 = vld [vmem:[%s3 + $0x1f0] sm:$0xff]
      %v539 = vld [vmem:[%s3 + $0x1f8] sm:$0xff]
      %v540 = vld [vmem:[%s3 + $0x200] sm:$0xff]
      %v541 = vld [vmem:[%s3 + $0x208] sm:$0xff]
      %v542 = vld [vmem:[%s3 + $0x210] sm:$0xff]
      %v543 = vld [vmem:[%s3 + $0x218] sm:$0xff]
      %v544 = vld [vmem:[%s3 + $0x220] sm:$0xff]
      %v545 = vld [vmem:[%s3 + $0x228] sm:$0xff]
      %v546 = vld [vmem:[%s3 + $0x230] sm:$0xff]
      %v547 = vld [vmem:[%s3 + $0x238] sm:$0xff]
      %v548 = vld [vmem:[%s3 + $0x240] sm:$0xff]
      %v549 = vld [vmem:[%s3 + $0x248] sm:$0xff]
      %v550 = vld [vmem:[%s3 + $0x250] sm:$0xff]
      %v551 = vld [vmem:[%s3 + $0x258] sm:$0xff]
      %v552 = vld [vmem:[%s3 + $0x260] sm:$0xff]
      %v553 = vld [vmem:[%s3 + $0x268] sm:$0xff]
      %v554 = vld [vmem:[%s3 + $0x270] sm:$0xff]
      %v555 = vld [vmem:[%s3 + $0x278] sm:$0xff]
      %v556 = vld [vmem:[%s3 + $0x280] sm:$0xff]
      %v557 = vld [vmem:[%s3 + $0x288] sm:$0xff]
      %v558 = vld [vmem:[%s3 + $0x290] sm:$0xff]
      %v559 = vld [vmem:[%s3 + $0x298] sm:$0xff]
      %v560 = vld [vmem:[%s3 + $0x2a0] sm:$0xff]
      %v561 = vld [vmem:[%s3 + $0x2a8] sm:$0xff]
      %v562 = vld [vmem:[%s3 + $0x2b0] sm:$0xff]
      %v563 = vld [vmem:[%s3 + $0x2b8] sm:$0xff]
      %v564 = vld [vmem:[%s3 + $0x2c0] sm:$0xff]
      %v565 = vld [vmem:[%s3 + $0x2c8] sm:$0xff]
      %v566 = vld [vmem:[%s3 + $0x2d0] sm:$0xff]
      %v567 = vld [vmem:[%s3 + $0x2d8] sm:$0xff]
      %v568 = vld [vmem:[%s3 + $0x2e0] sm:$0xff]
      %v569 = vld [vmem:[%s3 + $0x2e8] sm:$0xff]
      %v570 = vld [vmem:[%s3 + $0x2f0] sm:$0xff]
      %v571 = vld [vmem:[%s3 + $0x2f8] sm:$0xff]
      %v572 = vld [vmem:[%s3 + $0x300] sm:$0xff]
      %v573 = vld [vmem:[%s3 + $0x308] sm:$0xff]
      %v574 = vld [vmem:[%s3 + $0x310] sm:$0xff]
      %v575 = vld [vmem:[%s3 + $0x318] sm:$0xff]
      %v576 = vld [vmem:[%s3 + $0x320] sm:$0xff]
      %v577 = vld [vmem:[%s3 + $0x328] sm:$0xff]
      %v578 = vld [vmem:[%s3 + $0x330] sm:$0xff]
      %v579 = vld [vmem:[%s3 + $0x338] sm:$0xff]
      %v580 = vld [vmem:[%s3 + $0x340] sm:$0xff]
      %v581 = vld [vmem:[%s3 + $0x348] sm:$0xff]
      %v582 = vld [vmem:[%s3 + $0x350] sm:$0xff]
      %v583 = vld [vmem:[%s3 + $0x358] sm:$0xff]
      %v584 = vld [vmem:[%s3 + $0x360] sm:$0xff]
      %v585 = vld [vmem:[%s3 + $0x368] sm:$0xff]
      %v586 = vld [vmem:[%s3 + $0x370] sm:$0xff]
      %v587 = vld [vmem:[%s3 + $0x378] sm:$0xff]
      %v588 = vld [vmem:[%s3 + $0x380] sm:$0xff]
      %v589 = vld [vmem:[%s3 + $0x388] sm:$0xff]
      %v590 = vld [vmem:[%s3 + $0x390] sm:$0xff]
      %v591 = vld [vmem:[%s3 + $0x398] sm:$0xff]
      %v592 = vld [vmem:[%s3 + $0x3a0] sm:$0xff]
      %v593 = vld [vmem:[%s3 + $0x3a8] sm:$0xff]
      %v594 = vld [vmem:[%s3 + $0x3b0] sm:$0xff]
      %v595 = vld [vmem:[%s3 + $0x3b8] sm:$0xff]
      %v596 = vld [vmem:[%s3 + $0x3c0] sm:$0xff]
      %v597 = vld [vmem:[%s3 + $0x3c8] sm:$0xff]
      %v598 = vld [vmem:[%s3 + $0x3d0] sm:$0xff]
      %v599 = vld [vmem:[%s3 + $0x3d8] sm:$0xff]
      %v600 = vld [vmem:[%s3 + $0x3e0] sm:$0xff]
      %v601 = vld [vmem:[%s3 + $0x3e8] sm:$0xff]
      %v602 = vld [vmem:[%s3 + $0x3f0] sm:$0xff]
      %v603 = vld [vmem:[%s3 + $0x3f8] sm:$0xff]
      %v604 = vld [vmem:[%s3 + $0x400] sm:$0xff]
      %v605 = vld [vmem:[%s3 + $0x408] sm:$0xff]
      %v606 = vld [vmem:[%s3 + $0x410] sm:$0xff]
      %v607 = vld [vmem:[%s3 + $0x418] sm:$0xff]
      %v608 = vld [vmem:[%s3 + $0x420] sm:$0xff]
      %v609 = vld [vmem:[%s3 + $0x428] sm:$0xff]
      %v610 = vld [vmem:[%s3 + $0x430] sm:$0xff]
      %v611 = vld [vmem:[%s3 + $0x438] sm:$0xff]
      %v612 = vld [vmem:[%s3 + $0x440] sm:$0xff]
      %v613 = vld [vmem:[%s3 + $0x448] sm:$0xff]
      %v614 = vld [vmem:[%s3 + $0x450] sm:$0xff]
      %v615 = vld [vmem:[%s3 + $0x458] sm:$0xff]
      %v616 = vld [vmem:[%s3 + $0x460] sm:$0xff]
      %v617 = vld [vmem:[%s3 + $0x468] sm:$0xff]
      %v618 = vld [vmem:[%s3 + $0x470] sm:$0xff]
      %v619 = vld [vmem:[%s3 + $0x478] sm:$0xff]
      %vm644 = vcmask 1046528
      %v645 = vrot.slane %v446, 1
      %v646 = vrot.slane %v447, 1
      %v647 = vsel %vm644, %v645, %v646
      %v648 = vrot.slane %v448, 1
      %v649 = vsel %vm644, %v646, %v648
      %v650 = vrot.slane %v449, 1
      %v651 = vrot.slane %v450, 1
      %v652 = vsel %vm644, %v650, %v651
      %v653 = vrot.slane %v451, 1
      %v654 = vsel %vm644, %v651, %v653
      %v655 = vrot.slane %v452, 1
      %v656 = vrot.slane %v453, 1
      %v657 = vsel %vm644, %v655, %v656
      %v658 = vrot.slane %v454, 1
      %v659 = vsel %vm644, %v656, %v658
      %v660 = vrot.slane %v455, 1
      %v661 = vrot.slane %v456, 1
      %v662 = vsel %vm644, %v660, %v661
      %v663 = vrot.slane %v457, 1
      %v664 = vsel %vm644, %v661, %v663
      %v665 = vrot.slane %v458, 1
      %v666 = vrot.slane %v459, 1
      %v667 = vsel %vm644, %v665, %v666
      %v668 = vrot.slane %v460, 1
      %v669 = vsel %vm644, %v666, %v668
      %v670 = vrot.slane %v461, 1
      %v671 = vrot.slane %v462, 1
      %v672 = vsel %vm644, %v670, %v671
      %v673 = vrot.slane %v463, 1
      %v674 = vsel %vm644, %v671, %v673
      %v675 = vrot.slane %v464, 1
      %v676 = vrot.slane %v465, 1
      %v677 = vsel %vm644, %v675, %v676
      %v678 = vrot.slane %v466, 1
      %v679 = vsel %vm644, %v676, %v678
      %v680 = vrot.slane %v467, 1
      %v681 = vrot.slane %v468, 1
      %v682 = vsel %vm644, %v680, %v681
      %v683 = vrot.slane %v469, 1
      %v684 = vsel %vm644, %v681, %v683
      %vm701 = vcmask 1045504
      %v702 = vrot.slane %v446, 2
      %v703 = vrot.slane %v447, 2
      %v704 = vsel %vm701, %v702, %v703
      %v705 = vrot.slane %v448, 2
      %v706 = vsel %vm701, %v703, %v705
      %v707 = vrot.slane %v449, 2
      %v708 = vrot.slane %v450, 2
      %v709 = vsel %vm701, %v707, %v708
      %v710 = vrot.slane %v451, 2
      %v711 = vsel %vm701, %v708, %v710
      %v712 = vrot.slane %v452, 2
      %v713 = vrot.slane %v453, 2
      %v714 = vsel %vm701, %v712, %v713
      %v715 = vrot.slane %v454, 2
      %v716 = vsel %vm701, %v713, %v715
      %v717 = vrot.slane %v455, 2
      %v718 = vrot.slane %v456, 2
      %v719 = vsel %vm701, %v717, %v718
      %v720 = vrot.slane %v457, 2
      %v721 = vsel %vm701, %v718, %v720
      %v722 = vrot.slane %v458, 2
      %v723 = vrot.slane %v459, 2
      %v724 = vsel %vm701, %v722, %v723
      %v725 = vrot.slane %v460, 2
      %v726 = vsel %vm701, %v723, %v725
      %v727 = vrot.slane %v461, 2
      %v728 = vrot.slane %v462, 2
      %v729 = vsel %vm701, %v727, %v728
      %v730 = vrot.slane %v463, 2
      %v731 = vsel %vm701, %v728, %v730
      %v732 = vrot.slane %v464, 2
      %v733 = vrot.slane %v465, 2
      %v734 = vsel %vm701, %v732, %v733
      %v735 = vrot.slane %v466, 2
      %v736 = vsel %vm701, %v733, %v735
      %v737 = vrot.slane %v467, 2
      %v738 = vrot.slane %v468, 2
      %v739 = vsel %vm701, %v737, %v738
      %v740 = vrot.slane %v469, 2
      %v741 = vsel %vm701, %v738, %v740
      %v761 = vrot.slane %v470, 1
      %v762 = vrot.slane %v471, 1
      %v763 = vsel %vm644, %v761, %v762
      %v764 = vrot.slane %v472, 1
      %v765 = vsel %vm644, %v762, %v764
      %v768 = vrot.slane %v470, 2
      %v769 = vrot.slane %v471, 2
      %v770 = vsel %vm701, %v768, %v769
      %v771 = vrot.slane %v472, 2
      %v772 = vsel %vm701, %v769, %v771
      %v778 = vrot.slane %v473, 1
      %v779 = vrot.slane %v474, 1
      %v780 = vsel %vm644, %v778, %v779
      %v781 = vrot.slane %v475, 1
      %v782 = vsel %vm644, %v779, %v781
      %v785 = vrot.slane %v473, 2
      %v786 = vrot.slane %v474, 2
      %v787 = vsel %vm701, %v785, %v786
      %v788 = vrot.slane %v475, 2
      %v789 = vsel %vm701, %v786, %v788
      %792 = vmatprep.subr.mxu0 0.0
      %793 = vmatpush1.msra.mxu0 %v476
      %794 = vmatprep.subr.mxu0 0.0
      %795 = vmatpush1.msra.mxu0 %v477
      %796 = vmatprep.subr.mxu0 0.0
      %797 = vmatpush1.msra.mxu0 %v478
      %798 = vmatprep.subr.mxu0 0.0
      %799 = vmatpush1.msra.mxu0 %v479
      %800 = vmatprep.subr.mxu0 0.0
      %801 = vmatpush1.msra.mxu0 %v480
      %802 = vmatprep.subr.mxu0 0.0
      %803 = vmatpush1.msra.mxu0 %v481
      %804 = vmatprep.subr.mxu0 0.0
      %805 = vmatpush1.msra.mxu0 %v482
      %806 = vmatprep.subr.mxu0 0.0
      %807 = vmatpush1.msra.mxu0 %v483
      %808 = vmatprep.subr.mxu0 0.0
      %809 = vmatpush1.msra.mxu0 %v484
      %810 = vmatprep.subr.mxu0 0.0
      %811 = vmatpush1.msra.mxu0 %v485
      %812 = vmatprep.subr.mxu0 0.0
      %813 = vmatpush1.msra.mxu0 %v486
      %814 = vmatprep.subr.mxu0 0.0
      %815 = vmatpush1.msra.mxu0 %v487
      %816 = vmatprep.subr.mxu0 0.0
      %817 = vmatpush1.msra.mxu0 %v488
      %818 = vmatprep.subr.mxu0 0.0
      %819 = vmatpush1.msra.mxu0 %v489
      %820 = vmatprep.subr.mxu0 0.0
      %821 = vmatpush1.msra.mxu0 %v490
      %822 = vmatprep.subr.mxu0 0.0
      %823 = vmatpush1.msra.mxu0 %v491
      %824 = vmatprep.subr.mxu0 0.0
      %825 = vmatpush1.msra.mxu0 %v492
      %826 = vmatprep.subr.mxu0 0.0
      %827 = vmatpush1.msra.mxu0 %v493
      %828 = vmatprep.subr.mxu0 0.0
      %829 = vmatpush1.msra.mxu0 %v494
      %830 = vmatprep.subr.mxu0 0.0
      %831 = vmatpush1.msra.mxu0 %v495
      %832 = vmatprep.subr.mxu0 0.0
      %833 = vmatpush1.msra.mxu0 %v496
      %834 = vmatprep.subr.mxu0 0.0
      %835 = vmatpush1.msra.mxu0 %v497
      %836 = vmatprep.subr.mxu0 0.0
      %837 = vmatpush1.msra.mxu0 %v498
      %838 = vmatprep.subr.mxu0 0.0
      %839 = vmatpush1.msra.mxu0 %v499
      %840 = vmatprep.subr.mxu0 0.0
      %841 = vmatpush1.msra.mxu0 %v500
      %842 = vmatprep.subr.mxu0 0.0
      %843 = vmatpush1.msra.mxu0 %v501
      %844 = vmatprep.subr.mxu0 0.0
      %845 = vmatpush1.msra.mxu0 %v502
      %846 = vmatprep.subr.mxu0 0.0
      %847 = vmatpush1.msra.mxu0 %v503
      %848 = vmatprep.subr.mxu0 0.0
      %849 = vmatpush1.msra.mxu0 %v504
      %850 = vmatprep.subr.mxu0 0.0
      %851 = vmatpush1.msra.mxu0 %v505
      %852 = vmatprep.subr.mxu0 0.0
      %853 = vmatpush1.msra.mxu0 %v506
      %854 = vmatprep.subr.mxu0 0.0
      %855 = vmatpush1.msra.mxu0 %v507
      %856 = vmatprep.mubr.f32.mxu0 %v647
      %857 = vmatmul.mubr.f32.gmra.mrb[0].mxu0 %v446
      %v858 = vpop.f32.mrb[0].mxu0
      %v859 = vadd.f32 0.0, %v858
      %v860 = vpop.f32.mrb[0].mxu0
      %861 = vmatprep.mubr.f32.mxu0 %v649
      %862 = vmatmul.mubr.f32.gmra.mrb[0].mxu0 %v447
      %v863 = vpop.f32.mrb[0].mxu0
      %v864 = vadd.f32 0.0, %v863
      %v865 = vpop.f32.mrb[0].mxu0
      %866 = vmatprep.mubr.f32.mxu0 %v652
      %867 = vmatmul.mubr.f32.gmra.mrb[0].mxu0 %v449
      %v868 = vpop.f32.mrb[0].mxu0
      %v869 = vadd.f32 0.0, %v868
      %v870 = vpop.f32.mrb[0].mxu0
      %871 = vmatprep.mubr.f32.mxu0 %v654
      %872 = vmatmul.mubr.f32.gmra.mrb[0].mxu0 %v450
      %v873 = vpop.f32.mrb[0].mxu0
      %v874 = vadd.f32 0.0, %v873
      %v875 = vpop.f32.mrb[0].mxu0
      %876 = vmatprep.mubr.f32.mxu0 %v657
      %877 = vmatmul.mubr.f32.gmra.mrb[0].mxu0 %v452
      %v878 = vpop.f32.mrb[0].mxu0
      %v879 = vadd.f32 0.0, %v878
      %v880 = vpop.f32.mrb[0].mxu0
      %881 = vmatprep.mubr.f32.mxu0 %v659
      %882 = vmatmul.mubr.f32.gmra.mrb[0].mxu0 %v453
      %v883 = vpop.f32.mrb[0].mxu0
      %v884 = vadd.f32 0.0, %v883
      %v885 = vpop.f32.mrb[0].mxu0
      %886 = vmatprep.mubr.f32.mxu0 %v662
      %887 = vmatmul.mubr.f32.gmra.mrb[0].mxu0 %v455
      %v888 = vpop.f32.mrb[0].mxu0
      %v889 = vadd.f32 0.0, %v888
      %v890 = vpop.f32.mrb[0].mxu0
      %891 = vmatprep.mubr.f32.mxu0 %v664
      %892 = vmatmul.mubr.f32.gmra.mrb[0].mxu0 %v456
      %v893 = vpop.f32.mrb[0].mxu0
      %v894 = vadd.f32 0.0, %v893
      %v895 = vpop.f32.mrb[0].mxu0
      %896 = vmatprep.mubr.f32.mxu0 %v667
      %897 = vmatmul.mubr.f32.gmra.mrb[0].mxu0 %v458
      %v898 = vpop.f32.mrb[0].mxu0
      %v899 = vadd.f32 0.0, %v898
      %v900 = vpop.f32.mrb[0].mxu0
      %901 = vmatprep.mubr.f32.mxu0 %v669
      %902 = vmatmul.mubr.f32.gmra.mrb[0].mxu0 %v459
      %v903 = vpop.f32.mrb[0].mxu0
      %v904 = vadd.f32 0.0, %v903
      %v905 = vpop.f32.mrb[0].mxu0
      %906 = vmatprep.mubr.f32.mxu0 %v672
      %907 = vmatmul.mubr.f32.gmra.mrb[0].mxu0 %v461
      %v908 = vpop.f32.mrb[0].mxu0
      %v909 = vadd.f32 0.0, %v908
      %v910 = vpop.f32.mrb[0].mxu0
      %911 = vmatprep.mubr.f32.mxu0 %v674
      %912 = vmatmul.mubr.f32.gmra.mrb[0].mxu0 %v462
      %v913 = vpop.f32.mrb[0].mxu0
      %v914 = vadd.f32 0.0, %v913
      %v915 = vpop.f32.mrb[0].mxu0
      %916 = vmatprep.mubr.f32.mxu0 %v677
      %917 = vmatmul.mubr.f32.gmra.mrb[0].mxu0 %v464
      %v918 = vpop.f32.mrb[0].mxu0
      %v919 = vadd.f32 0.0, %v918
      %v920 = vpop.f32.mrb[0].mxu0
      %921 = vmatprep.mubr.f32.mxu0 %v679
      %922 = vmatmul.mubr.f32.gmra.mrb[0].mxu0 %v465
      %v923 = vpop.f32.mrb[0].mxu0
      %v924 = vadd.f32 0.0, %v923
      %v925 = vpop.f32.mrb[0].mxu0
      %926 = vmatprep.mubr.f32.mxu0 %v682
      %927 = vmatmul.mubr.f32.gmra.mrb[0].mxu0 %v467
      %v928 = vpop.f32.mrb[0].mxu0
      %v929 = vadd.f32 0.0, %v928
      %v930 = vpop.f32.mrb[0].mxu0
      %931 = vmatprep.mubr.f32.mxu0 %v684
      %932 = vmatmul.mubr.f32.gmra.mrb[0].mxu0 %v468
      %v933 = vpop.f32.mrb[0].mxu0
      %v934 = vadd.f32 0.0, %v933
      %v935 = vpop.f32.mrb[0].mxu0
      %936 = vdwg.mxu0
      %937 = vmatprep.subr.mxu0 0.0
      %938 = vmatpush1.msra.mxu0 %v508
      %939 = vmatprep.subr.mxu0 0.0
      %940 = vmatpush1.msra.mxu0 %v509
      %941 = vmatprep.subr.mxu0 0.0
      %942 = vmatpush1.msra.mxu0 %v510
      %943 = vmatprep.subr.mxu0 0.0
      %944 = vmatpush1.msra.mxu0 %v511
      %945 = vmatprep.subr.mxu0 0.0
      %946 = vmatpush1.msra.mxu0 %v512
      %947 = vmatprep.subr.mxu0 0.0
      %948 = vmatpush1.msra.mxu0 %v513
      %949 = vmatprep.subr.mxu0 0.0
      %950 = vmatpush1.msra.mxu0 %v514
      %951 = vmatprep.subr.mxu0 0.0
      %952 = vmatpush1.msra.mxu0 %v515
      %953 = vmatprep.subr.mxu0 0.0
      %954 = vmatpush1.msra.mxu0 %v516
      %955 = vmatprep.subr.mxu0 0.0
      %956 = vmatpush1.msra.mxu0 %v517
      %957 = vmatprep.subr.mxu0 0.0
      %958 = vmatpush1.msra.mxu0 %v518
      %959 = vmatprep.subr.mxu0 0.0
      %960 = vmatpush1.msra.mxu0 %v519
      %961 = vmatprep.subr.mxu0 0.0
      %962 = vmatpush1.msra.mxu0 %v520
      %963 = vmatprep.subr.mxu0 0.0
      %964 = vmatpush1.msra.mxu0 %v521
      %965 = vmatprep.subr.mxu0 0.0
      %966 = vmatpush1.msra.mxu0 %v522
      %967 = vmatprep.subr.mxu0 0.0
      %968 = vmatpush1.msra.mxu0 %v523
      %969 = vmatprep.subr.mxu0 0.0
      %970 = vmatpush1.msra.mxu0 %v524
      %971 = vmatprep.subr.mxu0 0.0
      %972 = vmatpush1.msra.mxu0 %v525
      %973 = vmatprep.subr.mxu0 0.0
      %974 = vmatpush1.msra.mxu0 %v526
      %975 = vmatprep.subr.mxu0 0.0
      %976 = vmatpush1.msra.mxu0 %v527
      %977 = vmatprep.subr.mxu0 0.0
      %978 = vmatpush1.msra.mxu0 %v528
      %979 = vmatprep.subr.mxu0 0.0
      %980 = vmatpush1.msra.mxu0 %v529
      %981 = vmatprep.subr.mxu0 0.0
      %982 = vmatpush1.msra.mxu0 %v530
      %983 = vmatprep.subr.mxu0 0.0
      %984 = vmatpush1.msra.mxu0 %v531
      %985 = vmatprep.subr.mxu0 0.0
      %986 = vmatpush1.msra.mxu0 %v532
      %987 = vmatprep.subr.mxu0 0.0
      %988 = vmatpush1.msra.mxu0 %v533
      %989 = vmatprep.subr.mxu0 0.0
      %990 = vmatpush1.msra.mxu0 %v534
      %991 = vmatprep.subr.mxu0 0.0
      %992 = vmatpush1.msra.mxu0 %v535
      %993 = vmatprep.subr.mxu0 0.0
      %994 = vmatpush1.msra.mxu0 %v536
      %995 = vmatprep.subr.mxu0 0.0
      %996 = vmatpush1.msra.mxu0 %v537
      %997 = vmatprep.subr.mxu0 0.0
      %998 = vmatpush1.msra.mxu0 %v538
      %999 = vmatprep.subr.mxu0 0.0
      %1000 = vmatpush1.msra.mxu0 %v539
      %1001 = vmatprep.mubr.f32.mxu0 %v449
      %1002 = vmatmul.mubr.f32.gmra.mrb[0].mxu0 %v704
      %v1003 = vpop.f32.mrb[0].mxu0
      %v1004 = vadd.f32 %v859, %v1003
      %v1005 = vpop.f32.mrb[0].mxu0
      %1006 = vmatprep.mubr.f32.mxu0 %v450
      %1007 = vmatmul.mubr.f32.gmra.mrb[0].mxu0 %v706
      %v1008 = vpop.f32.mrb[0].mxu0
      %v1009 = vadd.f32 %v864, %v1008
      %v1010 = vpop.f32.mrb[0].mxu0
      %1011 = vmatprep.mubr.f32.mxu0 %v452
      %1012 = vmatmul.mubr.f32.gmra.mrb[0].mxu0 %v709
      %v1013 = vpop.f32.mrb[0].mxu0
      %v1014 = vadd.f32 %v869, %v1013
      %v1015 = vpop.f32.mrb[0].mxu0
      %1016 = vmatprep.mubr.f32.mxu0 %v453
      %1017 = vmatmul.mubr.f32.gmra.mrb[0].mxu0 %v711
      %v1018 = vpop.f32.mrb[0].mxu0
      %v1019 = vadd.f32 %v874, %v1018
      %v1020 = vpop.f32.mrb[0].mxu0
      %1021 = vmatprep.mubr.f32.mxu0 %v455
      %1022 = vmatmul.mubr.f32.gmra.mrb[0].mxu0 %v714
      %v1023 = vpop.f32.mrb[0].mxu0
      %v1024 = vadd.f32 %v879, %v1023
      %v1025 = vpop.f32.mrb[0].mxu0
      %1026 = vmatprep.mubr.f32.mxu0 %v456
      %1027 = vmatmul.mubr.f32.gmra.mrb[0].mxu0 %v716
      %v1028 = vpop.f32.mrb[0].mxu0
      %v1029 = vadd.f32 %v884, %v1028
      %v1030 = vpop.f32.mrb[0].mxu0
      %1031 = vmatprep.mubr.f32.mxu0 %v458
      %1032 = vmatmul.mubr.f32.gmra.mrb[0].mxu0 %v719
      %v1033 = vpop.f32.mrb[0].mxu0
      %v1034 = vadd.f32 %v889, %v1033
      %v1035 = vpop.f32.mrb[0].mxu0
      %1036 = vmatprep.mubr.f32.mxu0 %v459
      %1037 = vmatmul.mubr.f32.gmra.mrb[0].mxu0 %v721
      %v1038 = vpop.f32.mrb[0].mxu0
      %v1039 = vadd.f32 %v894, %v1038
      %v1040 = vpop.f32.mrb[0].mxu0
      %1041 = vmatprep.mubr.f32.mxu0 %v461
      %1042 = vmatmul.mubr.f32.gmra.mrb[0].mxu0 %v724
      %v1043 = vpop.f32.mrb[0].mxu0
      %v1044 = vadd.f32 %v899, %v1043
      %v1045 = vpop.f32.mrb[0].mxu0
      %1046 = vmatprep.mubr.f32.mxu0 %v462
      %1047 = vmatmul.mubr.f32.gmra.mrb[0].mxu0 %v726
      %v1048 = vpop.f32.mrb[0].mxu0
      %v1049 = vadd.f32 %v904, %v1048
      %v1050 = vpop.f32.mrb[0].mxu0
      %1051 = vmatprep.mubr.f32.mxu0 %v464
      %1052 = vmatmul.mubr.f32.gmra.mrb[0].mxu0 %v729
      %v1053 = vpop.f32.mrb[0].mxu0
      %v1054 = vadd.f32 %v909, %v1053
      %v1055 = vpop.f32.mrb[0].mxu0
      %1056 = vmatprep.mubr.f32.mxu0 %v465
      %1057 = vmatmul.mubr.f32.gmra.mrb[0].mxu0 %v731
      %v1058 = vpop.f32.mrb[0].mxu0
      %v1059 = vadd.f32 %v914, %v1058
      %v1060 = vpop.f32.mrb[0].mxu0
      %1061 = vmatprep.mubr.f32.mxu0 %v467
      %1062 = vmatmul.mubr.f32.gmra.mrb[0].mxu0 %v734
      %v1063 = vpop.f32.mrb[0].mxu0
      %v1064 = vadd.f32 %v919, %v1063
      %v1065 = vpop.f32.mrb[0].mxu0
      %1066 = vmatprep.mubr.f32.mxu0 %v468
      %1067 = vmatmul.mubr.f32.gmra.mrb[0].mxu0 %v736
      %v1068 = vpop.f32.mrb[0].mxu0
      %v1069 = vadd.f32 %v924, %v1068
      %v1070 = vpop.f32.mrb[0].mxu0
      %1071 = vmatprep.mubr.f32.mxu0 %v470
      %1072 = vmatmul.mubr.f32.gmra.mrb[0].mxu0 %v739
      %v1073 = vpop.f32.mrb[0].mxu0
      %v1074 = vadd.f32 %v929, %v1073
      %v1075 = vpop.f32.mrb[0].mxu0
      %1076 = vmatprep.mubr.f32.mxu0 %v471
      %1077 = vmatmul.mubr.f32.gmra.mrb[0].mxu0 %v741
      %v1078 = vpop.f32.mrb[0].mxu0
      %v1079 = vadd.f32 %v934, %v1078
      %v1080 = vpop.f32.mrb[0].mxu0
      %1081 = vdwg.mxu0
      %1082 = vmatprep.subr.mxu0 0.0
      %1083 = vmatpush1.msra.mxu0 %v540
      %1084 = vmatprep.subr.mxu0 0.0
      %1085 = vmatpush1.msra.mxu0 %v541
      %1086 = vmatprep.subr.mxu0 0.0
      %1087 = vmatpush1.msra.mxu0 %v542
      %1088 = vmatprep.subr.mxu0 0.0
      %1089 = vmatpush1.msra.mxu0 %v543
      %1090 = vmatprep.subr.mxu0 0.0
      %1091 = vmatpush1.msra.mxu0 %v544
      %1092 = vmatprep.subr.mxu0 0.0
      %1093 = vmatpush1.msra.mxu0 %v545
      %1094 = vmatprep.subr.mxu0 0.0
      %1095 = vmatpush1.msra.mxu0 %v546
      %1096 = vmatprep.subr.mxu0 0.0
      %1097 = vmatpush1.msra.mxu0 %v547
      %1098 = vmatprep.subr.mxu0 0.0
      %1099 = vmatpush1.msra.mxu0 %v548
      %1100 = vmatprep.subr.mxu0 0.0
      %1101 = vmatpush1.msra.mxu0 %v549
      %1102 = vmatprep.subr.mxu0 0.0
      %1103 = vmatpush1.msra.mxu0 %v550
      %1104 = vmatprep.subr.mxu0 0.0
      %1105 = vmatpush1.msra.mxu0 %v551
      %1106 = vmatprep.subr.mxu0 0.0
      %1107 = vmatpush1.msra.mxu0 %v552
      %1108 = vmatprep.subr.mxu0 0.0
      %1109 = vmatpush1.msra.mxu0 %v553
      %1110 = vmatprep.subr.mxu0 0.0
      %1111 = vmatpush1.msra.mxu0 %v554
      %1112 = vmatprep.subr.mxu0 0.0
      %1113 = vmatpush1.msra.mxu0 %v555
      %1114 = vmatprep.subr.mxu0 0.0
      %1115 = vmatpush1.msra.mxu0 %v556
      %1116 = vmatprep.subr.mxu0 0.0
      %1117 = vmatpush1.msra.mxu0 %v557
      %1118 = vmatprep.subr.mxu0 0.0
      %1119 = vmatpush1.msra.mxu0 %v558
      %1120 = vmatprep.subr.mxu0 0.0
      %1121 = vmatpush1.msra.mxu0 %v559
      %1122 = vmatprep.subr.mxu0 0.0
      %1123 = vmatpush1.msra.mxu0 %v560
      %1124 = vmatprep.subr.mxu0 0.0
      %1125 = vmatpush1.msra.mxu0 %v561
      %1126 = vmatprep.subr.mxu0 0.0
      %1127 = vmatpush1.msra.mxu0 %v562
      %1128 = vmatprep.subr.mxu0 0.0
      %1129 = vmatpush1.msra.mxu0 %v563
      %1130 = vmatprep.subr.mxu0 0.0
      %1131 = vmatpush1.msra.mxu0 %v564
      %1132 = vmatprep.subr.mxu0 0.0
      %1133 = vmatpush1.msra.mxu0 %v565
      %1134 = vmatprep.subr.mxu0 0.0
      %1135 = vmatpush1.msra.mxu0 %v566
      %1136 = vmatprep.subr.mxu0 0.0
      %1137 = vmatpush1.msra.mxu0 %v567
      %1138 = vmatprep.subr.mxu0 0.0
      %1139 = vmatpush1.msra.mxu0 %v568
      %1140 = vmatprep.subr.mxu0 0.0
      %1141 = vmatpush1.msra.mxu0 %v569
      %1142 = vmatprep.subr.mxu0 0.0
      %1143 = vmatpush1.msra.mxu0 %v570
      %1144 = vmatprep.subr.mxu0 0.0
      %1145 = vmatpush1.msra.mxu0 %v571
      %1146 = vmatprep.mubr.f32.mxu0 %v709
      %1147 = vmatmul.mubr.f32.gmra.mrb[0].mxu0 %v652
      %v1148 = vpop.f32.mrb[0].mxu0
      %v1149 = vadd.f32 %v1004, %v1148
      %v1150 = vpop.f32.mrb[0].mxu0
      %1151 = vmatprep.mubr.f32.mxu0 %v711
      %1152 = vmatmul.mubr.f32.gmra.mrb[0].mxu0 %v654
      %v1153 = vpop.f32.mrb[0].mxu0
      %v1154 = vadd.f32 %v1009, %v1153
      %v1155 = vpop.f32.mrb[0].mxu0
      %1156 = vmatprep.mubr.f32.mxu0 %v714
      %1157 = vmatmul.mubr.f32.gmra.mrb[0].mxu0 %v657
      %v1158 = vpop.f32.mrb[0].mxu0
      %v1159 = vadd.f32 %v1014, %v1158
      %v1160 = vpop.f32.mrb[0].mxu0
      %1161 = vmatprep.mubr.f32.mxu0 %v716
      %1162 = vmatmul.mubr.f32.gmra.mrb[0].mxu0 %v659
      %v1163 = vpop.f32.mrb[0].mxu0
      %v1164 = vadd.f32 %v1019, %v1163
      %v1165 = vpop.f32.mrb[0].mxu0
      %1166 = vmatprep.mubr.f32.mxu0 %v719
      %1167 = vmatmul.mubr.f32.gmra.mrb[0].mxu0 %v662
      %v1168 = vpop.f32.mrb[0].mxu0
      %v1169 = vadd.f32 %v1024, %v1168
      %v1170 = vpop.f32.mrb[0].mxu0
      %1171 = vmatprep.mubr.f32.mxu0 %v721
      %1172 = vmatmul.mubr.f32.gmra.mrb[0].mxu0 %v664
      %v1173 = vpop.f32.mrb[0].mxu0
      %v1174 = vadd.f32 %v1029, %v1173
      %v1175 = vpop.f32.mrb[0].mxu0
      %1176 = vmatprep.mubr.f32.mxu0 %v724
      %1177 = vmatmul.mubr.f32.gmra.mrb[0].mxu0 %v667
      %v1178 = vpop.f32.mrb[0].mxu0
      %v1179 = vadd.f32 %v1034, %v1178
      %v1180 = vpop.f32.mrb[0].mxu0
      %1181 = vmatprep.mubr.f32.mxu0 %v726
      %1182 = vmatmul.mubr.f32.gmra.mrb[0].mxu0 %v669
      %v1183 = vpop.f32.mrb[0].mxu0
      %v1184 = vadd.f32 %v1039, %v1183
      %v1185 = vpop.f32.mrb[0].mxu0
      %1186 = vmatprep.mubr.f32.mxu0 %v729
      %1187 = vmatmul.mubr.f32.gmra.mrb[0].mxu0 %v672
      %v1188 = vpop.f32.mrb[0].mxu0
      %v1189 = vadd.f32 %v1044, %v1188
      %v1190 = vpop.f32.mrb[0].mxu0
      %1191 = vmatprep.mubr.f32.mxu0 %v731
      %1192 = vmatmul.mubr.f32.gmra.mrb[0].mxu0 %v674
      %v1193 = vpop.f32.mrb[0].mxu0
      %v1194 = vadd.f32 %v1049, %v1193
      %v1195 = vpop.f32.mrb[0].mxu0
      %1196 = vmatprep.mubr.f32.mxu0 %v734
      %1197 = vmatmul.mubr.f32.gmra.mrb[0].mxu0 %v677
      %v1198 = vpop.f32.mrb[0].mxu0
      %v1199 = vadd.f32 %v1054, %v1198
      %v1200 = vpop.f32.mrb[0].mxu0
      %1201 = vmatprep.mubr.f32.mxu0 %v736
      %1202 = vmatmul.mubr.f32.gmra.mrb[0].mxu0 %v679
      %v1203 = vpop.f32.mrb[0].mxu0
      %v1204 = vadd.f32 %v1059, %v1203
      %v1205 = vpop.f32.mrb[0].mxu0
      %1206 = vmatprep.mubr.f32.mxu0 %v739
      %1207 = vmatmul.mubr.f32.gmra.mrb[0].mxu0 %v682
      %v1208 = vpop.f32.mrb[0].mxu0
      %v1209 = vadd.f32 %v1064, %v1208
      %v1210 = vpop.f32.mrb[0].mxu0
      %1211 = vmatprep.mubr.f32.mxu0 %v741
      %1212 = vmatmul.mubr.f32.gmra.mrb[0].mxu0 %v684
      %v1213 = vpop.f32.mrb[0].mxu0
      %v1214 = vadd.f32 %v1069, %v1213
      %v1215 = vpop.f32.mrb[0].mxu0
      %1216 = vmatprep.mubr.f32.mxu0 %v770
      %1217 = vmatmul.mubr.f32.gmra.mrb[0].mxu0 %v763
      %v1218 = vpop.f32.mrb[0].mxu0
      %v1219 = vadd.f32 %v1074, %v1218
      %v1220 = vpop.f32.mrb[0].mxu0
      %1221 = vmatprep.mubr.f32.mxu0 %v772
      %1222 = vmatmul.mubr.f32.gmra.mrb[0].mxu0 %v765
      %v1223 = vpop.f32.mrb[0].mxu0
      %v1224 = vadd.f32 %v1079, %v1223
      %v1225 = vpop.f32.mrb[0].mxu0
      %1226 = vdwg.mxu0
      %1227 = vmatprep.subr.mxu0 0.0
      %1228 = vmatpush1.msra.mxu0 %v572
      %1229 = vmatprep.subr.mxu0 0.0
      %1230 = vmatpush1.msra.mxu0 %v573
      %1231 = vmatprep.subr.mxu0 0.0
      %1232 = vmatpush1.msra.mxu0 %v574
      %1233 = vmatprep.subr.mxu0 0.0
      %1234 = vmatpush1.msra.mxu0 %v575
      %1235 = vmatprep.subr.mxu0 0.0
      %1236 = vmatpush1.msra.mxu0 %v576
      %1237 = vmatprep.subr.mxu0 0.0
      %1238 = vmatpush1.msra.mxu0 %v577
      %1239 = vmatprep.subr.mxu0 0.0
      %1240 = vmatpush1.msra.mxu0 %v578
      %1241 = vmatprep.subr.mxu0 0.0
      %1242 = vmatpush1.msra.mxu0 %v579
      %1243 = vmatprep.subr.mxu0 0.0
      %1244 = vmatpush1.msra.mxu0 %v580
      %1245 = vmatprep.subr.mxu0 0.0
      %1246 = vmatpush1.msra.mxu0 %v581
      %1247 = vmatprep.subr.mxu0 0.0
      %1248 = vmatpush1.msra.mxu0 %v582
      %1249 = vmatprep.subr.mxu0 0.0
      %1250 = vmatpush1.msra.mxu0 %v583
      %1251 = vmatprep.subr.mxu0 0.0
      %1252 = vmatpush1.msra.mxu0 %v584
      %1253 = vmatprep.subr.mxu0 0.0
      %1254 = vmatpush1.msra.mxu0 %v585
      %1255 = vmatprep.subr.mxu0 0.0
      %1256 = vmatpush1.msra.mxu0 %v586
      %1257 = vmatprep.subr.mxu0 0.0
      %1258 = vmatpush1.msra.mxu0 %v587
      %1259 = vmatprep.subr.mxu0 0.0
      %1260 = vmatpush1.msra.mxu0 %v588
      %1261 = vmatprep.subr.mxu0 0.0
      %1262 = vmatpush1.msra.mxu0 %v589
      %1263 = vmatprep.subr.mxu0 0.0
      %1264 = vmatpush1.msra.mxu0 %v590
      %1265 = vmatprep.subr.mxu0 0.0
      %1266 = vmatpush1.msra.mxu0 %v591
      %1267 = vmatprep.subr.mxu0 0.0
      %1268 = vmatpush1.msra.mxu0 %v592
      %1269 = vmatprep.subr.mxu0 0.0
      %1270 = vmatpush1.msra.mxu0 %v593
      %1271 = vmatprep.subr.mxu0 0.0
      %1272 = vmatpush1.msra.mxu0 %v594
      %1273 = vmatprep.subr.mxu0 0.0
      %1274 = vmatpush1.msra.mxu0 %v595
      %1275 = vmatprep.subr.mxu0 0.0
      %1276 = vmatpush1.msra.mxu0 %v596
      %1277 = vmatprep.subr.mxu0 0.0
      %1278 = vmatpush1.msra.mxu0 %v597
      %1279 = vmatprep.subr.mxu0 0.0
      %1280 = vmatpush1.msra.mxu0 %v598
      %1281 = vmatprep.subr.mxu0 0.0
      %1282 = vmatpush1.msra.mxu0 %v599
      %1283 = vmatprep.subr.mxu0 0.0
      %1284 = vmatpush1.msra.mxu0 %v600
      %1285 = vmatprep.subr.mxu0 0.0
      %1286 = vmatpush1.msra.mxu0 %v601
      %1287 = vmatprep.subr.mxu0 0.0
      %1288 = vmatpush1.msra.mxu0 %v602
      %1289 = vmatprep.subr.mxu0 0.0
      %1290 = vmatpush1.msra.mxu0 %v603
      %1291 = vmatprep.mubr.f32.mxu0 %v657
      %1292 = vmatmul.mubr.f32.gmra.mrb[0].mxu0 %v452
      %v1293 = vpop.f32.mrb[0].mxu0
      %v1294 = vadd.f32 %v1149, %v1293
      %v1295 = vpop.f32.mrb[0].mxu0
      %1296 = vmatprep.mubr.f32.mxu0 %v659
      %1297 = vmatmul.mubr.f32.gmra.mrb[0].mxu0 %v453
      %v1298 = vpop.f32.mrb[0].mxu0
      %v1299 = vadd.f32 %v1154, %v1298
      %v1300 = vpop.f32.mrb[0].mxu0
      %1301 = vmatprep.mubr.f32.mxu0 %v662
      %1302 = vmatmul.mubr.f32.gmra.mrb[0].mxu0 %v455
      %v1303 = vpop.f32.mrb[0].mxu0
      %v1304 = vadd.f32 %v1159, %v1303
      %v1305 = vpop.f32.mrb[0].mxu0
      %1306 = vmatprep.mubr.f32.mxu0 %v664
      %1307 = vmatmul.mubr.f32.gmra.mrb[0].mxu0 %v456
      %v1308 = vpop.f32.mrb[0].mxu0
      %v1309 = vadd.f32 %v1164, %v1308
      %v1310 = vpop.f32.mrb[0].mxu0
      %1311 = vmatprep.mubr.f32.mxu0 %v667
      %1312 = vmatmul.mubr.f32.gmra.mrb[0].mxu0 %v458
      %v1313 = vpop.f32.mrb[0].mxu0
      %v1314 = vadd.f32 %v1169, %v1313
      %v1315 = vpop.f32.mrb[0].mxu0
      %1316 = vmatprep.mubr.f32.mxu0 %v669
      %1317 = vmatmul.mubr.f32.gmra.mrb[0].mxu0 %v459
      %v1318 = vpop.f32.mrb[0].mxu0
      %v1319 = vadd.f32 %v1174, %v1318
      %v1320 = vpop.f32.mrb[0].mxu0
      %1321 = vmatprep.mubr.f32.mxu0 %v672
      %1322 = vmatmul.mubr.f32.gmra.mrb[0].mxu0 %v461
      %v1323 = vpop.f32.mrb[0].mxu0
      %v1324 = vadd.f32 %v1179, %v1323
      %v1325 = vpop.f32.mrb[0].mxu0
      %1326 = vmatprep.mubr.f32.mxu0 %v674
      %1327 = vmatmul.mubr.f32.gmra.mrb[0].mxu0 %v462
      %v1328 = vpop.f32.mrb[0].mxu0
      %v1329 = vadd.f32 %v1184, %v1328
      %v1330 = vpop.f32.mrb[0].mxu0
      %1331 = vmatprep.mubr.f32.mxu0 %v677
      %1332 = vmatmul.mubr.f32.gmra.mrb[0].mxu0 %v464
      %v1333 = vpop.f32.mrb[0].mxu0
      %v1334 = vadd.f32 %v1189, %v1333
      %v1335 = vpop.f32.mrb[0].mxu0
      %1336 = vmatprep.mubr.f32.mxu0 %v679
      %1337 = vmatmul.mubr.f32.gmra.mrb[0].mxu0 %v465
      %v1338 = vpop.f32.mrb[0].mxu0
      %v1339 = vadd.f32 %v1194, %v1338
      %v1340 = vpop.f32.mrb[0].mxu0
      %1341 = vmatprep.mubr.f32.mxu0 %v682
      %1342 = vmatmul.mubr.f32.gmra.mrb[0].mxu0 %v467
      %v1343 = vpop.f32.mrb[0].mxu0
      %v1344 = vadd.f32 %v1199, %v1343
      %v1345 = vpop.f32.mrb[0].mxu0
      %1346 = vmatprep.mubr.f32.mxu0 %v684
      %1347 = vmatmul.mubr.f32.gmra.mrb[0].mxu0 %v468
      %v1348 = vpop.f32.mrb[0].mxu0
      %v1349 = vadd.f32 %v1204, %v1348
      %v1350 = vpop.f32.mrb[0].mxu0
      %1351 = vmatprep.mubr.f32.mxu0 %v763
      %1352 = vmatmul.mubr.f32.gmra.mrb[0].mxu0 %v470
      %v1353 = vpop.f32.mrb[0].mxu0
      %v1354 = vadd.f32 %v1209, %v1353
      %v1355 = vpop.f32.mrb[0].mxu0
      %1356 = vmatprep.mubr.f32.mxu0 %v765
      %1357 = vmatmul.mubr.f32.gmra.mrb[0].mxu0 %v471
      %v1358 = vpop.f32.mrb[0].mxu0
      %v1359 = vadd.f32 %v1214, %v1358
      %v1360 = vpop.f32.mrb[0].mxu0
      %1361 = vmatprep.mubr.f32.mxu0 %v780
      %1362 = vmatmul.mubr.f32.gmra.mrb[0].mxu0 %v473
      %v1363 = vpop.f32.mrb[0].mxu0
      %v1364 = vadd.f32 %v1219, %v1363
      %v1365 = vpop.f32.mrb[0].mxu0
      %1366 = vmatprep.mubr.f32.mxu0 %v782
      %1367 = vmatmul.mubr.f32.gmra.mrb[0].mxu0 %v474
      %v1368 = vpop.f32.mrb[0].mxu0
      %v1369 = vadd.f32 %v1224, %v1368
      %v1370 = vpop.f32.mrb[0].mxu0
      %1371 = vdwg.mxu0
      %1372 = vmatprep.subr.mxu0 0.0
      %1373 = vmatpush1.msra.mxu0 %v604
      %1374 = vmatprep.subr.mxu0 0.0
      %1375 = vmatpush1.msra.mxu0 %v605
      %1376 = vmatprep.subr.mxu0 0.0
      %1377 = vmatpush1.msra.mxu0 %v606
      %1378 = vmatprep.subr.mxu0 0.0
      %1379 = vmatpush1.msra.mxu0 %v607
      %1380 = vmatprep.subr.mxu0 0.0
      %1381 = vmatpush1.msra.mxu0 %v608
      %1382 = vmatprep.subr.mxu0 0.0
      %1383 = vmatpush1.msra.mxu0 %v609
      %1384 = vmatprep.subr.mxu0 0.0
      %1385 = vmatpush1.msra.mxu0 %v610
      %1386 = vmatprep.subr.mxu0 0.0
      %1387 = vmatpush1.msra.mxu0 %v611
      %1388 = vmatprep.subr.mxu0 0.0
      %1389 = vmatpush1.msra.mxu0 %v612
      %1390 = vmatprep.subr.mxu0 0.0
      %1391 = vmatpush1.msra.mxu0 %v613
      %1392 = vmatprep.subr.mxu0 0.0
      %1393 = vmatpush1.msra.mxu0 %v614
      %1394 = vmatprep.subr.mxu0 0.0
      %1395 = vmatpush1.msra.mxu0 %v615
      %1396 = vmatprep.subr.mxu0 0.0
      %1397 = vmatpush1.msra.mxu0 %v616
      %1398 = vmatprep.subr.mxu0 0.0
      %1399 = vmatpush1.msra.mxu0 %v617
      %1400 = vmatprep.subr.mxu0 0.0
      %1401 = vmatpush1.msra.mxu0 %v618
      %1402 = vmatprep.subr.mxu0 0.0
      %1403 = vmatpush1.msra.mxu0 %v619
      %1404 = vmatprep.subr.mxu0 0.0
      %1405 = vmatpush1.msra.mxu0 0.0
      %1406 = vmatprep.subr.mxu0 0.0
      %1407 = vmatpush1.msra.mxu0 0.0
      %1408 = vmatprep.subr.mxu0 0.0
      %1409 = vmatpush1.msra.mxu0 0.0
      %1410 = vmatprep.subr.mxu0 0.0
      %1411 = vmatpush1.msra.mxu0 0.0
      %1412 = vmatprep.subr.mxu0 0.0
      %1413 = vmatpush1.msra.mxu0 0.0
      %1414 = vmatprep.subr.mxu0 0.0
      %1415 = vmatpush1.msra.mxu0 0.0
      %1416 = vmatprep.subr.mxu0 0.0
      %1417 = vmatpush1.msra.mxu0 0.0
      %1418 = vmatprep.subr.mxu0 0.0
      %1419 = vmatpush1.msra.mxu0 0.0
      %1420 = vmatprep.subr.mxu0 0.0
      %1421 = vmatpush1.msra.mxu0 0.0
      %1422 = vmatprep.subr.mxu0 0.0
      %1423 = vmatpush1.msra.mxu0 0.0
      %1424 = vmatprep.subr.mxu0 0.0
      %1425 = vmatpush1.msra.mxu0 0.0
      %1426 = vmatprep.subr.mxu0 0.0
      %1427 = vmatpush1.msra.mxu0 0.0
      %1428 = vmatprep.subr.mxu0 0.0
      %1429 = vmatpush1.msra.mxu0 0.0
      %1430 = vmatprep.subr.mxu0 0.0
      %1431 = vmatpush1.msra.mxu0 0.0
      %1432 = vmatprep.subr.mxu0 0.0
      %1433 = vmatpush1.msra.mxu0 0.0
      %1434 = vmatprep.subr.mxu0 0.0
      %1435 = vmatpush1.msra.mxu0 0.0
      %1436 = vmatprep.mubr.f32.mxu0 0.0
      %1437 = vmatmul.mubr.f32.gmra.mrb[0].mxu0 %v714
      %v1438 = vpop.f32.mrb[0].mxu0
      %v1439 = vadd.f32 %v1294, %v1438
      %v1440 = vpop.f32.mrb[0].mxu0
      %1441 = vmatprep.mubr.f32.mxu0 0.0
      %1442 = vmatmul.mubr.f32.gmra.mrb[0].mxu0 %v716
      %v1443 = vpop.f32.mrb[0].mxu0
      %v1444 = vadd.f32 %v1299, %v1443
      %v1445 = vpop.f32.mrb[0].mxu0
      %1446 = vmatprep.mubr.f32.mxu0 0.0
      %1447 = vmatmul.mubr.f32.gmra.mrb[0].mxu0 %v719
      %v1448 = vpop.f32.mrb[0].mxu0
      %v1449 = vadd.f32 %v1304, %v1448
      %v1450 = vpop.f32.mrb[0].mxu0
      %1451 = vmatprep.mubr.f32.mxu0 0.0
      %1452 = vmatmul.mubr.f32.gmra.mrb[0].mxu0 %v721
      %v1453 = vpop.f32.mrb[0].mxu0
      %v1454 = vadd.f32 %v1309, %v1453
      %v1455 = vpop.f32.mrb[0].mxu0
      %1456 = vmatprep.mubr.f32.mxu0 0.0
      %1457 = vmatmul.mubr.f32.gmra.mrb[0].mxu0 %v724
      %v1458 = vpop.f32.mrb[0].mxu0
      %v1459 = vadd.f32 %v1314, %v1458
      %v1460 = vpop.f32.mrb[0].mxu0
      %1461 = vmatprep.mubr.f32.mxu0 0.0
      %1462 = vmatmul.mubr.f32.gmra.mrb[0].mxu0 %v726
      %v1463 = vpop.f32.mrb[0].mxu0
      %v1464 = vadd.f32 %v1319, %v1463
      %v1465 = vpop.f32.mrb[0].mxu0
      %1466 = vmatprep.mubr.f32.mxu0 0.0
      %1467 = vmatmul.mubr.f32.gmra.mrb[0].mxu0 %v729
      %v1468 = vpop.f32.mrb[0].mxu0
      %v1469 = vadd.f32 %v1324, %v1468
      %v1470 = vpop.f32.mrb[0].mxu0
      %1471 = vmatprep.mubr.f32.mxu0 0.0
      %1472 = vmatmul.mubr.f32.gmra.mrb[0].mxu0 %v731
      %v1473 = vpop.f32.mrb[0].mxu0
      %v1474 = vadd.f32 %v1329, %v1473
      %v1475 = vpop.f32.mrb[0].mxu0
      %1476 = vmatprep.mubr.f32.mxu0 0.0
      %1477 = vmatmul.mubr.f32.gmra.mrb[0].mxu0 %v734
      %v1478 = vpop.f32.mrb[0].mxu0
      %v1479 = vadd.f32 %v1334, %v1478
      %v1480 = vpop.f32.mrb[0].mxu0
      %1481 = vmatprep.mubr.f32.mxu0 0.0
      %1482 = vmatmul.mubr.f32.gmra.mrb[0].mxu0 %v736
      %v1483 = vpop.f32.mrb[0].mxu0
      %v1484 = vadd.f32 %v1339, %v1483
      %v1485 = vpop.f32.mrb[0].mxu0
      %1486 = vmatprep.mubr.f32.mxu0 0.0
      %1487 = vmatmul.mubr.f32.gmra.mrb[0].mxu0 %v739
      %v1488 = vpop.f32.mrb[0].mxu0
      %v1489 = vadd.f32 %v1344, %v1488
      %v1490 = vpop.f32.mrb[0].mxu0
      %1491 = vmatprep.mubr.f32.mxu0 0.0
      %1492 = vmatmul.mubr.f32.gmra.mrb[0].mxu0 %v741
      %v1493 = vpop.f32.mrb[0].mxu0
      %v1494 = vadd.f32 %v1349, %v1493
      %v1495 = vpop.f32.mrb[0].mxu0
      %1496 = vmatprep.mubr.f32.mxu0 0.0
      %1497 = vmatmul.mubr.f32.gmra.mrb[0].mxu0 %v770
      %v1498 = vpop.f32.mrb[0].mxu0
      %v1499 = vadd.f32 %v1354, %v1498
      %v1500 = vpop.f32.mrb[0].mxu0
      %1501 = vmatprep.mubr.f32.mxu0 0.0
      %1502 = vmatmul.mubr.f32.gmra.mrb[0].mxu0 %v772
      %v1503 = vpop.f32.mrb[0].mxu0
      %v1504 = vadd.f32 %v1359, %v1503
      %v1505 = vpop.f32.mrb[0].mxu0
      %1506 = vmatprep.mubr.f32.mxu0 0.0
      %1507 = vmatmul.mubr.f32.gmra.mrb[0].mxu0 %v787
      %v1508 = vpop.f32.mrb[0].mxu0
      %v1509 = vadd.f32 %v1364, %v1508
      %v1510 = vpop.f32.mrb[0].mxu0
      %1511 = vmatprep.mubr.f32.mxu0 0.0
      %1512 = vmatmul.mubr.f32.gmra.mrb[0].mxu0 %v789
      %v1513 = vpop.f32.mrb[0].mxu0
      %v1514 = vadd.f32 %v1369, %v1513
      %v1515 = vpop.f32.mrb[0].mxu0
      %1516 = vdwg.mxu0
      %v1517 = vadd.f32 %v1439, %v1444
      %v1518 = vadd.f32 %v1517, %v1449
      %v1519 = vadd.f32 %v1518, %v1454
      %v1520 = vadd.f32 %v1519, %v1459
      %v1521 = vadd.f32 %v1520, %v1464
      %v1522 = vadd.f32 %v1521, %v1469
      %v1523 = vadd.f32 %v1522, %v1474
      %v1524 = vadd.f32 %v1523, %v1479
      %v1525 = vadd.f32 %v1524, %v1484
      %v1526 = vadd.f32 %v1525, %v1489
      %v1527 = vadd.f32 %v1526, %v1494
      %v1528 = vadd.f32 %v1527, %v1499
      %v1529 = vadd.f32 %v1528, %v1504
      %v1530 = vadd.f32 %v1529, %v1509
      %v1531 = vadd.f32 %v1530, %v1514
      %v1532 = vrot.slane %v1531, 4
      %v1533 = vadd.f32 %v1531, %v1532
      %v1534 = vrot.slane %v1533, 2
      %v1535 = vadd.f32 %v1533, %v1534
      %v1536 = vrot.slane %v1535, 1
      %v1537 = vadd.f32 %v1535, %v1536
      %v1538 = vmul.f32 %v1439, %v1439
      %v1539 = vmul.f32 %v1444, %v1444
      %v1540 = vmul.f32 %v1449, %v1449
      %v1541 = vmul.f32 %v1454, %v1454
      %v1542 = vmul.f32 %v1459, %v1459
      %v1543 = vmul.f32 %v1464, %v1464
      %v1544 = vmul.f32 %v1469, %v1469
      %v1545 = vmul.f32 %v1474, %v1474
      %v1546 = vmul.f32 %v1479, %v1479
      %v1547 = vmul.f32 %v1484, %v1484
      %v1548 = vmul.f32 %v1489, %v1489
      %v1549 = vmul.f32 %v1494, %v1494
      %v1550 = vmul.f32 %v1499, %v1499
      %v1551 = vmul.f32 %v1504, %v1504
      %v1552 = vmul.f32 %v1509, %v1509
      %v1553 = vmul.f32 %v1514, %v1514
      %v1554 = vadd.f32 %v1538, %v1539
      %v1555 = vadd.f32 %v1554, %v1540
      %v1556 = vadd.f32 %v1555, %v1541
      %v1557 = vadd.f32 %v1556, %v1542
      %v1558 = vadd.f32 %v1557, %v1543
      %v1559 = vadd.f32 %v1558, %v1544
      %v1560 = vadd.f32 %v1559, %v1545
      %v1561 = vadd.f32 %v1560, %v1546
      %v1562 = vadd.f32 %v1561, %v1547
      %v1563 = vadd.f32 %v1562, %v1548
      %v1564 = vadd.f32 %v1563, %v1549
      %v1565 = vadd.f32 %v1564, %v1550
      %v1566 = vadd.f32 %v1565, %v1551
      %v1567 = vadd.f32 %v1566, %v1552
      %v1568 = vadd.f32 %v1567, %v1553
      %v1569 = vrot.slane %v1568, 4
      %v1570 = vadd.f32 %v1568, %v1569
      %v1571 = vrot.slane %v1570, 2
      %v1572 = vadd.f32 %v1570, %v1571
      %v1573 = vrot.slane %v1572, 1
      %v1574 = vadd.f32 %v1572, %v1573
      %vm1575 = vcmask 1040384
      %v1576 = vsel %vm1575, %v1537, %v1574
      %vm1577 = vcmask 1041408
      %v1578 = vsel %vm1577, %v1576, 0.0
      %1579 = vst [vmem:[%s281] sm:$0xff] %v1578
      %1580 = vst [vmem:[%s273] sm:$0xff] %v1439
      %1581 = vst [vmem:[%s273 + $0x8] sm:$0xff] %v1444
      %1582 = vst [vmem:[%s273 + $0x10] sm:$0xff] %v1449
      %1583 = vst [vmem:[%s273 + $0x18] sm:$0xff] %v1454
      %1584 = vst [vmem:[%s273 + $0x20] sm:$0xff] %v1459
      %1585 = vst [vmem:[%s273 + $0x28] sm:$0xff] %v1464
      %1586 = vst [vmem:[%s273 + $0x30] sm:$0xff] %v1469
      %1587 = vst [vmem:[%s273 + $0x38] sm:$0xff] %v1474
      %1588 = vst [vmem:[%s273 + $0x40] sm:$0xff] %v1479
      %1589 = vst [vmem:[%s273 + $0x48] sm:$0xff] %v1484
      %1590 = vst [vmem:[%s273 + $0x50] sm:$0xff] %v1489
      %1591 = vst [vmem:[%s273 + $0x58] sm:$0xff] %v1494
      %1592 = vst [vmem:[%s273 + $0x60] sm:$0xff] %v1499
      %1593 = vst [vmem:[%s273 + $0x68] sm:$0xff] %v1504
      %1594 = vst [vmem:[%s273 + $0x70] sm:$0xff] %v1509
      %1595 = vst [vmem:[%s273 + $0x78] sm:$0xff] %v1514
      %p1596 = scmp.lt.s32.totalorder %s21, 1
      %s1597 = scalar_select %p1596, %s21, 1
      %p1598 = scmp.lt.s32.totalorder %s22, 1
      %s1599 = scalar_select %p1598, %s22, 1
      %s1600 = smul.addr %s1599, 16
      %s1601 = smul.addr %s1597, 32
      %s1602 = sadd.s32 %s1600, %s1601
      %s1603 = smul.addr %s1602, 8
      %s1604 = scalar_lea.vmem %s4, %s1603
      %p1605 = scmp.lt.s32.totalorder %s21, 1
      %s1606 = scalar_select %p1605, %s21, 1
      %p1607 = scmp.lt.s32.totalorder %s22, 1
      %s1608 = scalar_select %p1607, %s22, 1
      %s1609 = smul.addr %s1606, 2
      %s1610 = sadd.s32 %s1608, %s1609
      %s1611 = smul.addr %s1610, 8
      %s1612 = scalar_lea.vmem %s5, %s1611
      // Predicated region
      $region37: #{res_block_forward.4} parent=35 // pred_check
        %p1613 = pneg %p140
      $region38: #{res_block_forward.4} parent=35 // pred_check_branch
        %1615 = sbr.rel (%p1613) target = $region40
      $region39: #{res_block_forward.4} parent=35 // pred_region
        _
      $region40: #{res_block_forward.4} parent=35 // pred_fallthru
        _
      // Predicated region
      $region41: #{res_block_forward.4} parent=35 // pred_check
        %p1616 = pneg %p168
      $region42: #{res_block_forward.4} parent=35 // pred_check_branch
        %1618 = sbr.rel (%p1616) target = $region44
      $region43: #{res_block_forward.4} parent=35 // pred_region
        _
      $region44: #{res_block_forward.4} parent=35 // pred_fallthru
        _
    $region36: #{res_block_forward.4} parent=5 // pred_fallthru
      _
    %p1619 = scmp.le.s32.totalorder 2, %s12
    // Predicated region
    $region45: #{res_block_forward.4} parent=5 // pred_check
      %p1620 = pneg %p1619
    $region46: #{res_block_forward.4} parent=5 // pred_check_branch
      %1622 = sbr.rel (%p1620) target = $region48
    $region47: #{res_block_forward.4} parent=5 // pred_region
      %s1623 = ssub.s32 %s12, 2
      // Predicated region
      $region49: #{res_block_forward.4} parent=47 // pred_check
        %p1624 = pneg %p146
      $region50: #{res_block_forward.4} parent=47 // pred_check_branch
        %1626 = sbr.rel (%p1624) target = $region52
      $region51: #{res_block_forward.4} parent=47 // pred_region
        %p1627 = scmp.lt.s32.totalorder %s23, 1
        %s1628 = scalar_select %p1627, %s23, 1
        %p1629 = scmp.lt.s32.totalorder %s24, 1
        %s1630 = scalar_select %p1629, %s24, 1
        %s1631 = smul.addr %s1630, 16
        %s1632 = smul.addr %s1628, 32
        %s1633 = sadd.s32 %s1631, %s1632
        %s1634 = smul.addr %s1633, 8
        %s1635 = scalar_lea.vmem %s4, %s1634
      $region52: #{res_block_forward.4} parent=47 // pred_fallthru
        _
      // Predicated region
      $region53: #{res_block_forward.4} parent=47 // pred_check
        %p1636 = pneg %p174
      $region54: #{res_block_forward.4} parent=47 // pred_check_branch
        %1638 = sbr.rel (%p1636) target = $region56
      $region55: #{res_block_forward.4} parent=47 // pred_region
        %p1639 = scmp.lt.s32.totalorder %s23, 1
        %s1640 = scalar_select %p1639, %s23, 1
        %p1641 = scmp.lt.s32.totalorder %s24, 1
        %s1642 = scalar_select %p1641, %s24, 1
        %s1643 = smul.addr %s1640, 2
        %s1644 = sadd.s32 %s1642, %s1643
        %s1645 = smul.addr %s1644, 8
        %s1646 = scalar_lea.vmem %s5, %s1645
      $region56: #{res_block_forward.4} parent=47 // pred_fallthru
        _
    $region48: #{res_block_forward.4} parent=5 // pred_fallthru
      _
  $region6: #{res_block_forward.4} parent=0 // loop_footer
    %s16 = sadd.s32 1, %s12
  $region7: #{res_block_forward.4} parent=0 // loop_footer_branch
    %11 = sbr.rel target = $region3
  $region8: #{res_block_forward.4} parent=0 // loop_exit
    _

</llo_original>
